<compile_context>
chip_gen: v7x
topology: tpu7x:2x2x1
jax: 0.10.0
libtpu: 0.0.40
codegen_flags: <defaults>
</compile_context>

<pallas_src>
import jax
import jax.numpy as jnp
from jax import lax
from jax.experimental import pallas as pl
from jax.experimental.pallas import tpu as pltpu

_VMEM_LIMIT = 32 * 1024 * 1024  # per-call ceiling; safe on v7x (64 MiB/TC) and v5e/v6e (128 MiB)


# --------------------------------------------------------------------------- tile pickers

def _pick_tm(M, target):
    """Lane-aligned pixel tile; guarantees >=2 grid blocks when M allows it (v7x 2 TCs)."""
    if M < 256:
        return M                                        # single full-extent block
    return min(target, max(128, (M // 2 // 128) * 128))  # 128-aligned, partial last block OK


def _pick_tm_divisor(Mr, target):
    """Largest 128-multiple tile that exactly divides Mr and is <= target (None if impossible)."""
    if Mr % 128 != 0:
        return None
    units = Mr // 128
    best = None
    for d in range(1, units + 1):
        if units % d == 0 and 128 * d <= target:
            best = 128 * d
    return best


def _pick_pe_rows(H, target_rows=256):
    if H <= 8:
        return H
    return min(H, max(8, (min(target_rows, H // 2) // 8) * 8))


# --------------------------------------------------------------------------- kernels

def _gemm_bias_kernel(w_ref, x_ref, b_ref, o_ref):
    # out_t (N, tm) = W (N, K) @ X_t (K, tm) + b (N, 1); pixels on lanes -> lane-dense stores.
    acc = jnp.dot(w_ref[...], x_ref[...], preferred_element_type=jnp.float32)
    o_ref[...] = (acc + b_ref[...]).astype(o_ref.dtype)


def _gemm_bias_res_kernel(w_ref, x_ref, b_ref, r_ref, o_ref):
    # Same as above plus a fused residual add (FPN top-down add); residual math in f32.
    acc = jnp.dot(w_ref[...], x_ref[...], preferred_element_type=jnp.float32)
    acc = acc + b_ref[...] + r_ref[...].astype(jnp.float32)
    o_ref[...] = acc.astype(o_ref.dtype)


def gemm_bias_t(w, x_t, b, *, residual_t=None, residual_groups=1,
                tm_target=8192, out_dtype=jnp.float32):
    """Lane-dense transposed GEMM:  (N, K) @ (K, M) + (N, 1) [+ residual] -> (N, M).

    If residual_groups > 1, `x_t` columns are laid out as `residual_groups` consecutive
    groups of M // residual_groups pixels and `residual_t` has one column per group
    member; the residual BlockSpec re-reads the same low-res block for every group,
    which IS the nearest-2x FPN upsample -- no upsampled array is materialized.
    """
    N, K = w.shape
    K2, M = x_t.shape
    assert K == K2
    x_t = x_t.astype(w.dtype)
    b2 = b.reshape(N, 1).astype(jnp.float32)
    cparams = pltpu.CompilerParams(dimension_semantics=("parallel",),
                                   vmem_limit_bytes=_VMEM_LIMIT)

    if residual_t is not None and residual_groups > 1:
        Mr = M // residual_groups
        assert Mr * residual_groups == M and residual_t.shape == (N, Mr)
        tm = _pick_tm_divisor(Mr, tm_target)
        if tm is not None:
            nj = Mr // tm
            return pl.pallas_call(
                _gemm_bias_res_kernel,
                out_shape=jax.ShapeDtypeStruct((N, M), out_dtype),
                grid=(residual_groups * nj,),
                in_specs=[
                    pl.BlockSpec((N, K), lambda i: (0, 0)),        # weights resident
                    pl.BlockSpec((K, tm), lambda i: (0, i)),       # activations streamed
                    pl.BlockSpec((N, 1), lambda i: (0, 0)),        # bias
                    pl.BlockSpec((N, tm), lambda i: (0, i % nj)),  # fused nearest-2x residual
                ],
                out_specs=pl.BlockSpec((N, tm), lambda i: (0, i)),
                compiler_params=cparams,
            )(w, x_t, b2, residual_t)
        # Fallback (pixel dim not 128-aligned): materialize the tiled residual in its own
        # (cheap, bf16) dtype and use the plain fused-add path below.
        residual_t = jnp.tile(residual_t, (1, residual_groups))
        residual_groups = 1

    tm = _pick_tm(M, tm_target)
    in_specs = [pl.BlockSpec((N, K), lambda i: (0, 0)),
                pl.BlockSpec((K, tm), lambda i: (0, i)),
                pl.BlockSpec((N, 1), lambda i: (0, 0))]
    args = [w, x_t, b2]
    kernel = _gemm_bias_kernel
    if residual_t is not None:
        in_specs.append(pl.BlockSpec((N, tm), lambda i: (0, i)))
        args.append(residual_t)
        kernel = _gemm_bias_res_kernel
    return pl.pallas_call(
        kernel,
        out_shape=jax.ShapeDtypeStruct((N, M), out_dtype),
        grid=(pl.cdiv(M, tm),),
        in_specs=in_specs,
        out_specs=pl.BlockSpec((N, tm), lambda i: (0, i)),
        compiler_params=cparams,
    )(*args)


def _sine_pe_kernel(row_ref, col_ref, o_ref):
    # row_ref: (C, th, 1), col_ref: (C, 1, W) -- phase terms with the odd-channel +pi/2
    # already folded in; phase is built in-kernel (no (C, H*W) HBM round trip).
    o_ref[...] = jnp.sin(row_ref[...] + col_ref[...]).astype(o_ref.dtype)


def sine_pos_enc(H, W, num_pos_feats, temperature=10000.0):
    """SAM2 PositionEmbeddingSine (normalize=True, scale=2*pi). Returns (2*npf, H, W) f32."""
    f32 = jnp.float32
    eps, scale = 1e-6, 2.0 * jnp.pi
    C = 2 * num_pos_feats
    y = jnp.arange(1, H + 1, dtype=f32)
    x = jnp.arange(1, W + 1, dtype=f32)
    y_embed = y / (y[-1] + eps) * scale                                   # (H,)
    x_embed = x / (x[-1] + eps) * scale                                   # (W,)
    di = jnp.arange(num_pos_feats, dtype=f32)
    dim_t = temperature ** (2.0 * jnp.floor(di / 2.0) / num_pos_feats)    # (npf,)
    phase_y = y_embed[None, :] / dim_t[:, None]                           # (npf, H)
    phase_x = x_embed[None, :] / dim_t[:, None]                           # (npf, W)
    row = jnp.concatenate([phase_y, jnp.zeros((num_pos_feats, H), f32)], axis=0)   # (C, H)
    col = jnp.concatenate([jnp.zeros((num_pos_feats, W), f32), phase_x], axis=0)   # (C, W)
    ch = jnp.arange(C)
    half_pi = (ch % 2).astype(f32) * (0.5 * jnp.pi)                       # odd ch -> cos
    row = row + jnp.where(ch < num_pos_feats, half_pi, 0.0)[:, None]
    col = col + jnp.where(ch >= num_pos_feats, half_pi, 0.0)[:, None]
    row = row[:, :, None]                                                 # (C, H, 1)
    col = col[:, None, :]                                                 # (C, 1, W)

    th = _pick_pe_rows(H)
    return pl.pallas_call(
        _sine_pe_kernel,
        out_shape=jax.ShapeDtypeStruct((C, H, W), jnp.float32),
        grid=(pl.cdiv(H, th),),
        in_specs=[pl.BlockSpec((C, th, 1), lambda i: (0, i, 0)),
                  pl.BlockSpec((C, 1, W), lambda i: (0, 0, 0))],
        out_specs=pl.BlockSpec((C, th, W), lambda i: (0, i, 0)),
        compiler_params=pltpu.CompilerParams(
            dimension_semantics=("parallel",),
            vmem_limit_bytes=_VMEM_LIMIT),
    )(row, col)


# --------------------------------------------------------------------------- layout glue

def _im2col_stage0(x_nchw, p0, p1):
    """(B, C, H, W) -> (C*p0*p0, p1*p1*B*H1*W1) for the stage-0 patch conv.

    Rows ordered (c, kh, kw).  Columns ordered (ph1, pw1, b, ho1, wo1) -- sub-pixel group
    (within the stage-1 p1 x p1 patch) MAJOR, so that the stage-1 im2col and the FPN
    nearest-2x upsample both become zero-cost.  Tiny (3-channel input) XLA layout glue.
    """
    B, C, H, W = x_nchw.shape
    assert H % (p0 * p1) == 0 and W % (p0 * p1) == 0
    H1, W1 = H // (p0 * p1), W // (p0 * p1)
    x = x_nchw.reshape(B, C, H1, p1, p0, W1, p1, p0)      # (b, c, ho1, ph1, kh, wo1, pw1, kw)
    x = x.transpose(1, 4, 7, 3, 6, 0, 2, 5)               # (c, kh, kw, ph1, pw1, b, ho1, wo1)
    return x.reshape(C * p0 * p0, p1 * p1 * B * H1 * W1), (B, H1, W1)


# --------------------------------------------------------------------------- encoder

def init_params(key, in_chans=3, channel_list=(32, 64), d_model=16, patch0=4, patch1=2,
                mxu_dtype=jnp.bfloat16):
    """Deterministic synthetic parameters. GEMM weights stored (N, K) in bf16; biases f32."""
    ks = jax.random.split(key, 8)
    c0, c1 = channel_list

    def w(k, shape):
        return (0.05 * jax.random.normal(k, shape, jnp.float32)).astype(mxu_dtype)

    def bias(k, n):
        return 0.01 * jax.random.normal(k, (n,), jnp.float32)

    return {
        # trunk stage 0: patch0 x patch0 conv, in_chans -> c0; K order = (c, kh, kw)
        "t0_w": w(ks[0], (c0, in_chans * patch0 * patch0)), "t0_b": bias(ks[1], c0),
        # trunk stage 1: patch1 x patch1 conv, c0 -> c1; K order = (c, ph, pw)
        "t1_w": w(ks[2], (c1, c0 * patch1 * patch1)), "t1_b": bias(ks[3], c1),
        # neck lateral 1x1 convs to d_model
        "n0_w": w(ks[4], (d_model, c0)), "n0_b": bias(ks[5], d_model),
        "n1_w": w(ks[6], (d_model, c1)), "n1_b": bias(ks[7], d_model),
    }


def image_encoder_forward(params, sample_nchw, scalp=1, d_model=16, patch0=4, patch1=2):
    """Forward pass matching ImageEncoder.forward semantics.

    sample_nchw: (B, C, H, W) float32. Returns dict with keys:
    vision_features, vision_pos_enc, backbone_fpn (feature maps in NCHW, float32).
    """
    B, _, H, W = sample_nchw.shape
    H0, W0 = H // patch0, W // patch0
    H1, W1 = H0 // patch1, W0 // patch1
    g = patch1 * patch1                                                     # sub-pixel groups

    # ---- trunk: two non-overlapping patch-conv stages (bf16 intermediates)
    X0, _ = _im2col_stage0(sample_nchw, patch0, patch1)                     # (48, g*M1)
    F0 = gemm_bias_t(params["t0_w"], X0, params["t0_b"],
                     tm_target=8192, out_dtype=jnp.bfloat16)                # (c0, g*M1) bf16
    c0 = F0.shape[0]
    M1 = F0.shape[1] // g
    X1 = F0.reshape(c0 * g, M1)                                             # zero-cost stage-1 im2col
    F1 = gemm_bias_t(params["t1_w"], X1, params["t1_b"],
                     tm_target=8192, out_dtype=jnp.bfloat16)                # (c1, M1) bf16

    # ---- neck: lateral 1x1 convs + top-down nearest-2x fusion
    # Lowest-res lateral: with scalp>=1 it is only ever consumed as the residual -> bf16.
    l1_dtype = jnp.bfloat16 if scalp >= 1 else jnp.float32
    L1 = gemm_bias_t(params["n1_w"], F1, params["n1_b"],
                     tm_target=16384, out_dtype=l1_dtype)                   # (d, M1)
    # Level-0 lateral + fused nearest-2x upsample-add (residual BlockSpec index trick).
    L0 = gemm_bias_t(params["n0_w"], F0, params["n0_b"],
                     residual_t=L1, residual_groups=g,
                     tm_target=16384, out_dtype=jnp.float32)                # (d, g*M1) f32

    feats_t = [L0, L1]                      # highest res first, lowest res last
    level_hw = [(H0, W0), (H1, W1)]
    n = len(feats_t)
    keep = n - scalp if scalp > 0 else n
    assert keep >= 1

    # ---- ImageEncoder.forward wrapper semantics: scalped levels are dropped from the
    # output, so their NCHW transpose / positional encoding is skipped entirely.
    features, pos = [], []
    for lvl in range(keep):
        d = feats_t[lvl].shape[0]
        Hf, Wf = level_hw[lvl]
        if lvl == 0:
            f = feats_t[0].reshape(d, patch1, patch1, B, H1, W1)
            f = f.transpose(3, 0, 4, 1, 5, 2).reshape(B, d, H0, W0)         # un-scramble -> NCHW
        else:
            f = feats_t[1].reshape(d, B, H1, W1).transpose(1, 0, 2, 3)      # NCHW
        features.append(f.astype(jnp.float32))
        pe = sine_pos_enc(Hf, Wf, num_pos_feats=d_model // 2)               # (d_model, Hf, Wf)
        pos.append(jnp.broadcast_to(pe[None], (B, d_model, Hf, Wf)))
    src = features[-1]
    return {"vision_features": src, "vision_pos_enc": pos, "backbone_fpn": features}


# --------------------------------------------------------------------------- pure-JAX reference

def _ref_vision_features(params, sample, scalp=1, patch0=4, patch1=2):
    """Independent jnp reference (lax.conv / einsum) mirroring the kernel's bf16 storage points."""
    f32 = jnp.float32
    hi = lax.Precision.HIGHEST
    bf = lambda a: a.astype(jnp.bfloat16).astype(f32)

    def patch_conv(x, w_nk, bias, p):
        n, c = w_nk.shape[0], x.shape[1]
        w4 = w_nk.astype(f32).reshape(n, c, p, p)                           # (O, I, kh, kw)
        y = lax.conv_general_dilated(x, w4, (p, p), "VALID",
                                     dimension_numbers=("NCHW", "OIHW", "NCHW"), precision=hi)
        return y + bias.reshape(1, n, 1, 1)

    def lateral(x, w, bias):
        y = jnp.einsum("nc,bchw->bnhw", w.astype(f32), x, precision=hi)
        return y + bias.reshape(1, -1, 1, 1)

    f0 = bf(patch_conv(bf(sample), params["t0_w"], params["t0_b"], patch0))
    f1 = bf(patch_conv(f0, params["t1_w"], params["t1_b"], patch1))
    l1 = lateral(f1, params["n1_w"], params["n1_b"])
    if scalp >= 1:
        l1 = bf(l1)
    up = jnp.repeat(jnp.repeat(l1, 2, axis=2), 2, axis=3)
    return lateral(f0, params["n0_w"], params["n0_b"]) + up


def _ref_pos_enc(H, W, num_pos_feats, temperature=10000.0):
    f32 = jnp.float32
    eps, scale = 1e-6, 2.0 * jnp.pi
    y = jnp.arange(1, H + 1, dtype=f32)
    x = jnp.arange(1, W + 1, dtype=f32)
    ye = (y / (y[-1] + eps) * scale)[:, None] * jnp.ones((1, W), f32)
    xe = jnp.ones((H, 1), f32) * (x / (x[-1] + eps) * scale)[None, :]
    di = jnp.arange(num_pos_feats, dtype=f32)
    dt = temperature ** (2.0 * jnp.floor(di / 2.0) / num_pos_feats)
    ph = jnp.concatenate([ye[None] / dt[:, None, None], xe[None] / dt[:, None, None]], axis=0)
    ch = jnp.arange(2 * num_pos_feats)[:, None, None]
    return jnp.where(ch % 2 == 0, jnp.sin(ph), jnp.cos(ph))                 # (2*npf, H, W)


# --------------------------------------------------------------------------- main

if __name__ == "__main__":
    key = jax.random.PRNGKey(0)
    k_param, k_data = jax.random.split(key)

    B, C_in, H, W = 2, 3, 64, 64
    sample = jax.random.normal(k_data, (B, C_in, H, W), jnp.float32)        # NCHW image
    params = init_params(k_param, in_chans=C_in)

    fwd = jax.jit(lambda p, s: image_encoder_forward(p, s, scalp=1))
    out = fwd(params, sample)
    out = jax.block_until_ready(out)

    # wrapper-semantics sanity checks
    assert out["vision_features"].shape == (B, 16, H // 4, W // 4)
    assert len(out["backbone_fpn"]) == 1 and len(out["vision_pos_enc"]) == 1
    assert bool(jnp.array_equal(out["backbone_fpn"][-1], out["vision_features"]))
    assert out["vision_pos_enc"][0].shape == out["vision_features"].shape
    assert bool(jnp.isfinite(out["vision_features"]).all())

    # numerical checks against an independent pure-JAX reference
    ref_feat = _ref_vision_features(params, sample)
    assert jnp.allclose(out["vision_features"], ref_feat, atol=1e-3, rtol=1e-3), \
        float(jnp.max(jnp.abs(out["vision_features"] - ref_feat)))
    ref_pe = jnp.broadcast_to(_ref_pos_enc(H // 4, W // 4, 8)[None], (B, 16, H // 4, W // 4))
    assert jnp.allclose(out["vision_pos_enc"][0], ref_pe, atol=1e-4, rtol=1e-4)

    print("KERNEL_OK")
</pallas_src>

<mosaic_0001>
module attributes {stable_mosaic.version = 11 : i64} {
  func.func @_gemm_bias_kernel(%arg0: i32, %arg1: memref<32x48xbf16, #tpu.memory_space<vmem>>, %arg2: memref<48x256xbf16, #tpu.memory_space<vmem>>, %arg3: memref<32x1xf32, #tpu.memory_space<vmem>>, %arg4: memref<32x256xbf16, #tpu.memory_space<vmem>>) attributes {dimension_semantics = [#tpu.dimension_semantics<parallel>], iteration_bounds = array<i64: 2>, scalar_prefetch = 0 : i64, scratch_operands = 0 : i64, tpu.core_type = #tpu.core_type<tc>, window_params = [{pipeline_mode = #tpu.pipeline_mode<synchronous>, transform_indices = @transform_0, window_bounds = array<i64: 32, 48>}, {transform_indices = @transform_1, window_bounds = array<i64: 48, 256>}, {pipeline_mode = #tpu.pipeline_mode<synchronous>, transform_indices = @transform_2, window_bounds = array<i64: 32, 1>}, {transform_indices = @transform_3, window_bounds = array<i64: 32, 256>}]} {
    %c0 = arith.constant 0 : index
    %c0_0 = arith.constant 0 : index
    %0 = vector.load %arg1[%c0, %c0_0] : memref<32x48xbf16, #tpu.memory_space<vmem>>, vector<32x48xbf16>
    %c0_1 = arith.constant 0 : index
    %c0_2 = arith.constant 0 : index
    %1 = vector.load %arg2[%c0_1, %c0_2] : memref<48x256xbf16, #tpu.memory_space<vmem>>, vector<48x256xbf16>
    %cst = arith.constant dense<0.000000e+00> : vector<32x256xf32>
    %2 = tpu.matmul %0, %1, %cst {dimension_numbers = #tpu.dot_dimension_numbers<[1], [0], [0], [1], [0, 0, 1, 1], [], []>} : vector<32x48xbf16>, vector<48x256xbf16>, vector<32x256xf32> -> vector<32x256xf32>
    %c0_3 = arith.constant 0 : index
    %c0_4 = arith.constant 0 : index
    %3 = vector.load %arg3[%c0_3, %c0_4] : memref<32x1xf32, #tpu.memory_space<vmem>>, vector<32x1xf32>
    %4 = vector.broadcast %3 : vector<32x1xf32> to vector<32x256xf32>
    %5 = arith.addf %2, %4 : vector<32x256xf32>
    %6 = arith.truncf %5 : vector<32x256xf32> to vector<32x256xbf16>
    %c0_5 = arith.constant 0 : index
    %c0_6 = arith.constant 0 : index
    %7 = vector.load %arg4[%c0_5, %c0_6] : memref<32x256xbf16, #tpu.memory_space<vmem>>, vector<32x256xbf16>
    tpu.vector_store %arg4[%c0_5, %c0_6], %6 {strides = array<i32>} : memref<32x256xbf16, #tpu.memory_space<vmem>>, vector<32x256xbf16>,
    return
  }
  func.func @transform_0(%arg0: i32) -> (i32, i32) {
    %c0_i32 = arith.constant 0 : i32
    %c0_i32_0 = arith.constant 0 : i32
    %c0_i32_1 = arith.constant 0 : i32
    return %c0_i32, %c0_i32_0 : i32, i32
  }
  func.func @transform_1(%arg0: i32) -> (i32, i32) {
    %c0_i32 = arith.constant 0 : i32
    %c0_i32_0 = arith.constant 0 : i32
    return %c0_i32, %arg0 : i32, i32
  }
  func.func @transform_2(%arg0: i32) -> (i32, i32) {
    %c0_i32 = arith.constant 0 : i32
    %c0_i32_0 = arith.constant 0 : i32
    %c0_i32_1 = arith.constant 0 : i32
    return %c0_i32, %c0_i32_0 : i32, i32
  }
  func.func @transform_3(%arg0: i32) -> (i32, i32) {
    %c0_i32 = arith.constant 0 : i32
    %c0_i32_0 = arith.constant 0 : i32
    return %c0_i32, %arg0 : i32, i32
  }
}

module attributes {stable_mosaic.version = 11 : i64} {
  func.func @_gemm_bias_kernel(%arg0: i32, %arg1: memref<64x128xbf16, #tpu.memory_space<vmem>>, %arg2: memref<128x128xbf16, #tpu.memory_space<vmem>>, %arg3: memref<64x1xf32, #tpu.memory_space<vmem>>, %arg4: memref<64x128xbf16, #tpu.memory_space<vmem>>) attributes {dimension_semantics = [#tpu.dimension_semantics<parallel>], iteration_bounds = array<i64: 1>, scalar_prefetch = 0 : i64, scratch_operands = 0 : i64, tpu.core_type = #tpu.core_type<tc>, window_params = [{pipeline_mode = #tpu.pipeline_mode<synchronous>, transform_indices = @transform_0, window_bounds = array<i64: 64, 128>}, {transform_indices = @transform_1, window_bounds = array<i64: 128, 128>}, {pipeline_mode = #tpu.pipeline_mode<synchronous>, transform_indices = @transform_2, window_bounds = array<i64: 64, 1>}, {transform_indices = @transform_3, window_bounds = array<i64: 64, 128>}]} {
    %c0 = arith.constant 0 : index
    %c0_0 = arith.constant 0 : index
    %0 = vector.load %arg1[%c0, %c0_0] : memref<64x128xbf16, #tpu.memory_space<vmem>>, vector<64x128xbf16>
    %c0_1 = arith.constant 0 : index
    %c0_2 = arith.constant 0 : index
    %1 = vector.load %arg2[%c0_1, %c0_2] : memref<128x128xbf16, #tpu.memory_space<vmem>>, vector<128x128xbf16>
    %cst = arith.constant dense<0.000000e+00> : vector<64x128xf32>
    %2 = tpu.matmul %0, %1, %cst {dimension_numbers = #tpu.dot_dimension_numbers<[1], [0], [0], [1], [0, 0, 1, 1], [], []>} : vector<64x128xbf16>, vector<128x128xbf16>, vector<64x128xf32> -> vector<64x128xf32>
    %c0_3 = arith.constant 0 : index
    %c0_4 = arith.constant 0 : index
    %3 = vector.load %arg3[%c0_3, %c0_4] : memref<64x1xf32, #tpu.memory_space<vmem>>, vector<64x1xf32>
    %4 = vector.broadcast %3 : vector<64x1xf32> to vector<64x128xf32>
    %5 = arith.addf %2, %4 : vector<64x128xf32>
    %6 = arith.truncf %5 : vector<64x128xf32> to vector<64x128xbf16>
    %c0_5 = arith.constant 0 : index
    %c0_6 = arith.constant 0 : index
    %7 = vector.load %arg4[%c0_5, %c0_6] : memref<64x128xbf16, #tpu.memory_space<vmem>>, vector<64x128xbf16>
    tpu.vector_store %arg4[%c0_5, %c0_6], %6 {strides = array<i32>} : memref<64x128xbf16, #tpu.memory_space<vmem>>, vector<64x128xbf16>,
    return
  }
  func.func @transform_0(%arg0: i32) -> (i32, i32) {
    %c0_i32 = arith.constant 0 : i32
    %c0_i32_0 = arith.constant 0 : i32
    %c0_i32_1 = arith.constant 0 : i32
    return %c0_i32, %c0_i32_0 : i32, i32
  }
  func.func @transform_1(%arg0: i32) -> (i32, i32) {
    %c0_i32 = arith.constant 0 : i32
    %c0_i32_0 = arith.constant 0 : i32
    return %c0_i32, %arg0 : i32, i32
  }
  func.func @transform_2(%arg0: i32) -> (i32, i32) {
    %c0_i32 = arith.constant 0 : i32
    %c0_i32_0 = arith.constant 0 : i32
    %c0_i32_1 = arith.constant 0 : i32
    return %c0_i32, %c0_i32_0 : i32, i32
  }
  func.func @transform_3(%arg0: i32) -> (i32, i32) {
    %c0_i32 = arith.constant 0 : i32
    %c0_i32_0 = arith.constant 0 : i32
    return %c0_i32, %arg0 : i32, i32
  }
}

module attributes {stable_mosaic.version = 11 : i64} {
  func.func @_gemm_bias_kernel(%arg0: i32, %arg1: memref<16x64xbf16, #tpu.memory_space<vmem>>, %arg2: memref<64x128xbf16, #tpu.memory_space<vmem>>, %arg3: memref<16x1xf32, #tpu.memory_space<vmem>>, %arg4: memref<16x128xbf16, #tpu.memory_space<vmem>>) attributes {dimension_semantics = [#tpu.dimension_semantics<parallel>], iteration_bounds = array<i64: 1>, scalar_prefetch = 0 : i64, scratch_operands = 0 : i64, tpu.core_type = #tpu.core_type<tc>, window_params = [{pipeline_mode = #tpu.pipeline_mode<synchronous>, transform_indices = @transform_0, window_bounds = array<i64: 16, 64>}, {transform_indices = @transform_1, window_bounds = array<i64: 64, 128>}, {pipeline_mode = #tpu.pipeline_mode<synchronous>, transform_indices = @transform_2, window_bounds = array<i64: 16, 1>}, {transform_indices = @transform_3, window_bounds = array<i64: 16, 128>}]} {
    %c0 = arith.constant 0 : index
    %c0_0 = arith.constant 0 : index
    %0 = vector.load %arg1[%c0, %c0_0] : memref<16x64xbf16, #tpu.memory_space<vmem>>, vector<16x64xbf16>
    %c0_1 = arith.constant 0 : index
    %c0_2 = arith.constant 0 : index
    %1 = vector.load %arg2[%c0_1, %c0_2] : memref<64x128xbf16, #tpu.memory_space<vmem>>, vector<64x128xbf16>
    %cst = arith.constant dense<0.000000e+00> : vector<16x128xf32>
    %2 = tpu.matmul %0, %1, %cst {dimension_numbers = #tpu.dot_dimension_numbers<[1], [0], [0], [1], [0, 0, 1, 1], [], []>} : vector<16x64xbf16>, vector<64x128xbf16>, vector<16x128xf32> -> vector<16x128xf32>
    %c0_3 = arith.constant 0 : index
    %c0_4 = arith.constant 0 : index
    %3 = vector.load %arg3[%c0_3, %c0_4] : memref<16x1xf32, #tpu.memory_space<vmem>>, vector<16x1xf32>
    %4 = vector.broadcast %3 : vector<16x1xf32> to vector<16x128xf32>
    %5 = arith.addf %2, %4 : vector<16x128xf32>
    %6 = arith.truncf %5 : vector<16x128xf32> to vector<16x128xbf16>
    %c0_5 = arith.constant 0 : index
    %c0_6 = arith.constant 0 : index
    %7 = vector.load %arg4[%c0_5, %c0_6] : memref<16x128xbf16, #tpu.memory_space<vmem>>, vector<16x128xbf16>
    tpu.vector_store %arg4[%c0_5, %c0_6], %6 {strides = array<i32>} : memref<16x128xbf16, #tpu.memory_space<vmem>>, vector<16x128xbf16>,
    return
  }
  func.func @transform_0(%arg0: i32) -> (i32, i32) {
    %c0_i32 = arith.constant 0 : i32
    %c0_i32_0 = arith.constant 0 : i32
    %c0_i32_1 = arith.constant 0 : i32
    return %c0_i32, %c0_i32_0 : i32, i32
  }
  func.func @transform_1(%arg0: i32) -> (i32, i32) {
    %c0_i32 = arith.constant 0 : i32
    %c0_i32_0 = arith.constant 0 : i32
    return %c0_i32, %arg0 : i32, i32
  }
  func.func @transform_2(%arg0: i32) -> (i32, i32) {
    %c0_i32 = arith.constant 0 : i32
    %c0_i32_0 = arith.constant 0 : i32
    %c0_i32_1 = arith.constant 0 : i32
    return %c0_i32, %c0_i32_0 : i32, i32
  }
  func.func @transform_3(%arg0: i32) -> (i32, i32) {
    %c0_i32 = arith.constant 0 : i32
    %c0_i32_0 = arith.constant 0 : i32
    return %c0_i32, %arg0 : i32, i32
  }
}

module attributes {stable_mosaic.version = 11 : i64} {
  func.func @_gemm_bias_res_kernel(%arg0: i32, %arg1: memref<16x32xbf16, #tpu.memory_space<vmem>>, %arg2: memref<32x128xbf16, #tpu.memory_space<vmem>>, %arg3: memref<16x1xf32, #tpu.memory_space<vmem>>, %arg4: memref<16x128xbf16, #tpu.memory_space<vmem>>, %arg5: memref<16x128xf32, #tpu.memory_space<vmem>>) attributes {dimension_semantics = [#tpu.dimension_semantics<parallel>], iteration_bounds = array<i64: 4>, scalar_prefetch = 0 : i64, scratch_operands = 0 : i64, tpu.core_type = #tpu.core_type<tc>, window_params = [{pipeline_mode = #tpu.pipeline_mode<synchronous>, transform_indices = @transform_0, window_bounds = array<i64: 16, 32>}, {transform_indices = @transform_1, window_bounds = array<i64: 32, 128>}, {pipeline_mode = #tpu.pipeline_mode<synchronous>, transform_indices = @transform_2, window_bounds = array<i64: 16, 1>}, {transform_indices = @transform_3, window_bounds = array<i64: 16, 128>}, {transform_indices = @transform_4, window_bounds = array<i64: 16, 128>}]} {
    %c0 = arith.constant 0 : index
    %c0_0 = arith.constant 0 : index
    %0 = vector.load %arg1[%c0, %c0_0] : memref<16x32xbf16, #tpu.memory_space<vmem>>, vector<16x32xbf16>
    %c0_1 = arith.constant 0 : index
    %c0_2 = arith.constant 0 : index
    %1 = vector.load %arg2[%c0_1, %c0_2] : memref<32x128xbf16, #tpu.memory_space<vmem>>, vector<32x128xbf16>
    %cst = arith.constant dense<0.000000e+00> : vector<16x128xf32>
    %2 = tpu.matmul %0, %1, %cst {dimension_numbers = #tpu.dot_dimension_numbers<[1], [0], [0], [1], [0, 0, 1, 1], [], []>} : vector<16x32xbf16>, vector<32x128xbf16>, vector<16x128xf32> -> vector<16x128xf32>
    %c0_3 = arith.constant 0 : index
    %c0_4 = arith.constant 0 : index
    %3 = vector.load %arg3[%c0_3, %c0_4] : memref<16x1xf32, #tpu.memory_space<vmem>>, vector<16x1xf32>
    %4 = vector.broadcast %3 : vector<16x1xf32> to vector<16x128xf32>
    %5 = arith.addf %2, %4 : vector<16x128xf32>
    %c0_5 = arith.constant 0 : index
    %c0_6 = arith.constant 0 : index
    %6 = vector.load %arg4[%c0_5, %c0_6] : memref<16x128xbf16, #tpu.memory_space<vmem>>, vector<16x128xbf16>
    %7 = arith.extf %6 : vector<16x128xbf16> to vector<16x128xf32>
    %8 = arith.addf %5, %7 : vector<16x128xf32>
    %c0_7 = arith.constant 0 : index
    %c0_8 = arith.constant 0 : index
    %9 = vector.load %arg5[%c0_7, %c0_8] : memref<16x128xf32, #tpu.memory_space<vmem>>, vector<16x128xf32>
    tpu.vector_store %arg5[%c0_7, %c0_8], %8 {strides = array<i32>} : memref<16x128xf32, #tpu.memory_space<vmem>>, vector<16x128xf32>,
    return
  }
  func.func @transform_0(%arg0: i32) -> (i32, i32) {
    %c0_i32 = arith.constant 0 : i32
    %c0_i32_0 = arith.constant 0 : i32
    %c0_i32_1 = arith.constant 0 : i32
    return %c0_i32, %c0_i32_0 : i32, i32
  }
  func.func @transform_1(%arg0: i32) -> (i32, i32) {
    %c0_i32 = arith.constant 0 : i32
    %c0_i32_0 = arith.constant 0 : i32
    return %c0_i32, %arg0 : i32, i32
  }
  func.func @transform_2(%arg0: i32) -> (i32, i32) {
    %c0_i32 = arith.constant 0 : i32
    %c0_i32_0 = arith.constant 0 : i32
    %c0_i32_1 = arith.constant 0 : i32
    return %c0_i32, %c0_i32_0 : i32, i32
  }
  func.func @transform_3(%arg0: i32) -> (i32, i32) {
    %c1_i32 = arith.constant 1 : i32
    %c0_i32 = arith.constant 0 : i32
    %0 = arith.cmpi eq, %c1_i32, %c0_i32 : i32
    %c1_i32_0 = arith.constant 1 : i32
    %1 = arith.select %0, %c1_i32_0, %c1_i32 : i32
    %2 = arith.remsi %arg0, %1 : i32
    %c0_i32_1 = arith.constant 0 : i32
    %3 = arith.cmpi ne, %2, %c0_i32_1 : i32
    %c0_i32_2 = arith.constant 0 : i32
    %4 = arith.cmpi slt, %2, %c0_i32_2 : i32
    %c0_i32_3 = arith.constant 0 : i32
    %5 = arith.cmpi slt, %1, %c0_i32_3 : i32
    %6 = arith.xori %4, %5 : i1
    %7 = arith.andi %6, %3 : i1
    %8 = arith.addi %2, %1 : i32
    %9 = arith.select %7, %8, %2 : i32
    %c0_i32_4 = arith.constant 0 : i32
    %c0_i32_5 = arith.constant 0 : i32
    return %c0_i32_4, %9 : i32, i32
  }
  func.func @transform_4(%arg0: i32) -> (i32, i32) {
    %c0_i32 = arith.constant 0 : i32
    %c0_i32_0 = arith.constant 0 : i32
    return %c0_i32, %arg0 : i32, i32
  }
}

module attributes {stable_mosaic.version = 11 : i64} {
  func.func @_sine_pe_kernel(%arg0: i32, %arg1: memref<16x8x1xf32, #tpu.memory_space<vmem>>, %arg2: memref<16x1x16xf32, #tpu.memory_space<vmem>>, %arg3: memref<16x8x16xf32, #tpu.memory_space<vmem>>) attributes {dimension_semantics = [#tpu.dimension_semantics<parallel>], iteration_bounds = array<i64: 2>, scalar_prefetch = 0 : i64, scratch_operands = 0 : i64, tpu.core_type = #tpu.core_type<tc>, window_params = [{transform_indices = @transform_0, window_bounds = array<i64: 16, 8, 1>}, {pipeline_mode = #tpu.pipeline_mode<synchronous>, transform_indices = @transform_1, window_bounds = array<i64: 16, 1, 16>}, {transform_indices = @transform_2, window_bounds = array<i64: 16, 8, 16>}]} {
    %c0 = arith.constant 0 : index
    %c0_0 = arith.constant 0 : index
    %c0_1 = arith.constant 0 : index
    %0 = vector.load %arg1[%c0, %c0_0, %c0_1] : memref<16x8x1xf32, #tpu.memory_space<vmem>>, vector<16x8x1xf32>
    %c0_2 = arith.constant 0 : index
    %c0_3 = arith.constant 0 : index
    %c0_4 = arith.constant 0 : index
    %1 = vector.load %arg2[%c0_2, %c0_3, %c0_4] : memref<16x1x16xf32, #tpu.memory_space<vmem>>, vector<16x1x16xf32>
    %2 = vector.broadcast %0 : vector<16x8x1xf32> to vector<16x8x16xf32>
    %3 = vector.broadcast %1 : vector<16x1x16xf32> to vector<16x8x16xf32>
    %4 = arith.addf %2, %3 : vector<16x8x16xf32>
    %5 = math.sin %4 : vector<16x8x16xf32>
    %c0_5 = arith.constant 0 : index
    %c0_6 = arith.constant 0 : index
    %c0_7 = arith.constant 0 : index
    %6 = vector.load %arg3[%c0_5, %c0_6, %c0_7] : memref<16x8x16xf32, #tpu.memory_space<vmem>>, vector<16x8x16xf32>
    tpu.vector_store %arg3[%c0_5, %c0_6, %c0_7], %5 {strides = array<i32>} : memref<16x8x16xf32, #tpu.memory_space<vmem>>, vector<16x8x16xf32>,
    return
  }
  func.func @transform_0(%arg0: i32) -> (i32, i32, i32) {
    %c0_i32 = arith.constant 0 : i32
    %c0_i32_0 = arith.constant 0 : i32
    %c0_i32_1 = arith.constant 0 : i32
    return %c0_i32, %arg0, %c0_i32_0 : i32, i32, i32
  }
  func.func @transform_1(%arg0: i32) -> (i32, i32, i32) {
    %c0_i32 = arith.constant 0 : i32
    %c0_i32_0 = arith.constant 0 : i32
    %c0_i32_1 = arith.constant 0 : i32
    %c0_i32_2 = arith.constant 0 : i32
    return %c0_i32, %c0_i32_0, %c0_i32_1 : i32, i32, i32
  }
  func.func @transform_2(%arg0: i32) -> (i32, i32, i32) {
    %c0_i32 = arith.constant 0 : i32
    %c0_i32_0 = arith.constant 0 : i32
    %c0_i32_1 = arith.constant 0 : i32
    return %c0_i32, %arg0, %c0_i32_0 : i32, i32, i32
  }
}

</mosaic_0001>

<llo_original>
// kernel: _lambda_.5
$region0: #{_lambda_.5}
  #allocation0 [shape = 'u32[]', space=smem, size = 0x4, offset = 0x4, fixed_abs, tag = 'smem constant byte address 0x4 - core index']
  #allocation1 [shape = 'u32[144,128]{1,0:T(1,128)}', space=vmem, size = 0x12000, scoped, tag = 'internal scratch']
  %s0 = inlined_call_operand.vmem [shape: bf16[32,48], index: 0, kind: input, shape index: {}]
  %s1 = inlined_call_operand.vmem [shape: bf16[48,512], index: 1, kind: input, shape index: {}]
  %s2 = inlined_call_operand.vmem [shape: f32[32,1], index: 2, kind: input, shape index: {}]
  %s3 = inlined_call_operand.vmem [shape: bf16[32,512], index: 3, kind: output, shape index: {}]
  %s4 = sld [smem:[#allocation0]]
  $region117: #{_lambda_.5} parent=0
    _
  %s6 = ssub.s32 1, %s4
  %s7 = scalar_select 0, %s6, %s4
  $region1: #{_lambda_.5} parent=0
    #allocation2 [shape = 'u8[49152]{0}', space=vmem, size = 0xc000, scoped, tag = 'input window, operand 1']
    #allocation3 [shape = 'u8[32768]{0}', space=vmem, size = 0x8000, scoped, tag = 'output window, operand 0']
    loop: start=0, step=1, limit=4
    $region2: #{_lambda_.5} parent=1 // loop_pre_header
      _
    $region3: #{_lambda_.5} parent=1 // loop_header
      %s9 = sphi 0, %s13
      %p10 = scmp.ge.s32.totalorder %s9, 4
      %s17 = sphi 0, %s17
      %s19 = sphi 0, %s17
      %s20 = sphi 0, %s19
      %s34 = sphi 0, %s20
      %s40 = sphi 0, %s42
      %s43 = sphi 0, %s40
      %s44 = sphi 0, %s43
      %s60 = sphi 0, %s44
      %s64 = sphi 0, %s64
      %s66 = sphi 0, %s64
      %s67 = sphi 0, %s66
      %s81 = sphi 0, %s67
      %s87 = sphi 0, %s89
      %s90 = sphi 0, %s87
      %s91 = sphi 0, %s90
      %s107 = sphi 0, %s91
    $region4: #{_lambda_.5} parent=1 // loop_header_branch
      %12 = sbr.rel (%p10) target = $region8
    $region5: #{_lambda_.5} parent=1 // loop_body
      %s14 = ssub.s32 %s9, 1
      %s15 = ssub.s32 %s9, 2
      %s16 = sadd.s32 %s9, 1
      %s18 = sadd.s32 %s17, 1
      %p21 = scmp.eq.s32.totalorder %s9, 1
      %p22 = scmp.ne.s32.totalorder %s17, %s19
      %p23 = scmp.eq.s32.totalorder %s9, 0
      %p24 = por %p22, %p23
      %p25 = scmp.ne.s32.totalorder %s17, %s19
      %p26 = scmp.eq.s32.totalorder %s14, 1
      %p27 = por %p25, %p26
      %p28 = scmp.ne.s32.totalorder %s19, %s20
      %p29 = scmp.eq.s32.totalorder %s14, 0
      %p30 = por %p28, %p29
      %p31 = scmp.ne.s32.totalorder %s19, %s20
      %p32 = scmp.eq.s32.totalorder %s15, 1
      %p33 = por %p31, %p32
      %p35 = scmp.ne.s32.totalorder %s20, %s34
      %p36 = scmp.eq.s32.totalorder %s15, 0
      %p37 = por %p35, %p36
      %s38 = ssub.s32 %s9, %s16
      %p39 = scmp.eq.s32.totalorder %s38, 0
      %s41 = sadd.s32 %s40, 1
      %s42 = scalar_select %p39, %s40, %s41
      %p45 = pneg %p39
      %p46 = scmp.eq.s32.totalorder %s9, 1
      %p47 = por %p45, %p46
      %p48 = scmp.ne.s32.totalorder %s40, %s43
      %p49 = scmp.eq.s32.totalorder %s9, 0
      %p50 = por %p48, %p49
      %p51 = scmp.ne.s32.totalorder %s40, %s43
      %p52 = scmp.eq.s32.totalorder %s14, 1
      %p53 = por %p51, %p52
      %p54 = scmp.ne.s32.totalorder %s43, %s44
      %p55 = scmp.eq.s32.totalorder %s14, 0
      %p56 = por %p54, %p55
      %p57 = scmp.ne.s32.totalorder %s43, %s44
      %p58 = scmp.eq.s32.totalorder %s15, 1
      %p59 = por %p57, %p58
      %p61 = scmp.ne.s32.totalorder %s44, %s60
      %p62 = scmp.eq.s32.totalorder %s15, 0
      %p63 = por %p61, %p62
      %s65 = sadd.s32 %s64, 1
      %p68 = scmp.eq.s32.totalorder %s9, 1
      %p69 = scmp.ne.s32.totalorder %s64, %s66
      %p70 = scmp.eq.s32.totalorder %s9, 0
      %p71 = por %p69, %p70
      %p72 = scmp.ne.s32.totalorder %s64, %s66
      %p73 = scmp.eq.s32.totalorder %s14, 1
      %p74 = por %p72, %p73
      %p75 = scmp.ne.s32.totalorder %s66, %s67
      %p76 = scmp.eq.s32.totalorder %s14, 0
      %p77 = por %p75, %p76
      %p78 = scmp.ne.s32.totalorder %s66, %s67
      %p79 = scmp.eq.s32.totalorder %s15, 1
      %p80 = por %p78, %p79
      %p82 = scmp.ne.s32.totalorder %s67, %s81
      %p83 = scmp.eq.s32.totalorder %s15, 0
      %p84 = por %p82, %p83
      %s85 = ssub.s32 %s9, %s16
      %p86 = scmp.eq.s32.totalorder %s85, 0
      %s88 = sadd.s32 %s87, 1
      %s89 = scalar_select %p86, %s87, %s88
      %p92 = pneg %p86
      %p93 = scmp.eq.s32.totalorder %s9, 1
      %p94 = por %p92, %p93
      %p95 = scmp.ne.s32.totalorder %s87, %s90
      %p96 = scmp.eq.s32.totalorder %s9, 0
      %p97 = por %p95, %p96
      %p98 = scmp.ne.s32.totalorder %s87, %s90
      %p99 = scmp.eq.s32.totalorder %s14, 1
      %p100 = por %p98, %p99
      %p101 = scmp.ne.s32.totalorder %s90, %s91
      %p102 = scmp.eq.s32.totalorder %s14, 0
      %p103 = por %p101, %p102
      %p104 = scmp.ne.s32.totalorder %s90, %s91
      %p105 = scmp.eq.s32.totalorder %s15, 1
      %p106 = por %p104, %p105
      %p108 = scmp.ne.s32.totalorder %s91, %s107
      %p109 = scmp.eq.s32.totalorder %s15, 0
      %p110 = por %p108, %p109
      %p111 = scmp.le.s32.totalorder 1, %s9
      %p112 = scmp.lt.s32.totalorder %s9, 3
      %p113 = pnand %p111, %p112
      %p114 = pneg %p113
      // Predicated region
      $region9: #{_lambda_.5} parent=5 // pred_check
        _
      $region10: #{_lambda_.5} parent=5 // pred_check_branch
        %116 = sbr.rel (%p113) target = $region12
      $region11: #{_lambda_.5} parent=5 // pred_region
        %s117 = ssub.s32 %s9, 1
        // Predicated region
        $region13: #{_lambda_.5} parent=11 // pred_check
          %p118 = pneg %p30
        $region14: #{_lambda_.5} parent=11 // pred_check_branch
          %120 = sbr.rel (%p118) target = $region16
        $region15: #{_lambda_.5} parent=11 // pred_region
          _
        $region16: #{_lambda_.5} parent=11 // pred_fallthru
          _
        // Predicated region
        $region17: #{_lambda_.5} parent=11 // pred_check
          %p121 = pneg %p77
        $region18: #{_lambda_.5} parent=11 // pred_check_branch
          %123 = sbr.rel (%p121) target = $region20
        $region19: #{_lambda_.5} parent=11 // pred_region
          _
        $region20: #{_lambda_.5} parent=11 // pred_fallthru
          _
      $region12: #{_lambda_.5} parent=5 // pred_fallthru
        _
      %p124 = scmp.lt.s32.totalorder %s9, 2
      // Predicated region
      $region21: #{_lambda_.5} parent=5 // pred_check
        %p125 = pneg %p124
      $region22: #{_lambda_.5} parent=5 // pred_check_branch
        %127 = sbr.rel (%p125) target = $region24
      $region23: #{_lambda_.5} parent=5 // pred_region
        // Predicated region
        $region25: #{_lambda_.5} parent=23 // pred_check
          %p128 = pneg %p50
        $region26: #{_lambda_.5} parent=23 // pred_check_branch
          %130 = sbr.rel (%p128) target = $region28
        $region27: #{_lambda_.5} parent=23 // pred_region
          %s131 = sand.u32 %s40, 1
          %s132 = sand.u32 %s40, 1
          %s133 = smul.addr %s132, 48
          %s134 = scalar_lea.vmem [#allocation2], %s133
          %s135 = smul.u32 2, %s9
          %s136 = smul.addr %s135, 4
          %s137 = scalar_lea.vmem %s1, %s136
          // Predicated region
          $region29: #{_lambda_.5} parent=27 // pred_check
            _
          $region30: #{_lambda_.5} parent=27 // pred_check_branch
            %139 = sbr.rel (0) target = $region32
          $region31: #{_lambda_.5} parent=27 // pred_region
            // Predicated region
            $region33: #{_lambda_.5} parent=31 // pred_check
              _
            $region34: #{_lambda_.5} parent=31 // pred_check_branch
              %141 = sbr.rel (0) target = $region36
            $region35: #{_lambda_.5} parent=31 // pred_region
              // Predicated region
              $region48: #{_lambda_.5} parent=35 // pred_check
                _
              $region49: #{_lambda_.5} parent=35 // pred_check_branch
                %166 = sbr.rel (0) target = $region51
              $region50: #{_lambda_.5} parent=35 // pred_region
                loop: start=0, step=1, limit=1
                $region52: #{_lambda_.5} parent=50 // loop_pre_header
                  _
                $region53: #{_lambda_.5} parent=50 // loop_header
                  %s168 = sphi 0, %s172
                  %p169 = scmp.ge.s32.totalorder %s168, 1
                  %s173 = sphi %s137, %s137
                  %s174 = sphi %s134, %s134
                $region54: #{_lambda_.5} parent=50 // loop_header_branch
                  %171 = sbr.rel (%p169) target = $region58
                $region55: #{_lambda_.5} parent=50 // loop_body
                  %v175 = vld [vmem:[%s173] sm:$0xff]
                  %176 = vst [vmem:[%s174] sm:$0xff] %v175
                  %v177 = vld [vmem:[%s173 + $0x10] sm:$0xff]
                  %178 = vst [vmem:[%s174 + $0x8] sm:$0xff] %v177
                  %v179 = vld [vmem:[%s173 + $0x20] sm:$0xff]
                  %180 = vst [vmem:[%s174 + $0x10] sm:$0xff] %v179
                  %v181 = vld [vmem:[%s173 + $0x30] sm:$0xff]
                  %182 = vst [vmem:[%s174 + $0x18] sm:$0xff] %v181
                  %v183 = vld [vmem:[%s173 + $0x40] sm:$0xff]
                  %184 = vst [vmem:[%s174 + $0x20] sm:$0xff] %v183
                  %v185 = vld [vmem:[%s173 + $0x50] sm:$0xff]
                  %186 = vst [vmem:[%s174 + $0x28] sm:$0xff] %v185
                $region56: #{_lambda_.5} parent=50 // loop_footer
                  %s172 = sadd.s32 1, %s168
                $region57: #{_lambda_.5} parent=50 // loop_footer_branch
                  %167 = sbr.rel target = $region53
                $region58: #{_lambda_.5} parent=50 // loop_exit
                  _
              $region51: #{_lambda_.5} parent=35 // pred_fallthru
                _
              // Predicated region
              $region59: #{_lambda_.5} parent=35 // pred_check
                _
              $region60: #{_lambda_.5} parent=35 // pred_check_branch
                %188 = sbr.rel target = $region62
              $region61: #{_lambda_.5} parent=35 // pred_region
                _
              $region62: #{_lambda_.5} parent=35 // pred_fallthru
                _
            $region36: #{_lambda_.5} parent=31 // pred_fallthru
              _
            // Predicated region
            $region37: #{_lambda_.5} parent=31 // pred_check
              _
            $region38: #{_lambda_.5} parent=31 // pred_check_branch
              %143 = sbr.rel target = $region40
            $region39: #{_lambda_.5} parent=31 // pred_region
              loop: start=0, step=1, limit=1
              $region41: #{_lambda_.5} parent=39 // loop_pre_header
                _
              $region42: #{_lambda_.5} parent=39 // loop_header
                %s146 = sphi 0, %s150
                %p147 = scmp.ge.s32.totalorder %s146, 1
                %s151 = sphi %s137, %s137
                %s152 = sphi %s134, %s134
              $region43: #{_lambda_.5} parent=39 // loop_header_branch
                %149 = sbr.rel (%p147) target = $region47
              $region44: #{_lambda_.5} parent=39 // loop_body
                %v153 = vld [vmem:[%s151] sm:$0xff]
                %154 = vst [vmem:[%s152] sm:$0xff] %v153
                %v155 = vld [vmem:[%s151 + $0x10] sm:$0xff]
                %156 = vst [vmem:[%s152 + $0x8] sm:$0xff] %v155
                %v157 = vld [vmem:[%s151 + $0x20] sm:$0xff]
                %158 = vst [vmem:[%s152 + $0x10] sm:$0xff] %v157
                %v159 = vld [vmem:[%s151 + $0x30] sm:$0xff]
                %160 = vst [vmem:[%s152 + $0x18] sm:$0xff] %v159
                %v161 = vld [vmem:[%s151 + $0x40] sm:$0xff]
                %162 = vst [vmem:[%s152 + $0x20] sm:$0xff] %v161
                %v163 = vld [vmem:[%s151 + $0x50] sm:$0xff]
                %164 = vst [vmem:[%s152 + $0x28] sm:$0xff] %v163
              $region45: #{_lambda_.5} parent=39 // loop_footer
                %s150 = sadd.s32 1, %s146
              $region46: #{_lambda_.5} parent=39 // loop_footer_branch
                %145 = sbr.rel target = $region42
              $region47: #{_lambda_.5} parent=39 // loop_exit
                _
            $region40: #{_lambda_.5} parent=31 // pred_fallthru
              _
          $region32: #{_lambda_.5} parent=27 // pred_fallthru
            _
          %189 = vnop
        $region28: #{_lambda_.5} parent=23 // pred_fallthru
          _
      $region24: #{_lambda_.5} parent=5 // pred_fallthru
        _
      %p190 = scmp.le.s32.totalorder 1, %s9
      %p191 = scmp.lt.s32.totalorder %s9, 3
      %p192 = pnand %p190, %p191
      %p193 = pneg %p192
      // Predicated region
      $region63: #{_lambda_.5} parent=5 // pred_check
        _
      $region64: #{_lambda_.5} parent=5 // pred_check_branch
        %195 = sbr.rel (%p192) target = $region66
      $region65: #{_lambda_.5} parent=5 // pred_region
        %s196 = ssub.s32 %s9, 1
        %s197 = sand.u32 %s43, 1
        %s198 = sand.u32 %s43, 1
        %s199 = smul.addr %s198, 48
        %s200 = scalar_lea.vmem [#allocation2], %s199
        // Predicated region
        $region67: #{_lambda_.5} parent=65 // pred_check
          %p201 = pneg %p56
        $region68: #{_lambda_.5} parent=65 // pred_check_branch
          %203 = sbr.rel (%p201) target = $region70
        $region69: #{_lambda_.5} parent=65 // pred_region
          _
        $region70: #{_lambda_.5} parent=65 // pred_fallthru
          _
        %p204 = pneg %p30
        %p205 = pneg %p27
        %s206 = sand.u32 %s43, 1
        %s207 = sand.u32 %s43, 1
        %s208 = smul.addr %s207, 48
        %s209 = scalar_lea.vmem [#allocation2], %s208
        %p210 = pneg %p56
        %p211 = pneg %p53
        %p212 = pneg %p77
        %p213 = pneg %p74
        %p214 = pneg %p103
        %p215 = pneg %p100
        %s216 = sand.u32 %s90, 1
        %s217 = sand.u32 %s90, 1
        %s218 = smul.addr %s217, 32
        %s219 = scalar_lea.vmem [#allocation3], %s218
        %s220 = smul.u32 2, %s14
        %s221 = smul.u32 2, %s14
        %v223 = vld [vmem:[%s0] sm:$0xf]
        %v224 = vld [vmem:[%s0 + $0x4] sm:$0xf]
        %v225 = vld [vmem:[%s0 + $0x8] sm:$0xf]
        %v226 = vld [vmem:[%s0 + $0xc] sm:$0xf]
        %v227 = vld [vmem:[%s200] sm:$0xff]
        %v228 = vld [vmem:[%s200 + $0x8] sm:$0xff]
        %v229 = vld [vmem:[%s200 + $0x10] sm:$0xff]
        %v230 = vld [vmem:[%s200 + $0x18] sm:$0xff]
        %v231 = vld [vmem:[%s200 + $0x20] sm:$0xff]
        %v232 = vld [vmem:[%s200 + $0x28] sm:$0xff]
        %v233 = vld [vmem:[%s2] sm:$0xff]
        %v234 = vld [vmem:[%s2 + $0x8] sm:$0xff]
        %v235 = vld [vmem:[%s2 + $0x10] sm:$0xff]
        %v236 = vld [vmem:[%s2 + $0x18] sm:$0xff]
        %238 = vset.pattern.permute.xlu0 0
        %239 = vperm.xlu0 %238, %v233
        %v240 = vpop.permute.xlu0 %239
        %243 = vset.pattern.permute.xlu0 0
        %244 = vperm.xlu0 %243, %v234
        %v245 = vpop.permute.xlu0 %244
        %248 = vset.pattern.permute.xlu0 0
        %249 = vperm.xlu0 %248, %v235
        %v250 = vpop.permute.xlu0 %249
        %253 = vset.pattern.permute.xlu0 0
        %254 = vperm.xlu0 %253, %v236
        %v255 = vpop.permute.xlu0 %254
        %v261 = vunpack.c.l.b16 %v223
        %v262 = vunpack.c.l.b16 %v224
        %v263 = vunpack.c.l.b16 %v225
        %v264 = vunpack.c.l.b16 %v226
        %v265 = vpack.c.b16 %v262, %v261
        %v266 = vpack.c.b16 %v264, %v263
        %v273 = vunpack.c.l.b16 %v227
        %v274 = vunpack.c.h.b16 %v227
        %v275 = vunpack.c.l.b16 %v228
        %v276 = vunpack.c.h.b16 %v228
        %v277 = vunpack.c.l.b16 %v229
        %v278 = vunpack.c.h.b16 %v229
        %v279 = vunpack.c.l.b16 %v230
        %v280 = vunpack.c.h.b16 %v230
        %v281 = vunpack.c.l.b16 %v231
        %v282 = vunpack.c.h.b16 %v231
        %v283 = vunpack.c.l.b16 %v232
        %v284 = vunpack.c.h.b16 %v232
        %v285 = vpack.c.b16 %v275, %v273
        %v286 = vpack.c.b16 %v276, %v274
        %v287 = vpack.c.b16 %v279, %v277
        %v288 = vpack.c.b16 %v280, %v278
        %v289 = vpack.c.b16 %v283, %v281
        %v290 = vpack.c.b16 %v284, %v282
        %vm297 = vcmask 392192
        %v299 = vsel %vm297, %v265, 0
        %v302 = vsel %vm297, %v266, 0
        %304 = vmatprep.subr.bf16.mxu0 %v286
        %305 = vmatpush1.bf16.msra.mxu0 %v285
        %306 = vmatprep.subr.bf16.mxu0 %v288
        %307 = vmatpush1.bf16.msra.mxu0 %v287
        %308 = vmatprep.subr.bf16.mxu0 %v290
        %309 = vmatpush1.bf16.msra.mxu0 %v289
        %310 = vmatprep.subr.bf16.mxu0 0
        %311 = vmatpush1.bf16.msra.mxu0 0
        %312 = vmatprep.subr.bf16.mxu0 0
        %313 = vmatpush1.bf16.msra.mxu0 0
        %314 = vmatprep.subr.bf16.mxu0 0
        %315 = vmatpush1.bf16.msra.mxu0 0
        %316 = vmatprep.subr.bf16.mxu0 0
        %317 = vmatpush1.bf16.msra.mxu0 0
        %318 = vmatprep.subr.bf16.mxu0 0
        %319 = vmatpush1.bf16.msra.mxu0 0
        %320 = vmatprep.subr.bf16.mxu0 0
        %321 = vmatpush1.bf16.msra.mxu0 0
        %322 = vmatprep.subr.bf16.mxu0 0
        %323 = vmatpush1.bf16.msra.mxu0 0
        %324 = vmatprep.subr.bf16.mxu0 0
        %325 = vmatpush1.bf16.msra.mxu0 0
        %326 = vmatprep.subr.bf16.mxu0 0
        %327 = vmatpush1.bf16.msra.mxu0 0
        %328 = vmatprep.subr.bf16.mxu0 0
        %329 = vmatpush1.bf16.msra.mxu0 0
        %330 = vmatprep.subr.bf16.mxu0 0
        %331 = vmatpush1.bf16.msra.mxu0 0
        %332 = vmatprep.subr.bf16.mxu0 0
        %333 = vmatpush1.bf16.msra.mxu0 0
        %334 = vmatprep.subr.bf16.mxu0 0
        %335 = vmatpush1.bf16.msra.mxu0 0
        %336 = vmatprep.mubr.bf16.mxu0 0
        %337 = vmatmul.mubr.bf16.gmra.mrb[0].mxu0 %v299
        %v338 = vpop.f32.mrb[0].mxu0
        %v339 = vadd.f32 %v240, %v338
        %v340 = vpop.f32.mrb[0].mxu0
        %v341 = vadd.f32 %v240, %v340
        %v342 = vpop.f32.mrb[0].mxu0
        %v343 = vadd.f32 %v245, %v342
        %v344 = vpop.f32.mrb[0].mxu0
        %v345 = vadd.f32 %v245, %v344
        %346 = vmatprep.mubr.bf16.mxu0 0
        %347 = vmatmul.mubr.bf16.gmra.mrb[0].mxu0 %v302
        %v348 = vpop.f32.mrb[0].mxu0
        %v349 = vadd.f32 %v250, %v348
        %v350 = vpop.f32.mrb[0].mxu0
        %v351 = vadd.f32 %v250, %v350
        %v352 = vpop.f32.mrb[0].mxu0
        %v353 = vadd.f32 %v255, %v352
        %v354 = vpop.f32.mrb[0].mxu0
        %v355 = vadd.f32 %v255, %v354
        %356 = vdwg.mxu0
        %v357 = vpack.c.bf16 %v343, %v339
        %v358 = vpack.c.bf16 %v345, %v341
        %v359 = vpack.c.bf16 %v353, %v349
        %v360 = vpack.c.bf16 %v355, %v351
        %v365 = vunpack.c.l.b16 %v357
        %v366 = vunpack.c.l.b16 %v358
        %v367 = vunpack.c.h.b16 %v357
        %v368 = vunpack.c.h.b16 %v358
        %v369 = vunpack.c.l.b16 %v359
        %v370 = vunpack.c.l.b16 %v360
        %v371 = vunpack.c.h.b16 %v359
        %v372 = vunpack.c.h.b16 %v360
        %v373 = vpack.c.b16 %v366, %v365
        %v374 = vpack.c.b16 %v368, %v367
        %v375 = vpack.c.b16 %v370, %v369
        %v376 = vpack.c.b16 %v372, %v371
        %381 = vst [vmem:[%s219] sm:$0xff] %v373
        %382 = vst [vmem:[%s219 + $0x8] sm:$0xff] %v374
        %383 = vst [vmem:[%s219 + $0x10] sm:$0xff] %v375
        %384 = vst [vmem:[%s219 + $0x18] sm:$0xff] %v376
        %s385 = sand.u32 %s90, 1
        %s386 = sand.u32 %s90, 1
        %s387 = smul.addr %s386, 32
        %s388 = scalar_lea.vmem [#allocation3], %s387
        // Predicated region
        $region71: #{_lambda_.5} parent=65 // pred_check
          %p389 = pneg %p100
        $region72: #{_lambda_.5} parent=65 // pred_check_branch
          %391 = sbr.rel (%p389) target = $region74
        $region73: #{_lambda_.5} parent=65 // pred_region
          %s392 = smul.u32 2, %s14
          %s393 = smul.addr %s392, 4
          %s394 = scalar_lea.vmem %s3, %s393
          // Predicated region
          $region75: #{_lambda_.5} parent=73 // pred_check
            _
          $region76: #{_lambda_.5} parent=73 // pred_check_branch
            %396 = sbr.rel (0) target = $region78
          $region77: #{_lambda_.5} parent=73 // pred_region
            // Predicated region
            $region79: #{_lambda_.5} parent=77 // pred_check
              _
            $region80: #{_lambda_.5} parent=77 // pred_check_branch
              %398 = sbr.rel (0) target = $region82
            $region81: #{_lambda_.5} parent=77 // pred_region
              // Predicated region
              $region94: #{_lambda_.5} parent=81 // pred_check
                _
              $region95: #{_lambda_.5} parent=81 // pred_check_branch
                %419 = sbr.rel (0) target = $region97
              $region96: #{_lambda_.5} parent=81 // pred_region
                loop: start=0, step=1, limit=1
                $region98: #{_lambda_.5} parent=96 // loop_pre_header
                  _
                $region99: #{_lambda_.5} parent=96 // loop_header
                  %s421 = sphi 0, %s425
                  %p422 = scmp.ge.s32.totalorder %s421, 1
                  %s426 = sphi %s388, %s388
                  %s427 = sphi %s394, %s394
                $region100: #{_lambda_.5} parent=96 // loop_header_branch
                  %424 = sbr.rel (%p422) target = $region104
                $region101: #{_lambda_.5} parent=96 // loop_body
                  %v428 = vld [vmem:[%s426] sm:$0xff]
                  %429 = vst [vmem:[%s427] sm:$0xff] %v428
                  %v430 = vld [vmem:[%s426 + $0x8] sm:$0xff]
                  %431 = vst [vmem:[%s427 + $0x10] sm:$0xff] %v430
                  %v432 = vld [vmem:[%s426 + $0x10] sm:$0xff]
                  %433 = vst [vmem:[%s427 + $0x20] sm:$0xff] %v432
                  %v434 = vld [vmem:[%s426 + $0x18] sm:$0xff]
                  %435 = vst [vmem:[%s427 + $0x30] sm:$0xff] %v434
                $region102: #{_lambda_.5} parent=96 // loop_footer
                  %s425 = sadd.s32 1, %s421
                $region103: #{_lambda_.5} parent=96 // loop_footer_branch
                  %420 = sbr.rel target = $region99
                $region104: #{_lambda_.5} parent=96 // loop_exit
                  _
              $region97: #{_lambda_.5} parent=81 // pred_fallthru
                _
              // Predicated region
              $region105: #{_lambda_.5} parent=81 // pred_check
                _
              $region106: #{_lambda_.5} parent=81 // pred_check_branch
                %437 = sbr.rel target = $region108
              $region107: #{_lambda_.5} parent=81 // pred_region
                _
              $region108: #{_lambda_.5} parent=81 // pred_fallthru
                _
            $region82: #{_lambda_.5} parent=77 // pred_fallthru
              _
            // Predicated region
            $region83: #{_lambda_.5} parent=77 // pred_check
              _
            $region84: #{_lambda_.5} parent=77 // pred_check_branch
              %400 = sbr.rel target = $region86
            $region85: #{_lambda_.5} parent=77 // pred_region
              loop: start=0, step=1, limit=1
              $region87: #{_lambda_.5} parent=85 // loop_pre_header
                _
              $region88: #{_lambda_.5} parent=85 // loop_header
                %s403 = sphi 0, %s407
                %p404 = scmp.ge.s32.totalorder %s403, 1
                %s408 = sphi %s388, %s388
                %s409 = sphi %s394, %s394
              $region89: #{_lambda_.5} parent=85 // loop_header_branch
                %406 = sbr.rel (%p404) target = $region93
              $region90: #{_lambda_.5} parent=85 // loop_body
                %v410 = vld [vmem:[%s408] sm:$0xff]
                %411 = vst [vmem:[%s409] sm:$0xff] %v410
                %v412 = vld [vmem:[%s408 + $0x8] sm:$0xff]
                %413 = vst [vmem:[%s409 + $0x10] sm:$0xff] %v412
                %v414 = vld [vmem:[%s408 + $0x10] sm:$0xff]
                %415 = vst [vmem:[%s409 + $0x20] sm:$0xff] %v414
                %v416 = vld [vmem:[%s408 + $0x18] sm:$0xff]
                %417 = vst [vmem:[%s409 + $0x30] sm:$0xff] %v416
              $region91: #{_lambda_.5} parent=85 // loop_footer
                %s407 = sadd.s32 1, %s403
              $region92: #{_lambda_.5} parent=85 // loop_footer_branch
                %402 = sbr.rel target = $region88
              $region93: #{_lambda_.5} parent=85 // loop_exit
                _
            $region86: #{_lambda_.5} parent=77 // pred_fallthru
              _
          $region78: #{_lambda_.5} parent=73 // pred_fallthru
            _
          %438 = vnop
        $region74: #{_lambda_.5} parent=65 // pred_fallthru
          _
      $region66: #{_lambda_.5} parent=5 // pred_fallthru
        _
      %p439 = scmp.le.s32.totalorder 2, %s9
      // Predicated region
      $region109: #{_lambda_.5} parent=5 // pred_check
        %p440 = pneg %p439
      $region110: #{_lambda_.5} parent=5 // pred_check_branch
        %442 = sbr.rel (%p440) target = $region112
      $region111: #{_lambda_.5} parent=5 // pred_region
        %s443 = ssub.s32 %s9, 2
        // Predicated region
        $region113: #{_lambda_.5} parent=111 // pred_check
          %p444 = pneg %p106
        $region114: #{_lambda_.5} parent=111 // pred_check_branch
          %446 = sbr.rel (%p444) target = $region116
        $region115: #{_lambda_.5} parent=111 // pred_region
          %s447 = sand.u32 %s91, 1
          %s448 = sand.u32 %s91, 1
          %s449 = smul.addr %s448, 32
          %s450 = scalar_lea.vmem [#allocation3], %s449
        $region116: #{_lambda_.5} parent=111 // pred_fallthru
          _
      $region112: #{_lambda_.5} parent=5 // pred_fallthru
        _
    $region6: #{_lambda_.5} parent=1 // loop_footer
      %s13 = sadd.s32 1, %s9
    $region7: #{_lambda_.5} parent=1 // loop_footer_branch
      %8 = sbr.rel target = $region3
    $region8: #{_lambda_.5} parent=1 // loop_exit
      _

// kernel: _lambda_.6
$region0: #{_lambda_.6}
  #allocation0 [shape = 'u32[]', space=smem, size = 0x4, offset = 0x4, fixed_abs, tag = 'smem constant byte address 0x4 - core index']
  #allocation1 [shape = 'u32[144,128]{1,0:T(1,128)}', space=vmem, size = 0x12000, scoped, tag = 'internal scratch']
  %s0 = inlined_call_operand.vmem [shape: bf16[64,128], index: 0, kind: input, shape index: {}]
  %s1 = inlined_call_operand.vmem [shape: bf16[128,128], index: 1, kind: input, shape index: {}]
  %s2 = inlined_call_operand.vmem [shape: f32[64,1], index: 2, kind: input, shape index: {}]
  %s3 = inlined_call_operand.vmem [shape: bf16[64,128], index: 3, kind: output, shape index: {}]
  %s4 = sld [smem:[#allocation0]]
  $region22: #{_lambda_.6} parent=0
    _
  %s6 = ssub.s32 1, %s4
  %s7 = scalar_select 0, %s6, %s4
  // Predicated region
  $region2: #{_lambda_.6} parent=0 // pred_check
    _
  $region3: #{_lambda_.6} parent=0 // pred_check_branch
    %9 = sbr.rel (0) target = $region5
  $region4: #{_lambda_.6} parent=0 // pred_region
    _
  $region5: #{_lambda_.6} parent=0 // pred_fallthru
    _
  // Predicated region
  $region6: #{_lambda_.6} parent=0 // pred_check
    _
  $region7: #{_lambda_.6} parent=0 // pred_check_branch
    %11 = sbr.rel (0) target = $region9
  $region8: #{_lambda_.6} parent=0 // pred_region
    _
  $region9: #{_lambda_.6} parent=0 // pred_fallthru
    _
  // Predicated region
  $region10: #{_lambda_.6} parent=0 // pred_check
    _
  $region11: #{_lambda_.6} parent=0 // pred_check_branch
    %13 = sbr.rel (0) target = $region13
  $region12: #{_lambda_.6} parent=0 // pred_region
    _
  $region13: #{_lambda_.6} parent=0 // pred_fallthru
    _
  %v15 = vld [vmem:[%s0] sm:$0xf]
  %v16 = vld [vmem:[%s0 + $0x4] sm:$0xf]
  %v17 = vld [vmem:[%s0 + $0x8] sm:$0xf]
  %v18 = vld [vmem:[%s0 + $0xc] sm:$0xf]
  %v19 = vld [vmem:[%s0 + $0x10] sm:$0xf]
  %v20 = vld [vmem:[%s0 + $0x14] sm:$0xf]
  %v21 = vld [vmem:[%s0 + $0x18] sm:$0xf]
  %v22 = vld [vmem:[%s0 + $0x1c] sm:$0xf]
  %v23 = vld [vmem:[%s1] sm:$0xf]
  %v24 = vld [vmem:[%s1 + $0x4] sm:$0xf]
  %v25 = vld [vmem:[%s1 + $0x8] sm:$0xf]
  %v26 = vld [vmem:[%s1 + $0xc] sm:$0xf]
  %v27 = vld [vmem:[%s1 + $0x10] sm:$0xf]
  %v28 = vld [vmem:[%s1 + $0x14] sm:$0xf]
  %v29 = vld [vmem:[%s1 + $0x18] sm:$0xf]
  %v30 = vld [vmem:[%s1 + $0x1c] sm:$0xf]
  %v31 = vld [vmem:[%s1 + $0x20] sm:$0xf]
  %v32 = vld [vmem:[%s1 + $0x24] sm:$0xf]
  %v33 = vld [vmem:[%s1 + $0x28] sm:$0xf]
  %v34 = vld [vmem:[%s1 + $0x2c] sm:$0xf]
  %v35 = vld [vmem:[%s1 + $0x30] sm:$0xf]
  %v36 = vld [vmem:[%s1 + $0x34] sm:$0xf]
  %v37 = vld [vmem:[%s1 + $0x38] sm:$0xf]
  %v38 = vld [vmem:[%s1 + $0x3c] sm:$0xf]
  %v39 = vld [vmem:[%s2] sm:$0xff]
  %v40 = vld [vmem:[%s2 + $0x8] sm:$0xff]
  %v41 = vld [vmem:[%s2 + $0x10] sm:$0xff]
  %v42 = vld [vmem:[%s2 + $0x18] sm:$0xff]
  %v43 = vld [vmem:[%s2 + $0x20] sm:$0xff]
  %v44 = vld [vmem:[%s2 + $0x28] sm:$0xff]
  %v45 = vld [vmem:[%s2 + $0x30] sm:$0xff]
  %v46 = vld [vmem:[%s2 + $0x38] sm:$0xff]
  %48 = vset.pattern.permute.xlu0 0
  %49 = vperm.xlu0 %48, %v39
  %v50 = vpop.permute.xlu0 %49
  %53 = vset.pattern.permute.xlu0 0
  %54 = vperm.xlu0 %53, %v40
  %v55 = vpop.permute.xlu0 %54
  %58 = vset.pattern.permute.xlu0 0
  %59 = vperm.xlu0 %58, %v41
  %v60 = vpop.permute.xlu0 %59
  %63 = vset.pattern.permute.xlu0 0
  %64 = vperm.xlu0 %63, %v42
  %v65 = vpop.permute.xlu0 %64
  %68 = vset.pattern.permute.xlu0 0
  %69 = vperm.xlu0 %68, %v43
  %v70 = vpop.permute.xlu0 %69
  %73 = vset.pattern.permute.xlu0 0
  %74 = vperm.xlu0 %73, %v44
  %v75 = vpop.permute.xlu0 %74
  %78 = vset.pattern.permute.xlu0 0
  %79 = vperm.xlu0 %78, %v45
  %v80 = vpop.permute.xlu0 %79
  %83 = vset.pattern.permute.xlu0 0
  %84 = vperm.xlu0 %83, %v46
  %v85 = vpop.permute.xlu0 %84
  %v95 = vunpack.c.l.b16 %v15
  %v96 = vunpack.c.l.b16 %v16
  %v97 = vunpack.c.l.b16 %v17
  %v98 = vunpack.c.l.b16 %v18
  %v99 = vunpack.c.l.b16 %v19
  %v100 = vunpack.c.l.b16 %v20
  %v101 = vunpack.c.l.b16 %v21
  %v102 = vunpack.c.l.b16 %v22
  %v103 = vpack.c.b16 %v96, %v95
  %v104 = vpack.c.b16 %v98, %v97
  %v105 = vpack.c.b16 %v100, %v99
  %v106 = vpack.c.b16 %v102, %v101
  %v127 = vunpack.c.l.b16 %v23
  %v128 = vunpack.c.l.b16 %v24
  %v129 = vunpack.c.l.b16 %v25
  %v130 = vunpack.c.l.b16 %v26
  %v131 = vunpack.c.l.b16 %v27
  %v132 = vunpack.c.l.b16 %v28
  %v133 = vunpack.c.l.b16 %v29
  %v134 = vunpack.c.l.b16 %v30
  %v135 = vunpack.c.l.b16 %v31
  %v136 = vunpack.c.l.b16 %v32
  %v137 = vunpack.c.l.b16 %v33
  %v138 = vunpack.c.l.b16 %v34
  %v139 = vunpack.c.l.b16 %v35
  %v140 = vunpack.c.l.b16 %v36
  %v141 = vunpack.c.l.b16 %v37
  %v142 = vunpack.c.l.b16 %v38
  %v143 = vpack.c.b16 %v128, %v127
  %v144 = vpack.c.b16 %v130, %v129
  %v145 = vpack.c.b16 %v132, %v131
  %v146 = vpack.c.b16 %v134, %v133
  %v147 = vpack.c.b16 %v136, %v135
  %v148 = vpack.c.b16 %v138, %v137
  %v149 = vpack.c.b16 %v140, %v139
  %v150 = vpack.c.b16 %v142, %v141
  %159 = vmatprep.subr.bf16.mxu0 0
  %160 = vmatpush1.bf16.msra.mxu0 %v143
  %161 = vmatprep.subr.bf16.mxu0 0
  %162 = vmatpush1.bf16.msra.mxu0 %v144
  %163 = vmatprep.subr.bf16.mxu0 0
  %164 = vmatpush1.bf16.msra.mxu0 %v145
  %165 = vmatprep.subr.bf16.mxu0 0
  %166 = vmatpush1.bf16.msra.mxu0 %v146
  %167 = vmatprep.subr.bf16.mxu0 0
  %168 = vmatpush1.bf16.msra.mxu0 %v147
  %169 = vmatprep.subr.bf16.mxu0 0
  %170 = vmatpush1.bf16.msra.mxu0 %v148
  %171 = vmatprep.subr.bf16.mxu0 0
  %172 = vmatpush1.bf16.msra.mxu0 %v149
  %173 = vmatprep.subr.bf16.mxu0 0
  %174 = vmatpush1.bf16.msra.mxu0 %v150
  %175 = vmatprep.subr.bf16.mxu0 0
  %176 = vmatpush1.bf16.msra.mxu0 0
  %177 = vmatprep.subr.bf16.mxu0 0
  %178 = vmatpush1.bf16.msra.mxu0 0
  %179 = vmatprep.subr.bf16.mxu0 0
  %180 = vmatpush1.bf16.msra.mxu0 0
  %181 = vmatprep.subr.bf16.mxu0 0
  %182 = vmatpush1.bf16.msra.mxu0 0
  %183 = vmatprep.subr.bf16.mxu0 0
  %184 = vmatpush1.bf16.msra.mxu0 0
  %185 = vmatprep.subr.bf16.mxu0 0
  %186 = vmatpush1.bf16.msra.mxu0 0
  %187 = vmatprep.subr.bf16.mxu0 0
  %188 = vmatpush1.bf16.msra.mxu0 0
  %189 = vmatprep.subr.bf16.mxu0 0
  %190 = vmatpush1.bf16.msra.mxu0 0
  %191 = vmatprep.mubr.bf16.mxu0 0
  %192 = vmatmul.mubr.bf16.gmra.mrb[0].mxu0 %v103
  %v193 = vpop.f32.mrb[0].mxu0
  %v194 = vadd.f32 %v50, %v193
  %v195 = vpop.f32.mrb[0].mxu0
  %v196 = vpop.f32.mrb[0].mxu0
  %v197 = vadd.f32 %v55, %v196
  %v198 = vpop.f32.mrb[0].mxu0
  %199 = vmatprep.mubr.bf16.mxu0 0
  %200 = vmatmul.mubr.bf16.gmra.mrb[0].mxu0 %v104
  %v201 = vpop.f32.mrb[0].mxu0
  %v202 = vadd.f32 %v60, %v201
  %v203 = vpop.f32.mrb[0].mxu0
  %v204 = vpop.f32.mrb[0].mxu0
  %v205 = vadd.f32 %v65, %v204
  %v206 = vpop.f32.mrb[0].mxu0
  %207 = vmatprep.mubr.bf16.mxu0 0
  %208 = vmatmul.mubr.bf16.gmra.mrb[0].mxu0 %v105
  %v209 = vpop.f32.mrb[0].mxu0
  %v210 = vadd.f32 %v70, %v209
  %v211 = vpop.f32.mrb[0].mxu0
  %v212 = vpop.f32.mrb[0].mxu0
  %v213 = vadd.f32 %v75, %v212
  %v214 = vpop.f32.mrb[0].mxu0
  %215 = vmatprep.mubr.bf16.mxu0 0
  %216 = vmatmul.mubr.bf16.gmra.mrb[0].mxu0 %v106
  %v217 = vpop.f32.mrb[0].mxu0
  %v218 = vadd.f32 %v80, %v217
  %v219 = vpop.f32.mrb[0].mxu0
  %v220 = vpop.f32.mrb[0].mxu0
  %v221 = vadd.f32 %v85, %v220
  %v222 = vpop.f32.mrb[0].mxu0
  %223 = vdwg.mxu0
  %v224 = vpack.c.bf16 %v197, %v194
  %v225 = vpack.c.bf16 %v205, %v202
  %v226 = vpack.c.bf16 %v213, %v210
  %v227 = vpack.c.bf16 %v221, %v218
  %v232 = vunpack.c.l.b16 %v224
  %v233 = vunpack.c.h.b16 %v224
  %v234 = vunpack.c.l.b16 %v225
  %v235 = vunpack.c.h.b16 %v225
  %v236 = vunpack.c.l.b16 %v226
  %v237 = vunpack.c.h.b16 %v226
  %v238 = vunpack.c.l.b16 %v227
  %v239 = vunpack.c.h.b16 %v227
  %v240 = vpack.c.b16 %v232, %v232
  %v241 = vpack.c.b16 %v233, %v233
  %v242 = vpack.c.b16 %v234, %v234
  %v243 = vpack.c.b16 %v235, %v235
  %v244 = vpack.c.b16 %v236, %v236
  %v245 = vpack.c.b16 %v237, %v237
  %v246 = vpack.c.b16 %v238, %v238
  %v247 = vpack.c.b16 %v239, %v239
  %256 = vst [vmem:[%s3] sm:$0xf] %v240
  %257 = vst [vmem:[%s3 + $0x4] sm:$0xf] %v241
  %258 = vst [vmem:[%s3 + $0x8] sm:$0xf] %v242
  %259 = vst [vmem:[%s3 + $0xc] sm:$0xf] %v243
  %260 = vst [vmem:[%s3 + $0x10] sm:$0xf] %v244
  %261 = vst [vmem:[%s3 + $0x14] sm:$0xf] %v245
  %262 = vst [vmem:[%s3 + $0x18] sm:$0xf] %v246
  %263 = vst [vmem:[%s3 + $0x1c] sm:$0xf] %v247
  // Predicated region
  $region14: #{_lambda_.6} parent=0 // pred_check
    _
  $region15: #{_lambda_.6} parent=0 // pred_check_branch
    %265 = sbr.rel (0) target = $region17
  $region16: #{_lambda_.6} parent=0 // pred_region
    _
  $region17: #{_lambda_.6} parent=0 // pred_fallthru
    _
  // Predicated region
  $region18: #{_lambda_.6} parent=0 // pred_check
    _
  $region19: #{_lambda_.6} parent=0 // pred_check_branch
    %267 = sbr.rel (0) target = $region21
  $region20: #{_lambda_.6} parent=0 // pred_region
    _
  $region21: #{_lambda_.6} parent=0 // pred_fallthru
    _

// kernel: _lambda_.7
$region0: #{_lambda_.7}
  #allocation0 [shape = 'u32[]', space=smem, size = 0x4, offset = 0x4, fixed_abs, tag = 'smem constant byte address 0x4 - core index']
  #allocation1 [shape = 'u32[144,128]{1,0:T(1,128)}', space=vmem, size = 0x12000, scoped, tag = 'internal scratch']
  %s0 = inlined_call_operand.vmem [shape: bf16[16,64], index: 0, kind: input, shape index: {}]
  %s1 = inlined_call_operand.vmem [shape: bf16[64,128], index: 1, kind: input, shape index: {}]
  %s2 = inlined_call_operand.vmem [shape: f32[16,1], index: 2, kind: input, shape index: {}]
  %s3 = inlined_call_operand.vmem [shape: bf16[16,128], index: 3, kind: output, shape index: {}]
  %s4 = sld [smem:[#allocation0]]
  $region22: #{_lambda_.7} parent=0
    _
  %s6 = ssub.s32 1, %s4
  %s7 = scalar_select 0, %s6, %s4
  // Predicated region
  $region2: #{_lambda_.7} parent=0 // pred_check
    _
  $region3: #{_lambda_.7} parent=0 // pred_check_branch
    %9 = sbr.rel (0) target = $region5
  $region4: #{_lambda_.7} parent=0 // pred_region
    _
  $region5: #{_lambda_.7} parent=0 // pred_fallthru
    _
  // Predicated region
  $region6: #{_lambda_.7} parent=0 // pred_check
    _
  $region7: #{_lambda_.7} parent=0 // pred_check_branch
    %11 = sbr.rel (0) target = $region9
  $region8: #{_lambda_.7} parent=0 // pred_region
    _
  $region9: #{_lambda_.7} parent=0 // pred_fallthru
    _
  // Predicated region
  $region10: #{_lambda_.7} parent=0 // pred_check
    _
  $region11: #{_lambda_.7} parent=0 // pred_check_branch
    %13 = sbr.rel (0) target = $region13
  $region12: #{_lambda_.7} parent=0 // pred_region
    _
  $region13: #{_lambda_.7} parent=0 // pred_fallthru
    _
  %v15 = vld [vmem:[%s0] sm:$0xf]
  %v16 = vld [vmem:[%s0 + $0x4] sm:$0xf]
  %v17 = vld [vmem:[%s1] sm:$0xf]
  %v18 = vld [vmem:[%s1 + $0x4] sm:$0xf]
  %v19 = vld [vmem:[%s1 + $0x8] sm:$0xf]
  %v20 = vld [vmem:[%s1 + $0xc] sm:$0xf]
  %v21 = vld [vmem:[%s1 + $0x10] sm:$0xf]
  %v22 = vld [vmem:[%s1 + $0x14] sm:$0xf]
  %v23 = vld [vmem:[%s1 + $0x18] sm:$0xf]
  %v24 = vld [vmem:[%s1 + $0x1c] sm:$0xf]
  %v25 = vld [vmem:[%s2] sm:$0xff]
  %v26 = vld [vmem:[%s2 + $0x8] sm:$0xff]
  %28 = vset.pattern.permute.xlu0 0
  %29 = vperm.xlu0 %28, %v25
  %v30 = vpop.permute.xlu0 %29
  %33 = vset.pattern.permute.xlu0 0
  %34 = vperm.xlu0 %33, %v26
  %v35 = vpop.permute.xlu0 %34
  %v39 = vunpack.c.l.b16 %v15
  %v40 = vunpack.c.l.b16 %v16
  %v41 = vpack.c.b16 %v40, %v39
  %v50 = vunpack.c.l.b16 %v17
  %v51 = vunpack.c.l.b16 %v18
  %v52 = vunpack.c.l.b16 %v19
  %v53 = vunpack.c.l.b16 %v20
  %v54 = vunpack.c.l.b16 %v21
  %v55 = vunpack.c.l.b16 %v22
  %v56 = vunpack.c.l.b16 %v23
  %v57 = vunpack.c.l.b16 %v24
  %v58 = vpack.c.b16 %v51, %v50
  %v59 = vpack.c.b16 %v53, %v52
  %v60 = vpack.c.b16 %v55, %v54
  %v61 = vpack.c.b16 %v57, %v56
  %vm66 = vcmask 523264
  %v68 = vsel %vm66, %v41, 0
  %70 = vmatprep.subr.bf16.mxu0 0
  %71 = vmatpush1.bf16.msra.mxu0 %v58
  %72 = vmatprep.subr.bf16.mxu0 0
  %73 = vmatpush1.bf16.msra.mxu0 %v59
  %74 = vmatprep.subr.bf16.mxu0 0
  %75 = vmatpush1.bf16.msra.mxu0 %v60
  %76 = vmatprep.subr.bf16.mxu0 0
  %77 = vmatpush1.bf16.msra.mxu0 %v61
  %78 = vmatprep.subr.bf16.mxu0 0
  %79 = vmatpush1.bf16.msra.mxu0 0
  %80 = vmatprep.subr.bf16.mxu0 0
  %81 = vmatpush1.bf16.msra.mxu0 0
  %82 = vmatprep.subr.bf16.mxu0 0
  %83 = vmatpush1.bf16.msra.mxu0 0
  %84 = vmatprep.subr.bf16.mxu0 0
  %85 = vmatpush1.bf16.msra.mxu0 0
  %86 = vmatprep.subr.bf16.mxu0 0
  %87 = vmatpush1.bf16.msra.mxu0 0
  %88 = vmatprep.subr.bf16.mxu0 0
  %89 = vmatpush1.bf16.msra.mxu0 0
  %90 = vmatprep.subr.bf16.mxu0 0
  %91 = vmatpush1.bf16.msra.mxu0 0
  %92 = vmatprep.subr.bf16.mxu0 0
  %93 = vmatpush1.bf16.msra.mxu0 0
  %94 = vmatprep.subr.bf16.mxu0 0
  %95 = vmatpush1.bf16.msra.mxu0 0
  %96 = vmatprep.subr.bf16.mxu0 0
  %97 = vmatpush1.bf16.msra.mxu0 0
  %98 = vmatprep.subr.bf16.mxu0 0
  %99 = vmatpush1.bf16.msra.mxu0 0
  %100 = vmatprep.subr.bf16.mxu0 0
  %101 = vmatpush1.bf16.msra.mxu0 0
  %102 = vmatprep.mubr.bf16.mxu0 0
  %103 = vmatmul.mubr.bf16.gmra.mrb[0].mxu0 %v68
  %v104 = vpop.f32.mrb[0].mxu0
  %v105 = vadd.f32 %v30, %v104
  %v106 = vpop.f32.mrb[0].mxu0
  %v107 = vpop.f32.mrb[0].mxu0
  %v108 = vadd.f32 %v35, %v107
  %v109 = vpop.f32.mrb[0].mxu0
  %110 = vdwg.mxu0
  %v111 = vpack.c.bf16 %v108, %v105
  %v113 = vunpack.c.l.b16 %v111
  %v114 = vunpack.c.h.b16 %v111
  %v115 = vpack.c.b16 %v113, %v113
  %v116 = vpack.c.b16 %v114, %v114
  %119 = vst [vmem:[%s3] sm:$0xf] %v115
  %120 = vst [vmem:[%s3 + $0x4] sm:$0xf] %v116
  // Predicated region
  $region14: #{_lambda_.7} parent=0 // pred_check
    _
  $region15: #{_lambda_.7} parent=0 // pred_check_branch
    %122 = sbr.rel (0) target = $region17
  $region16: #{_lambda_.7} parent=0 // pred_region
    _
  $region17: #{_lambda_.7} parent=0 // pred_fallthru
    _
  // Predicated region
  $region18: #{_lambda_.7} parent=0 // pred_check
    _
  $region19: #{_lambda_.7} parent=0 // pred_check_branch
    %124 = sbr.rel (0) target = $region21
  $region20: #{_lambda_.7} parent=0 // pred_region
    _
  $region21: #{_lambda_.7} parent=0 // pred_fallthru
    _

// kernel: _lambda_.8
$region0: #{_lambda_.8}
  #allocation0 [shape = 'u32[]', space=smem, size = 0x4, offset = 0x4, fixed_abs, tag = 'smem constant byte address 0x4 - core index']
  #allocation1 [shape = 'u32[144,128]{1,0:T(1,128)}', space=vmem, size = 0x12000, scoped, tag = 'internal scratch']
  %s0 = inlined_call_operand.vmem [shape: bf16[16,32], index: 0, kind: input, shape index: {}]
  %s1 = inlined_call_operand.vmem [shape: bf16[32,512], index: 1, kind: input, shape index: {}]
  %s2 = inlined_call_operand.vmem [shape: f32[16,1], index: 2, kind: input, shape index: {}]
  %s3 = inlined_call_operand.vmem [shape: bf16[16,128], index: 3, kind: input, shape index: {}]
  %s4 = inlined_call_operand.vmem [shape: f32[16,512], index: 4, kind: output, shape index: {}]
  %s5 = sld [smem:[#allocation0]]
  $region124: #{_lambda_.8} parent=0
    _
  %s7 = ssub.s32 1, %s5
  %s8 = scalar_select 0, %s7, %s5
  $region1: #{_lambda_.8} parent=0
    #allocation2 [shape = 'u8[16384]{0}', space=vmem, size = 0x4000, scoped, tag = 'input window, operand 1']
    #allocation3 [shape = 'u8[16384]{0}', space=vmem, size = 0x4000, scoped, tag = 'output window, operand 0']
    loop: start=0, step=1, limit=6
    $region2: #{_lambda_.8} parent=1 // loop_pre_header
      _
    $region3: #{_lambda_.8} parent=1 // loop_header
      %s10 = sphi 0, %s14
      %p11 = scmp.ge.s32.totalorder %s10, 6
      %s18 = sphi 0, %s18
      %s20 = sphi 0, %s18
      %s21 = sphi 0, %s20
      %s35 = sphi 0, %s21
      %s41 = sphi 0, %s43
      %s44 = sphi 0, %s41
      %s45 = sphi 0, %s44
      %s61 = sphi 0, %s45
      %s65 = sphi 0, %s65
      %s67 = sphi 0, %s65
      %s68 = sphi 0, %s67
      %s82 = sphi 0, %s68
      %s86 = sphi 0, %s86
      %s88 = sphi 0, %s86
      %s89 = sphi 0, %s88
      %s103 = sphi 0, %s89
      %s109 = sphi 0, %s111
      %s112 = sphi 0, %s109
      %s113 = sphi 0, %s112
      %s129 = sphi 0, %s113
    $region4: #{_lambda_.8} parent=1 // loop_header_branch
      %13 = sbr.rel (%p11) target = $region8
    $region5: #{_lambda_.8} parent=1 // loop_body
      %s15 = ssub.s32 %s10, 1
      %s16 = ssub.s32 %s10, 2
      %s17 = sadd.s32 %s10, 1
      %s19 = sadd.s32 %s18, 1
      %p22 = scmp.eq.s32.totalorder %s10, 3
      %p23 = scmp.ne.s32.totalorder %s18, %s20
      %p24 = scmp.eq.s32.totalorder %s10, 0
      %p25 = por %p23, %p24
      %p26 = scmp.ne.s32.totalorder %s18, %s20
      %p27 = scmp.eq.s32.totalorder %s15, 3
      %p28 = por %p26, %p27
      %p29 = scmp.ne.s32.totalorder %s20, %s21
      %p30 = scmp.eq.s32.totalorder %s15, 0
      %p31 = por %p29, %p30
      %p32 = scmp.ne.s32.totalorder %s20, %s21
      %p33 = scmp.eq.s32.totalorder %s16, 3
      %p34 = por %p32, %p33
      %p36 = scmp.ne.s32.totalorder %s21, %s35
      %p37 = scmp.eq.s32.totalorder %s16, 0
      %p38 = por %p36, %p37
      %s39 = ssub.s32 %s10, %s17
      %p40 = scmp.eq.s32.totalorder %s39, 0
      %s42 = sadd.s32 %s41, 1
      %s43 = scalar_select %p40, %s41, %s42
      %p46 = pneg %p40
      %p47 = scmp.eq.s32.totalorder %s10, 3
      %p48 = por %p46, %p47
      %p49 = scmp.ne.s32.totalorder %s41, %s44
      %p50 = scmp.eq.s32.totalorder %s10, 0
      %p51 = por %p49, %p50
      %p52 = scmp.ne.s32.totalorder %s41, %s44
      %p53 = scmp.eq.s32.totalorder %s15, 3
      %p54 = por %p52, %p53
      %p55 = scmp.ne.s32.totalorder %s44, %s45
      %p56 = scmp.eq.s32.totalorder %s15, 0
      %p57 = por %p55, %p56
      %p58 = scmp.ne.s32.totalorder %s44, %s45
      %p59 = scmp.eq.s32.totalorder %s16, 3
      %p60 = por %p58, %p59
      %p62 = scmp.ne.s32.totalorder %s45, %s61
      %p63 = scmp.eq.s32.totalorder %s16, 0
      %p64 = por %p62, %p63
      %s66 = sadd.s32 %s65, 1
      %p69 = scmp.eq.s32.totalorder %s10, 3
      %p70 = scmp.ne.s32.totalorder %s65, %s67
      %p71 = scmp.eq.s32.totalorder %s10, 0
      %p72 = por %p70, %p71
      %p73 = scmp.ne.s32.totalorder %s65, %s67
      %p74 = scmp.eq.s32.totalorder %s15, 3
      %p75 = por %p73, %p74
      %p76 = scmp.ne.s32.totalorder %s67, %s68
      %p77 = scmp.eq.s32.totalorder %s15, 0
      %p78 = por %p76, %p77
      %p79 = scmp.ne.s32.totalorder %s67, %s68
      %p80 = scmp.eq.s32.totalorder %s16, 3
      %p81 = por %p79, %p80
      %p83 = scmp.ne.s32.totalorder %s68, %s82
      %p84 = scmp.eq.s32.totalorder %s16, 0
      %p85 = por %p83, %p84
      %s87 = sadd.s32 %s86, 1
      %p90 = scmp.eq.s32.totalorder %s10, 3
      %p91 = scmp.ne.s32.totalorder %s86, %s88
      %p92 = scmp.eq.s32.totalorder %s10, 0
      %p93 = por %p91, %p92
      %p94 = scmp.ne.s32.totalorder %s86, %s88
      %p95 = scmp.eq.s32.totalorder %s15, 3
      %p96 = por %p94, %p95
      %p97 = scmp.ne.s32.totalorder %s88, %s89
      %p98 = scmp.eq.s32.totalorder %s15, 0
      %p99 = por %p97, %p98
      %p100 = scmp.ne.s32.totalorder %s88, %s89
      %p101 = scmp.eq.s32.totalorder %s16, 3
      %p102 = por %p100, %p101
      %p104 = scmp.ne.s32.totalorder %s89, %s103
      %p105 = scmp.eq.s32.totalorder %s16, 0
      %p106 = por %p104, %p105
      %s107 = ssub.s32 %s10, %s17
      %p108 = scmp.eq.s32.totalorder %s107, 0
      %s110 = sadd.s32 %s109, 1
      %s111 = scalar_select %p108, %s109, %s110
      %p114 = pneg %p108
      %p115 = scmp.eq.s32.totalorder %s10, 3
      %p116 = por %p114, %p115
      %p117 = scmp.ne.s32.totalorder %s109, %s112
      %p118 = scmp.eq.s32.totalorder %s10, 0
      %p119 = por %p117, %p118
      %p120 = scmp.ne.s32.totalorder %s109, %s112
      %p121 = scmp.eq.s32.totalorder %s15, 3
      %p122 = por %p120, %p121
      %p123 = scmp.ne.s32.totalorder %s112, %s113
      %p124 = scmp.eq.s32.totalorder %s15, 0
      %p125 = por %p123, %p124
      %p126 = scmp.ne.s32.totalorder %s112, %s113
      %p127 = scmp.eq.s32.totalorder %s16, 3
      %p128 = por %p126, %p127
      %p130 = scmp.ne.s32.totalorder %s113, %s129
      %p131 = scmp.eq.s32.totalorder %s16, 0
      %p132 = por %p130, %p131
      %p133 = scmp.le.s32.totalorder 1, %s10
      %p134 = scmp.lt.s32.totalorder %s10, 5
      %p135 = pnand %p133, %p134
      %p136 = pneg %p135
      // Predicated region
      $region9: #{_lambda_.8} parent=5 // pred_check
        _
      $region10: #{_lambda_.8} parent=5 // pred_check_branch
        %138 = sbr.rel (%p135) target = $region12
      $region11: #{_lambda_.8} parent=5 // pred_region
        %s139 = ssub.s32 %s10, 1
        // Predicated region
        $region13: #{_lambda_.8} parent=11 // pred_check
          %p140 = pneg %p31
        $region14: #{_lambda_.8} parent=11 // pred_check_branch
          %142 = sbr.rel (%p140) target = $region16
        $region15: #{_lambda_.8} parent=11 // pred_region
          _
        $region16: #{_lambda_.8} parent=11 // pred_fallthru
          _
        // Predicated region
        $region17: #{_lambda_.8} parent=11 // pred_check
          %p143 = pneg %p78
        $region18: #{_lambda_.8} parent=11 // pred_check_branch
          %145 = sbr.rel (%p143) target = $region20
        $region19: #{_lambda_.8} parent=11 // pred_region
          _
        $region20: #{_lambda_.8} parent=11 // pred_fallthru
          _
        // Predicated region
        $region21: #{_lambda_.8} parent=11 // pred_check
          %p146 = pneg %p99
        $region22: #{_lambda_.8} parent=11 // pred_check_branch
          %148 = sbr.rel (%p146) target = $region24
        $region23: #{_lambda_.8} parent=11 // pred_region
          _
        $region24: #{_lambda_.8} parent=11 // pred_fallthru
          _
      $region12: #{_lambda_.8} parent=5 // pred_fallthru
        _
      %p149 = scmp.lt.s32.totalorder %s10, 4
      // Predicated region
      $region25: #{_lambda_.8} parent=5 // pred_check
        %p150 = pneg %p149
      $region26: #{_lambda_.8} parent=5 // pred_check_branch
        %152 = sbr.rel (%p150) target = $region28
      $region27: #{_lambda_.8} parent=5 // pred_region
        // Predicated region
        $region29: #{_lambda_.8} parent=27 // pred_check
          %p153 = pneg %p51
        $region30: #{_lambda_.8} parent=27 // pred_check_branch
          %155 = sbr.rel (%p153) target = $region32
        $region31: #{_lambda_.8} parent=27 // pred_region
          %s156 = sand.u32 %s41, 1
          %s157 = sand.u32 %s41, 1
          %s158 = smul.addr %s157, 16
          %s159 = scalar_lea.vmem [#allocation2], %s158
          %s160 = smul.addr %s10, 4
          %s161 = scalar_lea.vmem %s1, %s160
          // Predicated region
          $region33: #{_lambda_.8} parent=31 // pred_check
            _
          $region34: #{_lambda_.8} parent=31 // pred_check_branch
            %163 = sbr.rel (0) target = $region36
          $region35: #{_lambda_.8} parent=31 // pred_region
            // Predicated region
            $region37: #{_lambda_.8} parent=35 // pred_check
              _
            $region38: #{_lambda_.8} parent=35 // pred_check_branch
              %165 = sbr.rel target = $region40
            $region39: #{_lambda_.8} parent=35 // pred_region
              // Predicated region
              $region52: #{_lambda_.8} parent=39 // pred_check
                _
              $region53: #{_lambda_.8} parent=39 // pred_check_branch
                %186 = sbr.rel (0) target = $region55
              $region54: #{_lambda_.8} parent=39 // pred_region
                loop: start=0, step=1, limit=1
                $region56: #{_lambda_.8} parent=54 // loop_pre_header
                  _
                $region57: #{_lambda_.8} parent=54 // loop_header
                  %s188 = sphi 0, %s192
                  %p189 = scmp.ge.s32.totalorder %s188, 1
                  %s193 = sphi %s161, %s161
                  %s194 = sphi %s159, %s159
                $region58: #{_lambda_.8} parent=54 // loop_header_branch
                  %191 = sbr.rel (%p189) target = $region62
                $region59: #{_lambda_.8} parent=54 // loop_body
                  _
                $region60: #{_lambda_.8} parent=54 // loop_footer
                  %s192 = sadd.s32 1, %s188
                $region61: #{_lambda_.8} parent=54 // loop_footer_branch
                  %187 = sbr.rel target = $region57
                $region62: #{_lambda_.8} parent=54 // loop_exit
                  _
                loop: start=0, step=1, limit=1
                $region63: #{_lambda_.8} parent=54 // loop_pre_header
                  _
                $region64: #{_lambda_.8} parent=54 // loop_header
                  %s197 = sphi 0, %s201
                  %p198 = scmp.ge.s32.totalorder %s197, 1
                  %s202 = sphi %s161, %s161
                  %s203 = sphi %s159, %s159
                $region65: #{_lambda_.8} parent=54 // loop_header_branch
                  %200 = sbr.rel (%p198) target = $region69
                $region66: #{_lambda_.8} parent=54 // loop_body
                  %v204 = vld [vmem:[%s202] sm:$0xf]
                  %205 = vst [vmem:[%s203] sm:$0xf] %v204
                  %v206 = vld [vmem:[%s202 + $0x10] sm:$0xf]
                  %207 = vst [vmem:[%s203 + $0x4] sm:$0xf] %v206
                  %v208 = vld [vmem:[%s202 + $0x20] sm:$0xf]
                  %209 = vst [vmem:[%s203 + $0x8] sm:$0xf] %v208
                  %v210 = vld [vmem:[%s202 + $0x30] sm:$0xf]
                  %211 = vst [vmem:[%s203 + $0xc] sm:$0xf] %v210
                $region67: #{_lambda_.8} parent=54 // loop_footer
                  %s201 = sadd.s32 1, %s197
                $region68: #{_lambda_.8} parent=54 // loop_footer_branch
                  %196 = sbr.rel target = $region64
                $region69: #{_lambda_.8} parent=54 // loop_exit
                  _
              $region55: #{_lambda_.8} parent=39 // pred_fallthru
                _
            $region40: #{_lambda_.8} parent=35 // pred_fallthru
              _
            // Predicated region
            $region41: #{_lambda_.8} parent=35 // pred_check
              _
            $region42: #{_lambda_.8} parent=35 // pred_check_branch
              %167 = sbr.rel (0) target = $region44
            $region43: #{_lambda_.8} parent=35 // pred_region
              loop: start=0, step=1, limit=1
              $region45: #{_lambda_.8} parent=43 // loop_pre_header
                _
              $region46: #{_lambda_.8} parent=43 // loop_header
                %s170 = sphi 0, %s174
                %p171 = scmp.ge.s32.totalorder %s170, 1
                %s175 = sphi %s161, %s161
                %s176 = sphi %s159, %s159
              $region47: #{_lambda_.8} parent=43 // loop_header_branch
                %173 = sbr.rel (%p171) target = $region51
              $region48: #{_lambda_.8} parent=43 // loop_body
                %v177 = vld [vmem:[%s175] sm:$0xf]
                %178 = vst [vmem:[%s176] sm:$0xf] %v177
                %v179 = vld [vmem:[%s175 + $0x10] sm:$0xf]
                %180 = vst [vmem:[%s176 + $0x4] sm:$0xf] %v179
                %v181 = vld [vmem:[%s175 + $0x20] sm:$0xf]
                %182 = vst [vmem:[%s176 + $0x8] sm:$0xf] %v181
                %v183 = vld [vmem:[%s175 + $0x30] sm:$0xf]
                %184 = vst [vmem:[%s176 + $0xc] sm:$0xf] %v183
              $region49: #{_lambda_.8} parent=43 // loop_footer
                %s174 = sadd.s32 1, %s170
              $region50: #{_lambda_.8} parent=43 // loop_footer_branch
                %169 = sbr.rel target = $region46
              $region51: #{_lambda_.8} parent=43 // loop_exit
                _
            $region44: #{_lambda_.8} parent=35 // pred_fallthru
              _
          $region36: #{_lambda_.8} parent=31 // pred_fallthru
            _
          %212 = vnop
        $region32: #{_lambda_.8} parent=27 // pred_fallthru
          _
      $region28: #{_lambda_.8} parent=5 // pred_fallthru
        _
      %p213 = scmp.le.s32.totalorder 1, %s10
      %p214 = scmp.lt.s32.totalorder %s10, 5
      %p215 = pnand %p213, %p214
      %p216 = pneg %p215
      // Predicated region
      $region70: #{_lambda_.8} parent=5 // pred_check
        _
      $region71: #{_lambda_.8} parent=5 // pred_check_branch
        %218 = sbr.rel (%p215) target = $region73
      $region72: #{_lambda_.8} parent=5 // pred_region
        %s219 = ssub.s32 %s10, 1
        %s220 = sand.u32 %s44, 1
        %s221 = sand.u32 %s44, 1
        %s222 = smul.addr %s221, 16
        %s223 = scalar_lea.vmem [#allocation2], %s222
        // Predicated region
        $region74: #{_lambda_.8} parent=72 // pred_check
          %p224 = pneg %p57
        $region75: #{_lambda_.8} parent=72 // pred_check_branch
          %226 = sbr.rel (%p224) target = $region77
        $region76: #{_lambda_.8} parent=72 // pred_region
          _
        $region77: #{_lambda_.8} parent=72 // pred_fallthru
          _
        %p227 = pneg %p31
        %p228 = pneg %p28
        %s229 = sand.u32 %s44, 1
        %s230 = sand.u32 %s44, 1
        %s231 = smul.addr %s230, 16
        %s232 = scalar_lea.vmem [#allocation2], %s231
        %p233 = pneg %p57
        %p234 = pneg %p54
        %p235 = pneg %p78
        %p236 = pneg %p75
        %p237 = pneg %p99
        %p238 = pneg %p96
        %p239 = pneg %p125
        %p240 = pneg %p122
        %s241 = sand.u32 %s112, 1
        %s242 = sand.u32 %s112, 1
        %s243 = smul.addr %s242, 16
        %s244 = scalar_lea.vmem [#allocation3], %s243
        %v246 = vld [vmem:[%s0] sm:$0xf]
        %v247 = vld [vmem:[%s0 + $0x4] sm:$0xf]
        %v248 = vld [vmem:[%s223] sm:$0xf]
        %v249 = vld [vmem:[%s223 + $0x4] sm:$0xf]
        %v250 = vld [vmem:[%s223 + $0x8] sm:$0xf]
        %v251 = vld [vmem:[%s223 + $0xc] sm:$0xf]
        %v252 = vld [vmem:[%s2] sm:$0xff]
        %v253 = vld [vmem:[%s2 + $0x8] sm:$0xff]
        %255 = vset.pattern.permute.xlu0 0
        %256 = vperm.xlu0 %255, %v252
        %v257 = vpop.permute.xlu0 %256
        %260 = vset.pattern.permute.xlu0 0
        %261 = vperm.xlu0 %260, %v253
        %v262 = vpop.permute.xlu0 %261
        %v266 = vunpack.c.l.b16 %v246
        %v267 = vunpack.c.l.b16 %v247
        %v268 = vpack.c.b16 %v267, %v266
        %v273 = vunpack.c.l.b16 %v248
        %v274 = vunpack.c.l.b16 %v249
        %v275 = vunpack.c.l.b16 %v250
        %v276 = vunpack.c.l.b16 %v251
        %v277 = vpack.c.b16 %v274, %v273
        %v278 = vpack.c.b16 %v276, %v275
        %vm281 = vcmask 261120
        %v283 = vsel %vm281, %v268, 0
        %285 = vmatprep.subr.bf16.mxu0 0
        %286 = vmatpush1.bf16.msra.mxu0 %v277
        %287 = vmatprep.subr.bf16.mxu0 0
        %288 = vmatpush1.bf16.msra.mxu0 %v278
        %289 = vmatprep.subr.bf16.mxu0 0
        %290 = vmatpush1.bf16.msra.mxu0 0
        %291 = vmatprep.subr.bf16.mxu0 0
        %292 = vmatpush1.bf16.msra.mxu0 0
        %293 = vmatprep.subr.bf16.mxu0 0
        %294 = vmatpush1.bf16.msra.mxu0 0
        %295 = vmatprep.subr.bf16.mxu0 0
        %296 = vmatpush1.bf16.msra.mxu0 0
        %297 = vmatprep.subr.bf16.mxu0 0
        %298 = vmatpush1.bf16.msra.mxu0 0
        %299 = vmatprep.subr.bf16.mxu0 0
        %300 = vmatpush1.bf16.msra.mxu0 0
        %301 = vmatprep.subr.bf16.mxu0 0
        %302 = vmatpush1.bf16.msra.mxu0 0
        %303 = vmatprep.subr.bf16.mxu0 0
        %304 = vmatpush1.bf16.msra.mxu0 0
        %305 = vmatprep.subr.bf16.mxu0 0
        %306 = vmatpush1.bf16.msra.mxu0 0
        %307 = vmatprep.subr.bf16.mxu0 0
        %308 = vmatpush1.bf16.msra.mxu0 0
        %309 = vmatprep.subr.bf16.mxu0 0
        %310 = vmatpush1.bf16.msra.mxu0 0
        %311 = vmatprep.subr.bf16.mxu0 0
        %312 = vmatpush1.bf16.msra.mxu0 0
        %313 = vmatprep.subr.bf16.mxu0 0
        %314 = vmatpush1.bf16.msra.mxu0 0
        %315 = vmatprep.subr.bf16.mxu0 0
        %316 = vmatpush1.bf16.msra.mxu0 0
        %317 = vmatprep.mubr.bf16.mxu0 0
        %318 = vmatmul.mubr.bf16.gmra.mrb[0].mxu0 %v283
        %v319 = vpop.f32.mrb[0].mxu0
        %v320 = vadd.f32 %v257, %v319
        %v321 = vpop.f32.mrb[0].mxu0
        %v322 = vpop.f32.mrb[0].mxu0
        %v323 = vadd.f32 %v262, %v322
        %v324 = vpop.f32.mrb[0].mxu0
        %325 = vdwg.mxu0
        %v326 = vld [vmem:[%s3] sm:$0xf]
        %v327 = vld [vmem:[%s3 + $0x4] sm:$0xf]
        %v328 = vunpack.c.l.bf16 %v326
        %v329 = vunpack.c.l.bf16 %v327
        %v330 = vadd.f32 %v320, %v328
        %v331 = vadd.f32 %v323, %v329
        %332 = vst [vmem:[%s244] sm:$0xff] %v330
        %333 = vst [vmem:[%s244 + $0x8] sm:$0xff] %v331
        %s334 = sand.u32 %s112, 1
        %s335 = sand.u32 %s112, 1
        %s336 = smul.addr %s335, 16
        %s337 = scalar_lea.vmem [#allocation3], %s336
        // Predicated region
        $region78: #{_lambda_.8} parent=72 // pred_check
          %p338 = pneg %p122
        $region79: #{_lambda_.8} parent=72 // pred_check_branch
          %340 = sbr.rel (%p338) target = $region81
        $region80: #{_lambda_.8} parent=72 // pred_region
          %s341 = smul.addr %s15, 8
          %s342 = scalar_lea.vmem %s4, %s341
          // Predicated region
          $region82: #{_lambda_.8} parent=80 // pred_check
            _
          $region83: #{_lambda_.8} parent=80 // pred_check_branch
            %344 = sbr.rel (0) target = $region85
          $region84: #{_lambda_.8} parent=80 // pred_region
            // Predicated region
            $region86: #{_lambda_.8} parent=84 // pred_check
              _
            $region87: #{_lambda_.8} parent=84 // pred_check_branch
              %346 = sbr.rel (0) target = $region89
            $region88: #{_lambda_.8} parent=84 // pred_region
              // Predicated region
              $region101: #{_lambda_.8} parent=88 // pred_check
                _
              $region102: #{_lambda_.8} parent=88 // pred_check_branch
                %363 = sbr.rel (0) target = $region104
              $region103: #{_lambda_.8} parent=88 // pred_region
                loop: start=0, step=1, limit=1
                $region105: #{_lambda_.8} parent=103 // loop_pre_header
                  _
                $region106: #{_lambda_.8} parent=103 // loop_header
                  %s365 = sphi 0, %s369
                  %p366 = scmp.ge.s32.totalorder %s365, 1
                  %s370 = sphi %s337, %s337
                  %s371 = sphi %s342, %s342
                $region107: #{_lambda_.8} parent=103 // loop_header_branch
                  %368 = sbr.rel (%p366) target = $region111
                $region108: #{_lambda_.8} parent=103 // loop_body
                  %v372 = vld [vmem:[%s370] sm:$0xff]
                  %373 = vst [vmem:[%s371] sm:$0xff] %v372
                  %v374 = vld [vmem:[%s370 + $0x8] sm:$0xff]
                  %375 = vst [vmem:[%s371 + $0x20] sm:$0xff] %v374
                $region109: #{_lambda_.8} parent=103 // loop_footer
                  %s369 = sadd.s32 1, %s365
                $region110: #{_lambda_.8} parent=103 // loop_footer_branch
                  %364 = sbr.rel target = $region106
                $region111: #{_lambda_.8} parent=103 // loop_exit
                  _
              $region104: #{_lambda_.8} parent=88 // pred_fallthru
                _
              // Predicated region
              $region112: #{_lambda_.8} parent=88 // pred_check
                _
              $region113: #{_lambda_.8} parent=88 // pred_check_branch
                %377 = sbr.rel target = $region115
              $region114: #{_lambda_.8} parent=88 // pred_region
                _
              $region115: #{_lambda_.8} parent=88 // pred_fallthru
                _
            $region89: #{_lambda_.8} parent=84 // pred_fallthru
              _
            // Predicated region
            $region90: #{_lambda_.8} parent=84 // pred_check
              _
            $region91: #{_lambda_.8} parent=84 // pred_check_branch
              %348 = sbr.rel target = $region93
            $region92: #{_lambda_.8} parent=84 // pred_region
              loop: start=0, step=1, limit=1
              $region94: #{_lambda_.8} parent=92 // loop_pre_header
                _
              $region95: #{_lambda_.8} parent=92 // loop_header
                %s351 = sphi 0, %s355
                %p352 = scmp.ge.s32.totalorder %s351, 1
                %s356 = sphi %s337, %s337
                %s357 = sphi %s342, %s342
              $region96: #{_lambda_.8} parent=92 // loop_header_branch
                %354 = sbr.rel (%p352) target = $region100
              $region97: #{_lambda_.8} parent=92 // loop_body
                %v358 = vld [vmem:[%s356] sm:$0xff]
                %359 = vst [vmem:[%s357] sm:$0xff] %v358
                %v360 = vld [vmem:[%s356 + $0x8] sm:$0xff]
                %361 = vst [vmem:[%s357 + $0x20] sm:$0xff] %v360
              $region98: #{_lambda_.8} parent=92 // loop_footer
                %s355 = sadd.s32 1, %s351
              $region99: #{_lambda_.8} parent=92 // loop_footer_branch
                %350 = sbr.rel target = $region95
              $region100: #{_lambda_.8} parent=92 // loop_exit
                _
            $region93: #{_lambda_.8} parent=84 // pred_fallthru
              _
          $region85: #{_lambda_.8} parent=80 // pred_fallthru
            _
          %378 = vnop
        $region81: #{_lambda_.8} parent=72 // pred_fallthru
          _
      $region73: #{_lambda_.8} parent=5 // pred_fallthru
        _
      %p379 = scmp.le.s32.totalorder 2, %s10
      // Predicated region
      $region116: #{_lambda_.8} parent=5 // pred_check
        %p380 = pneg %p379
      $region117: #{_lambda_.8} parent=5 // pred_check_branch
        %382 = sbr.rel (%p380) target = $region119
      $region118: #{_lambda_.8} parent=5 // pred_region
        %s383 = ssub.s32 %s10, 2
        // Predicated region
        $region120: #{_lambda_.8} parent=118 // pred_check
          %p384 = pneg %p128
        $region121: #{_lambda_.8} parent=118 // pred_check_branch
          %386 = sbr.rel (%p384) target = $region123
        $region122: #{_lambda_.8} parent=118 // pred_region
          %s387 = sand.u32 %s113, 1
          %s388 = sand.u32 %s113, 1
          %s389 = smul.addr %s388, 16
          %s390 = scalar_lea.vmem [#allocation3], %s389
        $region123: #{_lambda_.8} parent=118 // pred_fallthru
          _
      $region119: #{_lambda_.8} parent=5 // pred_fallthru
        _
    $region6: #{_lambda_.8} parent=1 // loop_footer
      %s14 = sadd.s32 1, %s10
    $region7: #{_lambda_.8} parent=1 // loop_footer_branch
      %9 = sbr.rel target = $region3
    $region8: #{_lambda_.8} parent=1 // loop_exit
      _

// kernel: _lambda_.9
$region0: #{_lambda_.9}
  #allocation0 [shape = 'u32[]', space=smem, size = 0x4, offset = 0x4, fixed_abs, tag = 'smem constant byte address 0x4 - core index']
  #allocation1 [shape = 'u32[144,128]{1,0:T(1,128)}', space=vmem, size = 0x12000, scoped, tag = 'internal scratch']
  %s0 = inlined_call_operand.vmem [shape: f32[16,16,1], index: 0, kind: input, shape index: {}]
  %s1 = inlined_call_operand.vmem [shape: f32[16,1,16], index: 1, kind: input, shape index: {}]
  %s2 = inlined_call_operand.vmem [shape: f32[16,16,16], index: 2, kind: output, shape index: {}]
  %s3 = sld [smem:[#allocation0]]
  $region113: #{_lambda_.9} parent=0
    _
  %s5 = ssub.s32 1, %s3
  %s6 = scalar_select 0, %s5, %s3
  $region1: #{_lambda_.9} parent=0
    #allocation2 [shape = 'u8[131072]{0}', space=vmem, size = 0x20000, scoped, tag = 'input window, operand 0']
    #allocation3 [shape = 'u8[131072]{0}', space=vmem, size = 0x20000, scoped, tag = 'output window, operand 0']
    loop: start=0, step=1, limit=4
    $region2: #{_lambda_.9} parent=1 // loop_pre_header
      _
    $region3: #{_lambda_.9} parent=1 // loop_header
      %s8 = sphi 0, %s12
      %p9 = scmp.ge.s32.totalorder %s8, 4
      %s18 = sphi 0, %s20
      %s21 = sphi 0, %s18
      %s22 = sphi 0, %s21
      %s38 = sphi 0, %s22
      %s42 = sphi 0, %s42
      %s44 = sphi 0, %s42
      %s45 = sphi 0, %s44
      %s59 = sphi 0, %s45
      %s65 = sphi 0, %s67
      %s68 = sphi 0, %s65
      %s69 = sphi 0, %s68
      %s85 = sphi 0, %s69
    $region4: #{_lambda_.9} parent=1 // loop_header_branch
      %11 = sbr.rel (%p9) target = $region8
    $region5: #{_lambda_.9} parent=1 // loop_body
      %s13 = ssub.s32 %s8, 1
      %s14 = ssub.s32 %s8, 2
      %s15 = sadd.s32 %s8, 1
      %s16 = ssub.s32 %s8, %s15
      %p17 = scmp.eq.s32.totalorder %s16, 0
      %s19 = sadd.s32 %s18, 1
      %s20 = scalar_select %p17, %s18, %s19
      %p23 = pneg %p17
      %p24 = scmp.eq.s32.totalorder %s8, 1
      %p25 = por %p23, %p24
      %p26 = scmp.ne.s32.totalorder %s18, %s21
      %p27 = scmp.eq.s32.totalorder %s8, 0
      %p28 = por %p26, %p27
      %p29 = scmp.ne.s32.totalorder %s18, %s21
      %p30 = scmp.eq.s32.totalorder %s13, 1
      %p31 = por %p29, %p30
      %p32 = scmp.ne.s32.totalorder %s21, %s22
      %p33 = scmp.eq.s32.totalorder %s13, 0
      %p34 = por %p32, %p33
      %p35 = scmp.ne.s32.totalorder %s21, %s22
      %p36 = scmp.eq.s32.totalorder %s14, 1
      %p37 = por %p35, %p36
      %p39 = scmp.ne.s32.totalorder %s22, %s38
      %p40 = scmp.eq.s32.totalorder %s14, 0
      %p41 = por %p39, %p40
      %s43 = sadd.s32 %s42, 1
      %p46 = scmp.eq.s32.totalorder %s8, 1
      %p47 = scmp.ne.s32.totalorder %s42, %s44
      %p48 = scmp.eq.s32.totalorder %s8, 0
      %p49 = por %p47, %p48
      %p50 = scmp.ne.s32.totalorder %s42, %s44
      %p51 = scmp.eq.s32.totalorder %s13, 1
      %p52 = por %p50, %p51
      %p53 = scmp.ne.s32.totalorder %s44, %s45
      %p54 = scmp.eq.s32.totalorder %s13, 0
      %p55 = por %p53, %p54
      %p56 = scmp.ne.s32.totalorder %s44, %s45
      %p57 = scmp.eq.s32.totalorder %s14, 1
      %p58 = por %p56, %p57
      %p60 = scmp.ne.s32.totalorder %s45, %s59
      %p61 = scmp.eq.s32.totalorder %s14, 0
      %p62 = por %p60, %p61
      %s63 = ssub.s32 %s8, %s15
      %p64 = scmp.eq.s32.totalorder %s63, 0
      %s66 = sadd.s32 %s65, 1
      %s67 = scalar_select %p64, %s65, %s66
      %p70 = pneg %p64
      %p71 = scmp.eq.s32.totalorder %s8, 1
      %p72 = por %p70, %p71
      %p73 = scmp.ne.s32.totalorder %s65, %s68
      %p74 = scmp.eq.s32.totalorder %s8, 0
      %p75 = por %p73, %p74
      %p76 = scmp.ne.s32.totalorder %s65, %s68
      %p77 = scmp.eq.s32.totalorder %s13, 1
      %p78 = por %p76, %p77
      %p79 = scmp.ne.s32.totalorder %s68, %s69
      %p80 = scmp.eq.s32.totalorder %s13, 0
      %p81 = por %p79, %p80
      %p82 = scmp.ne.s32.totalorder %s68, %s69
      %p83 = scmp.eq.s32.totalorder %s14, 1
      %p84 = por %p82, %p83
      %p86 = scmp.ne.s32.totalorder %s69, %s85
      %p87 = scmp.eq.s32.totalorder %s14, 0
      %p88 = por %p86, %p87
      %p89 = scmp.le.s32.totalorder 1, %s8
      %p90 = scmp.lt.s32.totalorder %s8, 3
      %p91 = pnand %p89, %p90
      %p92 = pneg %p91
      // Predicated region
      $region9: #{_lambda_.9} parent=5 // pred_check
        _
      $region10: #{_lambda_.9} parent=5 // pred_check_branch
        %94 = sbr.rel (%p91) target = $region12
      $region11: #{_lambda_.9} parent=5 // pred_region
        %s95 = ssub.s32 %s8, 1
        // Predicated region
        $region13: #{_lambda_.9} parent=11 // pred_check
          %p96 = pneg %p55
        $region14: #{_lambda_.9} parent=11 // pred_check_branch
          %98 = sbr.rel (%p96) target = $region16
        $region15: #{_lambda_.9} parent=11 // pred_region
          _
        $region16: #{_lambda_.9} parent=11 // pred_fallthru
          _
      $region12: #{_lambda_.9} parent=5 // pred_fallthru
        _
      %p99 = scmp.lt.s32.totalorder %s8, 2
      // Predicated region
      $region17: #{_lambda_.9} parent=5 // pred_check
        %p100 = pneg %p99
      $region18: #{_lambda_.9} parent=5 // pred_check_branch
        %102 = sbr.rel (%p100) target = $region20
      $region19: #{_lambda_.9} parent=5 // pred_region
        // Predicated region
        $region21: #{_lambda_.9} parent=19 // pred_check
          %p103 = pneg %p28
        $region22: #{_lambda_.9} parent=19 // pred_check_branch
          %105 = sbr.rel (%p103) target = $region24
        $region23: #{_lambda_.9} parent=19 // pred_region
          %s106 = sand.u32 %s18, 1
          %s107 = sand.u32 %s18, 1
          %s108 = smul.addr %s107, 128
          %s109 = scalar_lea.vmem [#allocation2], %s108
          %s110 = smul.addr %s8, 8
          %s111 = scalar_lea.vmem %s0, %s110
          // Predicated region
          $region25: #{_lambda_.9} parent=23 // pred_check
            _
          $region26: #{_lambda_.9} parent=23 // pred_check_branch
            %113 = sbr.rel (0) target = $region28
          $region27: #{_lambda_.9} parent=23 // pred_region
            // Predicated region
            $region29: #{_lambda_.9} parent=27 // pred_check
              _
            $region30: #{_lambda_.9} parent=27 // pred_check_branch
              %115 = sbr.rel (0) target = $region32
            $region31: #{_lambda_.9} parent=27 // pred_region
              // Predicated region
              $region44: #{_lambda_.9} parent=31 // pred_check
                _
              $region45: #{_lambda_.9} parent=31 // pred_check_branch
                %160 = sbr.rel (0) target = $region47
              $region46: #{_lambda_.9} parent=31 // pred_region
                loop: start=0, step=1, limit=1
                $region48: #{_lambda_.9} parent=46 // loop_pre_header
                  _
                $region49: #{_lambda_.9} parent=46 // loop_header
                  %s162 = sphi 0, %s166
                  %p163 = scmp.ge.s32.totalorder %s162, 1
                  %s167 = sphi %s111, %s111
                  %s168 = sphi %s109, %s109
                $region50: #{_lambda_.9} parent=46 // loop_header_branch
                  %165 = sbr.rel (%p163) target = $region54
                $region51: #{_lambda_.9} parent=46 // loop_body
                  %v169 = vld [vmem:[%s167] sm:$0xff]
                  %170 = vst [vmem:[%s168] sm:$0xff] %v169
                  %v171 = vld [vmem:[%s167 + $0x10] sm:$0xff]
                  %172 = vst [vmem:[%s168 + $0x8] sm:$0xff] %v171
                  %v173 = vld [vmem:[%s167 + $0x20] sm:$0xff]
                  %174 = vst [vmem:[%s168 + $0x10] sm:$0xff] %v173
                  %v175 = vld [vmem:[%s167 + $0x30] sm:$0xff]
                  %176 = vst [vmem:[%s168 + $0x18] sm:$0xff] %v175
                  %v177 = vld [vmem:[%s167 + $0x40] sm:$0xff]
                  %178 = vst [vmem:[%s168 + $0x20] sm:$0xff] %v177
                  %v179 = vld [vmem:[%s167 + $0x50] sm:$0xff]
                  %180 = vst [vmem:[%s168 + $0x28] sm:$0xff] %v179
                  %v181 = vld [vmem:[%s167 + $0x60] sm:$0xff]
                  %182 = vst [vmem:[%s168 + $0x30] sm:$0xff] %v181
                  %v183 = vld [vmem:[%s167 + $0x70] sm:$0xff]
                  %184 = vst [vmem:[%s168 + $0x38] sm:$0xff] %v183
                  %v185 = vld [vmem:[%s167 + $0x80] sm:$0xff]
                  %186 = vst [vmem:[%s168 + $0x40] sm:$0xff] %v185
                  %v187 = vld [vmem:[%s167 + $0x90] sm:$0xff]
                  %188 = vst [vmem:[%s168 + $0x48] sm:$0xff] %v187
                  %v189 = vld [vmem:[%s167 + $0xa0] sm:$0xff]
                  %190 = vst [vmem:[%s168 + $0x50] sm:$0xff] %v189
                  %v191 = vld [vmem:[%s167 + $0xb0] sm:$0xff]
                  %192 = vst [vmem:[%s168 + $0x58] sm:$0xff] %v191
                  %v193 = vld [vmem:[%s167 + $0xc0] sm:$0xff]
                  %194 = vst [vmem:[%s168 + $0x60] sm:$0xff] %v193
                  %v195 = vld [vmem:[%s167 + $0xd0] sm:$0xff]
                  %196 = vst [vmem:[%s168 + $0x68] sm:$0xff] %v195
                  %v197 = vld [vmem:[%s167 + $0xe0] sm:$0xff]
                  %198 = vst [vmem:[%s168 + $0x70] sm:$0xff] %v197
                  %v199 = vld [vmem:[%s167 + $0xf0] sm:$0xff]
                  %200 = vst [vmem:[%s168 + $0x78] sm:$0xff] %v199
                $region52: #{_lambda_.9} parent=46 // loop_footer
                  %s166 = sadd.s32 1, %s162
                $region53: #{_lambda_.9} parent=46 // loop_footer_branch
                  %161 = sbr.rel target = $region49
                $region54: #{_lambda_.9} parent=46 // loop_exit
                  _
              $region47: #{_lambda_.9} parent=31 // pred_fallthru
                _
              // Predicated region
              $region55: #{_lambda_.9} parent=31 // pred_check
                _
              $region56: #{_lambda_.9} parent=31 // pred_check_branch
                %202 = sbr.rel target = $region58
              $region57: #{_lambda_.9} parent=31 // pred_region
                _
              $region58: #{_lambda_.9} parent=31 // pred_fallthru
                _
            $region32: #{_lambda_.9} parent=27 // pred_fallthru
              _
            // Predicated region
            $region33: #{_lambda_.9} parent=27 // pred_check
              _
            $region34: #{_lambda_.9} parent=27 // pred_check_branch
              %117 = sbr.rel target = $region36
            $region35: #{_lambda_.9} parent=27 // pred_region
              loop: start=0, step=1, limit=1
              $region37: #{_lambda_.9} parent=35 // loop_pre_header
                _
              $region38: #{_lambda_.9} parent=35 // loop_header
                %s120 = sphi 0, %s124
                %p121 = scmp.ge.s32.totalorder %s120, 1
                %s125 = sphi %s111, %s111
                %s126 = sphi %s109, %s109
              $region39: #{_lambda_.9} parent=35 // loop_header_branch
                %123 = sbr.rel (%p121) target = $region43
              $region40: #{_lambda_.9} parent=35 // loop_body
                %v127 = vld [vmem:[%s125] sm:$0xff]
                %128 = vst [vmem:[%s126] sm:$0xff] %v127
                %v129 = vld [vmem:[%s125 + $0x10] sm:$0xff]
                %130 = vst [vmem:[%s126 + $0x8] sm:$0xff] %v129
                %v131 = vld [vmem:[%s125 + $0x20] sm:$0xff]
                %132 = vst [vmem:[%s126 + $0x10] sm:$0xff] %v131
                %v133 = vld [vmem:[%s125 + $0x30] sm:$0xff]
                %134 = vst [vmem:[%s126 + $0x18] sm:$0xff] %v133
                %v135 = vld [vmem:[%s125 + $0x40] sm:$0xff]
                %136 = vst [vmem:[%s126 + $0x20] sm:$0xff] %v135
                %v137 = vld [vmem:[%s125 + $0x50] sm:$0xff]
                %138 = vst [vmem:[%s126 + $0x28] sm:$0xff] %v137
                %v139 = vld [vmem:[%s125 + $0x60] sm:$0xff]
                %140 = vst [vmem:[%s126 + $0x30] sm:$0xff] %v139
                %v141 = vld [vmem:[%s125 + $0x70] sm:$0xff]
                %142 = vst [vmem:[%s126 + $0x38] sm:$0xff] %v141
                %v143 = vld [vmem:[%s125 + $0x80] sm:$0xff]
                %144 = vst [vmem:[%s126 + $0x40] sm:$0xff] %v143
                %v145 = vld [vmem:[%s125 + $0x90] sm:$0xff]
                %146 = vst [vmem:[%s126 + $0x48] sm:$0xff] %v145
                %v147 = vld [vmem:[%s125 + $0xa0] sm:$0xff]
                %148 = vst [vmem:[%s126 + $0x50] sm:$0xff] %v147
                %v149 = vld [vmem:[%s125 + $0xb0] sm:$0xff]
                %150 = vst [vmem:[%s126 + $0x58] sm:$0xff] %v149
                %v151 = vld [vmem:[%s125 + $0xc0] sm:$0xff]
                %152 = vst [vmem:[%s126 + $0x60] sm:$0xff] %v151
                %v153 = vld [vmem:[%s125 + $0xd0] sm:$0xff]
                %154 = vst [vmem:[%s126 + $0x68] sm:$0xff] %v153
                %v155 = vld [vmem:[%s125 + $0xe0] sm:$0xff]
                %156 = vst [vmem:[%s126 + $0x70] sm:$0xff] %v155
                %v157 = vld [vmem:[%s125 + $0xf0] sm:$0xff]
                %158 = vst [vmem:[%s126 + $0x78] sm:$0xff] %v157
              $region41: #{_lambda_.9} parent=35 // loop_footer
                %s124 = sadd.s32 1, %s120
              $region42: #{_lambda_.9} parent=35 // loop_footer_branch
                %119 = sbr.rel target = $region38
              $region43: #{_lambda_.9} parent=35 // loop_exit
                _
            $region36: #{_lambda_.9} parent=27 // pred_fallthru
              _
          $region28: #{_lambda_.9} parent=23 // pred_fallthru
            _
          %203 = vnop
        $region24: #{_lambda_.9} parent=19 // pred_fallthru
          _
      $region20: #{_lambda_.9} parent=5 // pred_fallthru
        _
      %p204 = scmp.le.s32.totalorder 1, %s8
      %p205 = scmp.lt.s32.totalorder %s8, 3
      %p206 = pnand %p204, %p205
      %p207 = pneg %p206
      // Predicated region
      $region59: #{_lambda_.9} parent=5 // pred_check
        _
      $region60: #{_lambda_.9} parent=5 // pred_check_branch
        %209 = sbr.rel (%p206) target = $region62
      $region61: #{_lambda_.9} parent=5 // pred_region
        %s210 = ssub.s32 %s8, 1
        %s211 = sand.u32 %s21, 1
        %s212 = sand.u32 %s21, 1
        %s213 = smul.addr %s212, 128
        %s214 = scalar_lea.vmem [#allocation2], %s213
        // Predicated region
        $region63: #{_lambda_.9} parent=61 // pred_check
          %p215 = pneg %p34
        $region64: #{_lambda_.9} parent=61 // pred_check_branch
          %217 = sbr.rel (%p215) target = $region66
        $region65: #{_lambda_.9} parent=61 // pred_region
          _
        $region66: #{_lambda_.9} parent=61 // pred_fallthru
          _
        %s218 = sand.u32 %s21, 1
        %s219 = sand.u32 %s21, 1
        %s220 = smul.addr %s219, 128
        %s221 = scalar_lea.vmem [#allocation2], %s220
        %p222 = pneg %p34
        %p223 = pneg %p31
        %p224 = pneg %p55
        %p225 = pneg %p52
        %p226 = pneg %p81
        %p227 = pneg %p78
        %s228 = sand.u32 %s68, 1
        %s229 = sand.u32 %s68, 1
        %s230 = smul.addr %s229, 128
        %s231 = scalar_lea.vmem [#allocation3], %s230
        %v232 = vld [vmem:[%s214] sm:$0xff]
        %v233 = vld [vmem:[%s214 + $0x8] sm:$0xff]
        %v234 = vld [vmem:[%s214 + $0x10] sm:$0xff]
        %v235 = vld [vmem:[%s214 + $0x18] sm:$0xff]
        %v236 = vld [vmem:[%s214 + $0x20] sm:$0xff]
        %v237 = vld [vmem:[%s214 + $0x28] sm:$0xff]
        %v238 = vld [vmem:[%s214 + $0x30] sm:$0xff]
        %v239 = vld [vmem:[%s214 + $0x38] sm:$0xff]
        %v240 = vld [vmem:[%s214 + $0x40] sm:$0xff]
        %v241 = vld [vmem:[%s214 + $0x48] sm:$0xff]
        %v242 = vld [vmem:[%s214 + $0x50] sm:$0xff]
        %v243 = vld [vmem:[%s214 + $0x58] sm:$0xff]
        %v244 = vld [vmem:[%s214 + $0x60] sm:$0xff]
        %v245 = vld [vmem:[%s214 + $0x68] sm:$0xff]
        %v246 = vld [vmem:[%s214 + $0x70] sm:$0xff]
        %v247 = vld [vmem:[%s214 + $0x78] sm:$0xff]
        %v248 = vld [vmem:[%s1] sm:$0x1]
        %v249 = vld [vmem:[%s1 + $0x1] sm:$0x1]
        %v250 = vld [vmem:[%s1 + $0x2] sm:$0x1]
        %v251 = vld [vmem:[%s1 + $0x3] sm:$0x1]
        %v252 = vld [vmem:[%s1 + $0x4] sm:$0x1]
        %v253 = vld [vmem:[%s1 + $0x5] sm:$0x1]
        %v254 = vld [vmem:[%s1 + $0x6] sm:$0x1]
        %v255 = vld [vmem:[%s1 + $0x7] sm:$0x1]
        %v256 = vld [vmem:[%s1 + $0x8] sm:$0x1]
        %v257 = vld [vmem:[%s1 + $0x9] sm:$0x1]
        %v258 = vld [vmem:[%s1 + $0xa] sm:$0x1]
        %v259 = vld [vmem:[%s1 + $0xb] sm:$0x1]
        %v260 = vld [vmem:[%s1 + $0xc] sm:$0x1]
        %v261 = vld [vmem:[%s1 + $0xd] sm:$0x1]
        %v262 = vld [vmem:[%s1 + $0xe] sm:$0x1]
        %v263 = vld [vmem:[%s1 + $0xf] sm:$0x1]
        %265 = vset.pattern.permute.xlu0 0
        %266 = vperm.xlu0 %265, %v232
        %v267 = vpop.permute.xlu0 %266
        %270 = vset.pattern.permute.xlu0 0
        %271 = vperm.xlu0 %270, %v233
        %v272 = vpop.permute.xlu0 %271
        %275 = vset.pattern.permute.xlu0 0
        %276 = vperm.xlu0 %275, %v234
        %v277 = vpop.permute.xlu0 %276
        %280 = vset.pattern.permute.xlu0 0
        %281 = vperm.xlu0 %280, %v235
        %v282 = vpop.permute.xlu0 %281
        %285 = vset.pattern.permute.xlu0 0
        %286 = vperm.xlu0 %285, %v236
        %v287 = vpop.permute.xlu0 %286
        %290 = vset.pattern.permute.xlu0 0
        %291 = vperm.xlu0 %290, %v237
        %v292 = vpop.permute.xlu0 %291
        %295 = vset.pattern.permute.xlu0 0
        %296 = vperm.xlu0 %295, %v238
        %v297 = vpop.permute.xlu0 %296
        %300 = vset.pattern.permute.xlu0 0
        %301 = vperm.xlu0 %300, %v239
        %v302 = vpop.permute.xlu0 %301
        %305 = vset.pattern.permute.xlu0 0
        %306 = vperm.xlu0 %305, %v240
        %v307 = vpop.permute.xlu0 %306
        %310 = vset.pattern.permute.xlu0 0
        %311 = vperm.xlu0 %310, %v241
        %v312 = vpop.permute.xlu0 %311
        %315 = vset.pattern.permute.xlu0 0
        %316 = vperm.xlu0 %315, %v242
        %v317 = vpop.permute.xlu0 %316
        %320 = vset.pattern.permute.xlu0 0
        %321 = vperm.xlu0 %320, %v243
        %v322 = vpop.permute.xlu0 %321
        %325 = vset.pattern.permute.xlu0 0
        %326 = vperm.xlu0 %325, %v244
        %v327 = vpop.permute.xlu0 %326
        %330 = vset.pattern.permute.xlu0 0
        %331 = vperm.xlu0 %330, %v245
        %v332 = vpop.permute.xlu0 %331
        %335 = vset.pattern.permute.xlu0 0
        %336 = vperm.xlu0 %335, %v246
        %v337 = vpop.permute.xlu0 %336
        %340 = vset.pattern.permute.xlu0 0
        %341 = vperm.xlu0 %340, %v247
        %v342 = vpop.permute.xlu0 %341
        %v360 = vlaneseq
        %v361 = vshrl.u32 %v360, 7
        %v362 = vsub.s32 0, %v361
        %v363 = vrot.slane %v248, %v362
        %v364 = vlaneseq
        %v365 = vshrl.u32 %v364, 7
        %v366 = vsub.s32 0, %v365
        %v367 = vrot.slane %v249, %v366
        %v368 = vlaneseq
        %v369 = vshrl.u32 %v368, 7
        %v370 = vsub.s32 0, %v369
        %v371 = vrot.slane %v250, %v370
        %v372 = vlaneseq
        %v373 = vshrl.u32 %v372, 7
        %v374 = vsub.s32 0, %v373
        %v375 = vrot.slane %v251, %v374
        %v376 = vlaneseq
        %v377 = vshrl.u32 %v376, 7
        %v378 = vsub.s32 0, %v377
        %v379 = vrot.slane %v252, %v378
        %v380 = vlaneseq
        %v381 = vshrl.u32 %v380, 7
        %v382 = vsub.s32 0, %v381
        %v383 = vrot.slane %v253, %v382
        %v384 = vlaneseq
        %v385 = vshrl.u32 %v384, 7
        %v386 = vsub.s32 0, %v385
        %v387 = vrot.slane %v254, %v386
        %v388 = vlaneseq
        %v389 = vshrl.u32 %v388, 7
        %v390 = vsub.s32 0, %v389
        %v391 = vrot.slane %v255, %v390
        %v392 = vlaneseq
        %v393 = vshrl.u32 %v392, 7
        %v394 = vsub.s32 0, %v393
        %v395 = vrot.slane %v256, %v394
        %v396 = vlaneseq
        %v397 = vshrl.u32 %v396, 7
        %v398 = vsub.s32 0, %v397
        %v399 = vrot.slane %v257, %v398
        %v400 = vlaneseq
        %v401 = vshrl.u32 %v400, 7
        %v402 = vsub.s32 0, %v401
        %v403 = vrot.slane %v258, %v402
        %v404 = vlaneseq
        %v405 = vshrl.u32 %v404, 7
        %v406 = vsub.s32 0, %v405
        %v407 = vrot.slane %v259, %v406
        %v408 = vlaneseq
        %v409 = vshrl.u32 %v408, 7
        %v410 = vsub.s32 0, %v409
        %v411 = vrot.slane %v260, %v410
        %v412 = vlaneseq
        %v413 = vshrl.u32 %v412, 7
        %v414 = vsub.s32 0, %v413
        %v415 = vrot.slane %v261, %v414
        %v416 = vlaneseq
        %v417 = vshrl.u32 %v416, 7
        %v418 = vsub.s32 0, %v417
        %v419 = vrot.slane %v262, %v418
        %v420 = vlaneseq
        %v421 = vshrl.u32 %v420, 7
        %v422 = vsub.s32 0, %v421
        %v423 = vrot.slane %v263, %v422
        %v440 = vadd.f32 %v267, %v363
        %v441 = vadd.f32 %v272, %v367
        %v442 = vadd.f32 %v277, %v371
        %v443 = vadd.f32 %v282, %v375
        %v444 = vadd.f32 %v287, %v379
        %v445 = vadd.f32 %v292, %v383
        %v446 = vadd.f32 %v297, %v387
        %v447 = vadd.f32 %v302, %v391
        %v448 = vadd.f32 %v307, %v395
        %v449 = vadd.f32 %v312, %v399
        %v450 = vadd.f32 %v317, %v403
        %v451 = vadd.f32 %v322, %v407
        %v452 = vadd.f32 %v327, %v411
        %v453 = vadd.f32 %v332, %v415
        %v454 = vadd.f32 %v337, %v419
        %v455 = vadd.f32 %v342, %v423
        %v456 = vand.u32 2147483647, %v440
        %vm457 = vcmp.le.f32.partialorder %v456, 0.7853982
        %vm458 = vcmp.lt.s32.totalorder %v440, 0
        %v459 = vand.u32 %v440, 2139095040
        %v460 = vshrl.u32 %v459, 23
        %v461 = vsub.s32 %v460, 127
        %v462 = vand.u32 2147483647, %v440
        %v463 = vand.u32 %v462, 8388607
        %v464 = vor.u32 %v463, 8388608
        %v465 = vsub.s32 0, %v464
        %v466 = vadd.s32 %v461, 1
        %vm467 = vcmp.gt.s32.totalorder %v466, 0
        %v468 = vsel %vm467, %v466, 0
        %v469 = vshrl.u32 %v468, 5
        %v470 = vand.u32 %v468, 31
        %v471 = vsub.s32 32, %v470
        %v472 = vshrl.u32 683565275, %v471
        %v473 = vshll.u32 683565275, %v470
        %v474 = vshrl.u32 2475754826, %v471
        %v475 = vor.u32 %v473, %v474
        %v476 = vshll.u32 2475754826, %v470
        %v477 = vshrl.u32 2131351028, %v471
        %v478 = vor.u32 %v476, %v477
        %v479 = vshll.u32 2131351028, %v470
        %v480 = vshrl.u32 2102212464, %v471
        %v481 = vor.u32 %v479, %v480
        %v482 = vshll.u32 2102212464, %v470
        %v483 = vshrl.u32 920167782, %v471
        %v484 = vor.u32 %v482, %v483
        %v485 = vshll.u32 920167782, %v470
        %v486 = vshrl.u32 1326507024, %v471
        %v487 = vor.u32 %v485, %v486
        %vm488 = vcmp.lt.s32.totalorder %v469, 1
        %vm489 = vcmp.lt.s32.totalorder %v469, 2
        %vm490 = vcmp.lt.s32.totalorder %v469, 3
        %vm491 = vcmp.lt.s32.totalorder %v469, 4
        %v492 = vsel %vm488, %v472, %v475
        %v493 = vsel %vm491, %v481, 2102212464
        %v494 = vsel %vm490, %v478, %v493
        %v495 = vsel %vm489, %v492, %v494
        %v496 = vsel %vm488, %v475, %v478
        %v497 = vsel %vm491, %v484, 920167782
        %v498 = vsel %vm490, %v481, %v497
        %v499 = vsel %vm489, %v496, %v498
        %v500 = vsel %vm488, %v478, %v481
        %v501 = vsel %vm491, %v487, 1326507024
        %v502 = vsel %vm490, %v484, %v501
        %v503 = vsel %vm489, %v500, %v502
        %v504 = vshll.u32 %v464, 8
        %v505 = vmul.u32.u64.compose %v504, %v503
        %v506 = vextract.low.u32 %v505
        %v507 = vextract.high.u32 %v505
        %v508 = vmul.u32.u64.compose %v504, %v499
        %v509 = vextract.low.u32 %v508
        %v510 = vextract.high.u32 %v508
        %v511 = vmul.u32 %v504, %v495
        %v512 = vadd.s32 %v507, %v509
        %vm513 = vc.u32 %v507, %v509
        %v514 = vadd.s32 %v510, 1
        %v515 = vsel %vm513, %v514, %v510
        %v516 = vadd.s32 %v511, %v515
        %v517 = vadd.s32 %v516, 536870912
        %v518 = vshrl.u32 %v517, 30
        %v519 = vshll.u32 %v518, 30
        %v520 = vsub.s32 %v516, %v519
        %vm521 = vcmp.lt.s32.totalorder %v520, 0
        %v522 = vsub.s32 0, %v520
        %v523 = vsel %vm521, %v522, %v520
        %v524 = vclz %v523
        %v525 = vsub.s32 %v524, 2
        %vm526 = vcmp.gt.s32.totalorder 0, %v525
        %v527 = vsel %vm526, 0, %v525
        %v528 = vsub.s32 32, %v527
        %v529 = vshll.u32 %v520, %v527
        %v530 = vshrl.u32 %v512, %v528
        %v531 = vor.u32 %v529, %v530
        %v532 = vsub.s32 4294967266, %v527
        %v533 = vadd.s32 %v532, 127
        %v534 = vshll.u32 %v533, 23
        %v535 = vor.u32 4788187, %v534
        %v536 = vand.u32 2147483647, %v535
        %v538 = vcvt.s32.f32 %v531
        %v539 = vmul.f32 %v538, %v536
        %v540 = vxor.u32 %v539, 2147483648
        %v541 = vsel %vm458, %v540, %v539
        %v542 = vsub.s32 4, %v518
        %v543 = vsel %vm458, %v542, %v518
        %v544 = vsel %vm457, %v440, %v541
        %v545 = vsel %vm457, 0, %v543
        %v546 = vcosq.f32.pop %v544
        %v547 = vsinq.f32.pop %v544
        %vm548 = vweird.f32 %v440
        %v549 = vadd.s32 %v545, 3
        %v550 = vand.u32 %v549, 3
        %vm551 = vcmp.lt.s32.totalorder %v550, 2
        %vm552 = vcmp.eq.s32.totalorder %v550, 0
        %v553 = vxor.u32 %v547, 2147483648
        %v554 = vsel %vm552, %v546, %v553
        %vm555 = vcmp.eq.s32.totalorder %v550, 2
        %v556 = vxor.u32 %v546, 2147483648
        %v557 = vsel %vm555, %v556, %v547
        %v558 = vsel %vm551, %v554, %v557
        %v559 = vsel %vm548, nan, %v558
        %v560 = vand.u32 2147483647, %v441
        %vm561 = vcmp.le.f32.partialorder %v560, 0.7853982
        %vm562 = vcmp.lt.s32.totalorder %v441, 0
        %v563 = vand.u32 %v441, 2139095040
        %v564 = vshrl.u32 %v563, 23
        %v565 = vsub.s32 %v564, 127
        %v566 = vand.u32 2147483647, %v441
        %v567 = vand.u32 %v566, 8388607
        %v568 = vor.u32 %v567, 8388608
        %v569 = vsub.s32 0, %v568
        %v570 = vadd.s32 %v565, 1
        %vm571 = vcmp.gt.s32.totalorder %v570, 0
        %v572 = vsel %vm571, %v570, 0
        %v573 = vshrl.u32 %v572, 5
        %v574 = vand.u32 %v572, 31
        %v575 = vsub.s32 32, %v574
        %v576 = vshrl.u32 683565275, %v575
        %v577 = vshll.u32 683565275, %v574
        %v578 = vshrl.u32 2475754826, %v575
        %v579 = vor.u32 %v577, %v578
        %v580 = vshll.u32 2475754826, %v574
        %v581 = vshrl.u32 2131351028, %v575
        %v582 = vor.u32 %v580, %v581
        %v583 = vshll.u32 2131351028, %v574
        %v584 = vshrl.u32 2102212464, %v575
        %v585 = vor.u32 %v583, %v584
        %v586 = vshll.u32 2102212464, %v574
        %v587 = vshrl.u32 920167782, %v575
        %v588 = vor.u32 %v586, %v587
        %v589 = vshll.u32 920167782, %v574
        %v590 = vshrl.u32 1326507024, %v575
        %v591 = vor.u32 %v589, %v590
        %vm592 = vcmp.lt.s32.totalorder %v573, 1
        %vm593 = vcmp.lt.s32.totalorder %v573, 2
        %vm594 = vcmp.lt.s32.totalorder %v573, 3
        %vm595 = vcmp.lt.s32.totalorder %v573, 4
        %v596 = vsel %vm592, %v576, %v579
        %v597 = vsel %vm595, %v585, 2102212464
        %v598 = vsel %vm594, %v582, %v597
        %v599 = vsel %vm593, %v596, %v598
        %v600 = vsel %vm592, %v579, %v582
        %v601 = vsel %vm595, %v588, 920167782
        %v602 = vsel %vm594, %v585, %v601
        %v603 = vsel %vm593, %v600, %v602
        %v604 = vsel %vm592, %v582, %v585
        %v605 = vsel %vm595, %v591, 1326507024
        %v606 = vsel %vm594, %v588, %v605
        %v607 = vsel %vm593, %v604, %v606
        %v608 = vshll.u32 %v568, 8
        %v609 = vmul.u32.u64.compose %v608, %v607
        %v610 = vextract.low.u32 %v609
        %v611 = vextract.high.u32 %v609
        %v612 = vmul.u32.u64.compose %v608, %v603
        %v613 = vextract.low.u32 %v612
        %v614 = vextract.high.u32 %v612
        %v615 = vmul.u32 %v608, %v599
        %v616 = vadd.s32 %v611, %v613
        %vm617 = vc.u32 %v611, %v613
        %v618 = vadd.s32 %v614, 1
        %v619 = vsel %vm617, %v618, %v614
        %v620 = vadd.s32 %v615, %v619
        %v621 = vadd.s32 %v620, 536870912
        %v622 = vshrl.u32 %v621, 30
        %v623 = vshll.u32 %v622, 30
        %v624 = vsub.s32 %v620, %v623
        %vm625 = vcmp.lt.s32.totalorder %v624, 0
        %v626 = vsub.s32 0, %v624
        %v627 = vsel %vm625, %v626, %v624
        %v628 = vclz %v627
        %v629 = vsub.s32 %v628, 2
        %vm630 = vcmp.gt.s32.totalorder 0, %v629
        %v631 = vsel %vm630, 0, %v629
        %v632 = vsub.s32 32, %v631
        %v633 = vshll.u32 %v624, %v631
        %v634 = vshrl.u32 %v616, %v632
        %v635 = vor.u32 %v633, %v634
        %v636 = vsub.s32 4294967266, %v631
        %v637 = vadd.s32 %v636, 127
        %v638 = vshll.u32 %v637, 23
        %v639 = vor.u32 4788187, %v638
        %v640 = vand.u32 2147483647, %v639
        %v642 = vcvt.s32.f32 %v635
        %v643 = vmul.f32 %v642, %v640
        %v644 = vxor.u32 %v643, 2147483648
        %v645 = vsel %vm562, %v644, %v643
        %v646 = vsub.s32 4, %v622
        %v647 = vsel %vm562, %v646, %v622
        %v648 = vsel %vm561, %v441, %v645
        %v649 = vsel %vm561, 0, %v647
        %v650 = vcosq.f32.pop %v648
        %v651 = vsinq.f32.pop %v648
        %vm652 = vweird.f32 %v441
        %v653 = vadd.s32 %v649, 3
        %v654 = vand.u32 %v653, 3
        %vm655 = vcmp.lt.s32.totalorder %v654, 2
        %vm656 = vcmp.eq.s32.totalorder %v654, 0
        %v657 = vxor.u32 %v651, 2147483648
        %v658 = vsel %vm656, %v650, %v657
        %vm659 = vcmp.eq.s32.totalorder %v654, 2
        %v660 = vxor.u32 %v650, 2147483648
        %v661 = vsel %vm659, %v660, %v651
        %v662 = vsel %vm655, %v658, %v661
        %v663 = vsel %vm652, nan, %v662
        %v664 = vand.u32 2147483647, %v442
        %vm665 = vcmp.le.f32.partialorder %v664, 0.7853982
        %vm666 = vcmp.lt.s32.totalorder %v442, 0
        %v667 = vand.u32 %v442, 2139095040
        %v668 = vshrl.u32 %v667, 23
        %v669 = vsub.s32 %v668, 127
        %v670 = vand.u32 2147483647, %v442
        %v671 = vand.u32 %v670, 8388607
        %v672 = vor.u32 %v671, 8388608
        %v673 = vsub.s32 0, %v672
        %v674 = vadd.s32 %v669, 1
        %vm675 = vcmp.gt.s32.totalorder %v674, 0
        %v676 = vsel %vm675, %v674, 0
        %v677 = vshrl.u32 %v676, 5
        %v678 = vand.u32 %v676, 31
        %v679 = vsub.s32 32, %v678
        %v680 = vshrl.u32 683565275, %v679
        %v681 = vshll.u32 683565275, %v678
        %v682 = vshrl.u32 2475754826, %v679
        %v683 = vor.u32 %v681, %v682
        %v684 = vshll.u32 2475754826, %v678
        %v685 = vshrl.u32 2131351028, %v679
        %v686 = vor.u32 %v684, %v685
        %v687 = vshll.u32 2131351028, %v678
        %v688 = vshrl.u32 2102212464, %v679
        %v689 = vor.u32 %v687, %v688
        %v690 = vshll.u32 2102212464, %v678
        %v691 = vshrl.u32 920167782, %v679
        %v692 = vor.u32 %v690, %v691
        %v693 = vshll.u32 920167782, %v678
        %v694 = vshrl.u32 1326507024, %v679
        %v695 = vor.u32 %v693, %v694
        %vm696 = vcmp.lt.s32.totalorder %v677, 1
        %vm697 = vcmp.lt.s32.totalorder %v677, 2
        %vm698 = vcmp.lt.s32.totalorder %v677, 3
        %vm699 = vcmp.lt.s32.totalorder %v677, 4
        %v700 = vsel %vm696, %v680, %v683
        %v701 = vsel %vm699, %v689, 2102212464
        %v702 = vsel %vm698, %v686, %v701
        %v703 = vsel %vm697, %v700, %v702
        %v704 = vsel %vm696, %v683, %v686
        %v705 = vsel %vm699, %v692, 920167782
        %v706 = vsel %vm698, %v689, %v705
        %v707 = vsel %vm697, %v704, %v706
        %v708 = vsel %vm696, %v686, %v689
        %v709 = vsel %vm699, %v695, 1326507024
        %v710 = vsel %vm698, %v692, %v709
        %v711 = vsel %vm697, %v708, %v710
        %v712 = vshll.u32 %v672, 8
        %v713 = vmul.u32.u64.compose %v712, %v711
        %v714 = vextract.low.u32 %v713
        %v715 = vextract.high.u32 %v713
        %v716 = vmul.u32.u64.compose %v712, %v707
        %v717 = vextract.low.u32 %v716
        %v718 = vextract.high.u32 %v716
        %v719 = vmul.u32 %v712, %v703
        %v720 = vadd.s32 %v715, %v717
        %vm721 = vc.u32 %v715, %v717
        %v722 = vadd.s32 %v718, 1
        %v723 = vsel %vm721, %v722, %v718
        %v724 = vadd.s32 %v719, %v723
        %v725 = vadd.s32 %v724, 536870912
        %v726 = vshrl.u32 %v725, 30
        %v727 = vshll.u32 %v726, 30
        %v728 = vsub.s32 %v724, %v727
        %vm729 = vcmp.lt.s32.totalorder %v728, 0
        %v730 = vsub.s32 0, %v728
        %v731 = vsel %vm729, %v730, %v728
        %v732 = vclz %v731
        %v733 = vsub.s32 %v732, 2
        %vm734 = vcmp.gt.s32.totalorder 0, %v733
        %v735 = vsel %vm734, 0, %v733
        %v736 = vsub.s32 32, %v735
        %v737 = vshll.u32 %v728, %v735
        %v738 = vshrl.u32 %v720, %v736
        %v739 = vor.u32 %v737, %v738
        %v740 = vsub.s32 4294967266, %v735
        %v741 = vadd.s32 %v740, 127
        %v742 = vshll.u32 %v741, 23
        %v743 = vor.u32 4788187, %v742
        %v744 = vand.u32 2147483647, %v743
        %v746 = vcvt.s32.f32 %v739
        %v747 = vmul.f32 %v746, %v744
        %v748 = vxor.u32 %v747, 2147483648
        %v749 = vsel %vm666, %v748, %v747
        %v750 = vsub.s32 4, %v726
        %v751 = vsel %vm666, %v750, %v726
        %v752 = vsel %vm665, %v442, %v749
        %v753 = vsel %vm665, 0, %v751
        %v754 = vcosq.f32.pop %v752
        %v755 = vsinq.f32.pop %v752
        %vm756 = vweird.f32 %v442
        %v757 = vadd.s32 %v753, 3
        %v758 = vand.u32 %v757, 3
        %vm759 = vcmp.lt.s32.totalorder %v758, 2
        %vm760 = vcmp.eq.s32.totalorder %v758, 0
        %v761 = vxor.u32 %v755, 2147483648
        %v762 = vsel %vm760, %v754, %v761
        %vm763 = vcmp.eq.s32.totalorder %v758, 2
        %v764 = vxor.u32 %v754, 2147483648
        %v765 = vsel %vm763, %v764, %v755
        %v766 = vsel %vm759, %v762, %v765
        %v767 = vsel %vm756, nan, %v766
        %v768 = vand.u32 2147483647, %v443
        %vm769 = vcmp.le.f32.partialorder %v768, 0.7853982
        %vm770 = vcmp.lt.s32.totalorder %v443, 0
        %v771 = vand.u32 %v443, 2139095040
        %v772 = vshrl.u32 %v771, 23
        %v773 = vsub.s32 %v772, 127
        %v774 = vand.u32 2147483647, %v443
        %v775 = vand.u32 %v774, 8388607
        %v776 = vor.u32 %v775, 8388608
        %v777 = vsub.s32 0, %v776
        %v778 = vadd.s32 %v773, 1
        %vm779 = vcmp.gt.s32.totalorder %v778, 0
        %v780 = vsel %vm779, %v778, 0
        %v781 = vshrl.u32 %v780, 5
        %v782 = vand.u32 %v780, 31
        %v783 = vsub.s32 32, %v782
        %v784 = vshrl.u32 683565275, %v783
        %v785 = vshll.u32 683565275, %v782
        %v786 = vshrl.u32 2475754826, %v783
        %v787 = vor.u32 %v785, %v786
        %v788 = vshll.u32 2475754826, %v782
        %v789 = vshrl.u32 2131351028, %v783
        %v790 = vor.u32 %v788, %v789
        %v791 = vshll.u32 2131351028, %v782
        %v792 = vshrl.u32 2102212464, %v783
        %v793 = vor.u32 %v791, %v792
        %v794 = vshll.u32 2102212464, %v782
        %v795 = vshrl.u32 920167782, %v783
        %v796 = vor.u32 %v794, %v795
        %v797 = vshll.u32 920167782, %v782
        %v798 = vshrl.u32 1326507024, %v783
        %v799 = vor.u32 %v797, %v798
        %vm800 = vcmp.lt.s32.totalorder %v781, 1
        %vm801 = vcmp.lt.s32.totalorder %v781, 2
        %vm802 = vcmp.lt.s32.totalorder %v781, 3
        %vm803 = vcmp.lt.s32.totalorder %v781, 4
        %v804 = vsel %vm800, %v784, %v787
        %v805 = vsel %vm803, %v793, 2102212464
        %v806 = vsel %vm802, %v790, %v805
        %v807 = vsel %vm801, %v804, %v806
        %v808 = vsel %vm800, %v787, %v790
        %v809 = vsel %vm803, %v796, 920167782
        %v810 = vsel %vm802, %v793, %v809
        %v811 = vsel %vm801, %v808, %v810
        %v812 = vsel %vm800, %v790, %v793
        %v813 = vsel %vm803, %v799, 1326507024
        %v814 = vsel %vm802, %v796, %v813
        %v815 = vsel %vm801, %v812, %v814
        %v816 = vshll.u32 %v776, 8
        %v817 = vmul.u32.u64.compose %v816, %v815
        %v818 = vextract.low.u32 %v817
        %v819 = vextract.high.u32 %v817
        %v820 = vmul.u32.u64.compose %v816, %v811
        %v821 = vextract.low.u32 %v820
        %v822 = vextract.high.u32 %v820
        %v823 = vmul.u32 %v816, %v807
        %v824 = vadd.s32 %v819, %v821
        %vm825 = vc.u32 %v819, %v821
        %v826 = vadd.s32 %v822, 1
        %v827 = vsel %vm825, %v826, %v822
        %v828 = vadd.s32 %v823, %v827
        %v829 = vadd.s32 %v828, 536870912
        %v830 = vshrl.u32 %v829, 30
        %v831 = vshll.u32 %v830, 30
        %v832 = vsub.s32 %v828, %v831
        %vm833 = vcmp.lt.s32.totalorder %v832, 0
        %v834 = vsub.s32 0, %v832
        %v835 = vsel %vm833, %v834, %v832
        %v836 = vclz %v835
        %v837 = vsub.s32 %v836, 2
        %vm838 = vcmp.gt.s32.totalorder 0, %v837
        %v839 = vsel %vm838, 0, %v837
        %v840 = vsub.s32 32, %v839
        %v841 = vshll.u32 %v832, %v839
        %v842 = vshrl.u32 %v824, %v840
        %v843 = vor.u32 %v841, %v842
        %v844 = vsub.s32 4294967266, %v839
        %v845 = vadd.s32 %v844, 127
        %v846 = vshll.u32 %v845, 23
        %v847 = vor.u32 4788187, %v846
        %v848 = vand.u32 2147483647, %v847
        %v850 = vcvt.s32.f32 %v843
        %v851 = vmul.f32 %v850, %v848
        %v852 = vxor.u32 %v851, 2147483648
        %v853 = vsel %vm770, %v852, %v851
        %v854 = vsub.s32 4, %v830
        %v855 = vsel %vm770, %v854, %v830
        %v856 = vsel %vm769, %v443, %v853
        %v857 = vsel %vm769, 0, %v855
        %v858 = vcosq.f32.pop %v856
        %v859 = vsinq.f32.pop %v856
        %vm860 = vweird.f32 %v443
        %v861 = vadd.s32 %v857, 3
        %v862 = vand.u32 %v861, 3
        %vm863 = vcmp.lt.s32.totalorder %v862, 2
        %vm864 = vcmp.eq.s32.totalorder %v862, 0
        %v865 = vxor.u32 %v859, 2147483648
        %v866 = vsel %vm864, %v858, %v865
        %vm867 = vcmp.eq.s32.totalorder %v862, 2
        %v868 = vxor.u32 %v858, 2147483648
        %v869 = vsel %vm867, %v868, %v859
        %v870 = vsel %vm863, %v866, %v869
        %v871 = vsel %vm860, nan, %v870
        %v872 = vand.u32 2147483647, %v444
        %vm873 = vcmp.le.f32.partialorder %v872, 0.7853982
        %vm874 = vcmp.lt.s32.totalorder %v444, 0
        %v875 = vand.u32 %v444, 2139095040
        %v876 = vshrl.u32 %v875, 23
        %v877 = vsub.s32 %v876, 127
        %v878 = vand.u32 2147483647, %v444
        %v879 = vand.u32 %v878, 8388607
        %v880 = vor.u32 %v879, 8388608
        %v881 = vsub.s32 0, %v880
        %v882 = vadd.s32 %v877, 1
        %vm883 = vcmp.gt.s32.totalorder %v882, 0
        %v884 = vsel %vm883, %v882, 0
        %v885 = vshrl.u32 %v884, 5
        %v886 = vand.u32 %v884, 31
        %v887 = vsub.s32 32, %v886
        %v888 = vshrl.u32 683565275, %v887
        %v889 = vshll.u32 683565275, %v886
        %v890 = vshrl.u32 2475754826, %v887
        %v891 = vor.u32 %v889, %v890
        %v892 = vshll.u32 2475754826, %v886
        %v893 = vshrl.u32 2131351028, %v887
        %v894 = vor.u32 %v892, %v893
        %v895 = vshll.u32 2131351028, %v886
        %v896 = vshrl.u32 2102212464, %v887
        %v897 = vor.u32 %v895, %v896
        %v898 = vshll.u32 2102212464, %v886
        %v899 = vshrl.u32 920167782, %v887
        %v900 = vor.u32 %v898, %v899
        %v901 = vshll.u32 920167782, %v886
        %v902 = vshrl.u32 1326507024, %v887
        %v903 = vor.u32 %v901, %v902
        %vm904 = vcmp.lt.s32.totalorder %v885, 1
        %vm905 = vcmp.lt.s32.totalorder %v885, 2
        %vm906 = vcmp.lt.s32.totalorder %v885, 3
        %vm907 = vcmp.lt.s32.totalorder %v885, 4
        %v908 = vsel %vm904, %v888, %v891
        %v909 = vsel %vm907, %v897, 2102212464
        %v910 = vsel %vm906, %v894, %v909
        %v911 = vsel %vm905, %v908, %v910
        %v912 = vsel %vm904, %v891, %v894
        %v913 = vsel %vm907, %v900, 920167782
        %v914 = vsel %vm906, %v897, %v913
        %v915 = vsel %vm905, %v912, %v914
        %v916 = vsel %vm904, %v894, %v897
        %v917 = vsel %vm907, %v903, 1326507024
        %v918 = vsel %vm906, %v900, %v917
        %v919 = vsel %vm905, %v916, %v918
        %v920 = vshll.u32 %v880, 8
        %v921 = vmul.u32.u64.compose %v920, %v919
        %v922 = vextract.low.u32 %v921
        %v923 = vextract.high.u32 %v921
        %v924 = vmul.u32.u64.compose %v920, %v915
        %v925 = vextract.low.u32 %v924
        %v926 = vextract.high.u32 %v924
        %v927 = vmul.u32 %v920, %v911
        %v928 = vadd.s32 %v923, %v925
        %vm929 = vc.u32 %v923, %v925
        %v930 = vadd.s32 %v926, 1
        %v931 = vsel %vm929, %v930, %v926
        %v932 = vadd.s32 %v927, %v931
        %v933 = vadd.s32 %v932, 536870912
        %v934 = vshrl.u32 %v933, 30
        %v935 = vshll.u32 %v934, 30
        %v936 = vsub.s32 %v932, %v935
        %vm937 = vcmp.lt.s32.totalorder %v936, 0
        %v938 = vsub.s32 0, %v936
        %v939 = vsel %vm937, %v938, %v936
        %v940 = vclz %v939
        %v941 = vsub.s32 %v940, 2
        %vm942 = vcmp.gt.s32.totalorder 0, %v941
        %v943 = vsel %vm942, 0, %v941
        %v944 = vsub.s32 32, %v943
        %v945 = vshll.u32 %v936, %v943
        %v946 = vshrl.u32 %v928, %v944
        %v947 = vor.u32 %v945, %v946
        %v948 = vsub.s32 4294967266, %v943
        %v949 = vadd.s32 %v948, 127
        %v950 = vshll.u32 %v949, 23
        %v951 = vor.u32 4788187, %v950
        %v952 = vand.u32 2147483647, %v951
        %v954 = vcvt.s32.f32 %v947
        %v955 = vmul.f32 %v954, %v952
        %v956 = vxor.u32 %v955, 2147483648
        %v957 = vsel %vm874, %v956, %v955
        %v958 = vsub.s32 4, %v934
        %v959 = vsel %vm874, %v958, %v934
        %v960 = vsel %vm873, %v444, %v957
        %v961 = vsel %vm873, 0, %v959
        %v962 = vcosq.f32.pop %v960
        %v963 = vsinq.f32.pop %v960
        %vm964 = vweird.f32 %v444
        %v965 = vadd.s32 %v961, 3
        %v966 = vand.u32 %v965, 3
        %vm967 = vcmp.lt.s32.totalorder %v966, 2
        %vm968 = vcmp.eq.s32.totalorder %v966, 0
        %v969 = vxor.u32 %v963, 2147483648
        %v970 = vsel %vm968, %v962, %v969
        %vm971 = vcmp.eq.s32.totalorder %v966, 2
        %v972 = vxor.u32 %v962, 2147483648
        %v973 = vsel %vm971, %v972, %v963
        %v974 = vsel %vm967, %v970, %v973
        %v975 = vsel %vm964, nan, %v974
        %v976 = vand.u32 2147483647, %v445
        %vm977 = vcmp.le.f32.partialorder %v976, 0.7853982
        %vm978 = vcmp.lt.s32.totalorder %v445, 0
        %v979 = vand.u32 %v445, 2139095040
        %v980 = vshrl.u32 %v979, 23
        %v981 = vsub.s32 %v980, 127
        %v982 = vand.u32 2147483647, %v445
        %v983 = vand.u32 %v982, 8388607
        %v984 = vor.u32 %v983, 8388608
        %v985 = vsub.s32 0, %v984
        %v986 = vadd.s32 %v981, 1
        %vm987 = vcmp.gt.s32.totalorder %v986, 0
        %v988 = vsel %vm987, %v986, 0
        %v989 = vshrl.u32 %v988, 5
        %v990 = vand.u32 %v988, 31
        %v991 = vsub.s32 32, %v990
        %v992 = vshrl.u32 683565275, %v991
        %v993 = vshll.u32 683565275, %v990
        %v994 = vshrl.u32 2475754826, %v991
        %v995 = vor.u32 %v993, %v994
        %v996 = vshll.u32 2475754826, %v990
        %v997 = vshrl.u32 2131351028, %v991
        %v998 = vor.u32 %v996, %v997
        %v999 = vshll.u32 2131351028, %v990
        %v1000 = vshrl.u32 2102212464, %v991
        %v1001 = vor.u32 %v999, %v1000
        %v1002 = vshll.u32 2102212464, %v990
        %v1003 = vshrl.u32 920167782, %v991
        %v1004 = vor.u32 %v1002, %v1003
        %v1005 = vshll.u32 920167782, %v990
        %v1006 = vshrl.u32 1326507024, %v991
        %v1007 = vor.u32 %v1005, %v1006
        %vm1008 = vcmp.lt.s32.totalorder %v989, 1
        %vm1009 = vcmp.lt.s32.totalorder %v989, 2
        %vm1010 = vcmp.lt.s32.totalorder %v989, 3
        %vm1011 = vcmp.lt.s32.totalorder %v989, 4
        %v1012 = vsel %vm1008, %v992, %v995
        %v1013 = vsel %vm1011, %v1001, 2102212464
        %v1014 = vsel %vm1010, %v998, %v1013
        %v1015 = vsel %vm1009, %v1012, %v1014
        %v1016 = vsel %vm1008, %v995, %v998
        %v1017 = vsel %vm1011, %v1004, 920167782
        %v1018 = vsel %vm1010, %v1001, %v1017
        %v1019 = vsel %vm1009, %v1016, %v1018
        %v1020 = vsel %vm1008, %v998, %v1001
        %v1021 = vsel %vm1011, %v1007, 1326507024
        %v1022 = vsel %vm1010, %v1004, %v1021
        %v1023 = vsel %vm1009, %v1020, %v1022
        %v1024 = vshll.u32 %v984, 8
        %v1025 = vmul.u32.u64.compose %v1024, %v1023
        %v1026 = vextract.low.u32 %v1025
        %v1027 = vextract.high.u32 %v1025
        %v1028 = vmul.u32.u64.compose %v1024, %v1019
        %v1029 = vextract.low.u32 %v1028
        %v1030 = vextract.high.u32 %v1028
        %v1031 = vmul.u32 %v1024, %v1015
        %v1032 = vadd.s32 %v1027, %v1029
        %vm1033 = vc.u32 %v1027, %v1029
        %v1034 = vadd.s32 %v1030, 1
        %v1035 = vsel %vm1033, %v1034, %v1030
        %v1036 = vadd.s32 %v1031, %v1035
        %v1037 = vadd.s32 %v1036, 536870912
        %v1038 = vshrl.u32 %v1037, 30
        %v1039 = vshll.u32 %v1038, 30
        %v1040 = vsub.s32 %v1036, %v1039
        %vm1041 = vcmp.lt.s32.totalorder %v1040, 0
        %v1042 = vsub.s32 0, %v1040
        %v1043 = vsel %vm1041, %v1042, %v1040
        %v1044 = vclz %v1043
        %v1045 = vsub.s32 %v1044, 2
        %vm1046 = vcmp.gt.s32.totalorder 0, %v1045
        %v1047 = vsel %vm1046, 0, %v1045
        %v1048 = vsub.s32 32, %v1047
        %v1049 = vshll.u32 %v1040, %v1047
        %v1050 = vshrl.u32 %v1032, %v1048
        %v1051 = vor.u32 %v1049, %v1050
        %v1052 = vsub.s32 4294967266, %v1047
        %v1053 = vadd.s32 %v1052, 127
        %v1054 = vshll.u32 %v1053, 23
        %v1055 = vor.u32 4788187, %v1054
        %v1056 = vand.u32 2147483647, %v1055
        %v1058 = vcvt.s32.f32 %v1051
        %v1059 = vmul.f32 %v1058, %v1056
        %v1060 = vxor.u32 %v1059, 2147483648
        %v1061 = vsel %vm978, %v1060, %v1059
        %v1062 = vsub.s32 4, %v1038
        %v1063 = vsel %vm978, %v1062, %v1038
        %v1064 = vsel %vm977, %v445, %v1061
        %v1065 = vsel %vm977, 0, %v1063
        %v1066 = vcosq.f32.pop %v1064
        %v1067 = vsinq.f32.pop %v1064
        %vm1068 = vweird.f32 %v445
        %v1069 = vadd.s32 %v1065, 3
        %v1070 = vand.u32 %v1069, 3
        %vm1071 = vcmp.lt.s32.totalorder %v1070, 2
        %vm1072 = vcmp.eq.s32.totalorder %v1070, 0
        %v1073 = vxor.u32 %v1067, 2147483648
        %v1074 = vsel %vm1072, %v1066, %v1073
        %vm1075 = vcmp.eq.s32.totalorder %v1070, 2
        %v1076 = vxor.u32 %v1066, 2147483648
        %v1077 = vsel %vm1075, %v1076, %v1067
        %v1078 = vsel %vm1071, %v1074, %v1077
        %v1079 = vsel %vm1068, nan, %v1078
        %v1080 = vand.u32 2147483647, %v446
        %vm1081 = vcmp.le.f32.partialorder %v1080, 0.7853982
        %vm1082 = vcmp.lt.s32.totalorder %v446, 0
        %v1083 = vand.u32 %v446, 2139095040
        %v1084 = vshrl.u32 %v1083, 23
        %v1085 = vsub.s32 %v1084, 127
        %v1086 = vand.u32 2147483647, %v446
        %v1087 = vand.u32 %v1086, 8388607
        %v1088 = vor.u32 %v1087, 8388608
        %v1089 = vsub.s32 0, %v1088
        %v1090 = vadd.s32 %v1085, 1
        %vm1091 = vcmp.gt.s32.totalorder %v1090, 0
        %v1092 = vsel %vm1091, %v1090, 0
        %v1093 = vshrl.u32 %v1092, 5
        %v1094 = vand.u32 %v1092, 31
        %v1095 = vsub.s32 32, %v1094
        %v1096 = vshrl.u32 683565275, %v1095
        %v1097 = vshll.u32 683565275, %v1094
        %v1098 = vshrl.u32 2475754826, %v1095
        %v1099 = vor.u32 %v1097, %v1098
        %v1100 = vshll.u32 2475754826, %v1094
        %v1101 = vshrl.u32 2131351028, %v1095
        %v1102 = vor.u32 %v1100, %v1101
        %v1103 = vshll.u32 2131351028, %v1094
        %v1104 = vshrl.u32 2102212464, %v1095
        %v1105 = vor.u32 %v1103, %v1104
        %v1106 = vshll.u32 2102212464, %v1094
        %v1107 = vshrl.u32 920167782, %v1095
        %v1108 = vor.u32 %v1106, %v1107
        %v1109 = vshll.u32 920167782, %v1094
        %v1110 = vshrl.u32 1326507024, %v1095
        %v1111 = vor.u32 %v1109, %v1110
        %vm1112 = vcmp.lt.s32.totalorder %v1093, 1
        %vm1113 = vcmp.lt.s32.totalorder %v1093, 2
        %vm1114 = vcmp.lt.s32.totalorder %v1093, 3
        %vm1115 = vcmp.lt.s32.totalorder %v1093, 4
        %v1116 = vsel %vm1112, %v1096, %v1099
        %v1117 = vsel %vm1115, %v1105, 2102212464
        %v1118 = vsel %vm1114, %v1102, %v1117
        %v1119 = vsel %vm1113, %v1116, %v1118
        %v1120 = vsel %vm1112, %v1099, %v1102
        %v1121 = vsel %vm1115, %v1108, 920167782
        %v1122 = vsel %vm1114, %v1105, %v1121
        %v1123 = vsel %vm1113, %v1120, %v1122
        %v1124 = vsel %vm1112, %v1102, %v1105
        %v1125 = vsel %vm1115, %v1111, 1326507024
        %v1126 = vsel %vm1114, %v1108, %v1125
        %v1127 = vsel %vm1113, %v1124, %v1126
        %v1128 = vshll.u32 %v1088, 8
        %v1129 = vmul.u32.u64.compose %v1128, %v1127
        %v1130 = vextract.low.u32 %v1129
        %v1131 = vextract.high.u32 %v1129
        %v1132 = vmul.u32.u64.compose %v1128, %v1123
        %v1133 = vextract.low.u32 %v1132
        %v1134 = vextract.high.u32 %v1132
        %v1135 = vmul.u32 %v1128, %v1119
        %v1136 = vadd.s32 %v1131, %v1133
        %vm1137 = vc.u32 %v1131, %v1133
        %v1138 = vadd.s32 %v1134, 1
        %v1139 = vsel %vm1137, %v1138, %v1134
        %v1140 = vadd.s32 %v1135, %v1139
        %v1141 = vadd.s32 %v1140, 536870912
        %v1142 = vshrl.u32 %v1141, 30
        %v1143 = vshll.u32 %v1142, 30
        %v1144 = vsub.s32 %v1140, %v1143
        %vm1145 = vcmp.lt.s32.totalorder %v1144, 0
        %v1146 = vsub.s32 0, %v1144
        %v1147 = vsel %vm1145, %v1146, %v1144
        %v1148 = vclz %v1147
        %v1149 = vsub.s32 %v1148, 2
        %vm1150 = vcmp.gt.s32.totalorder 0, %v1149
        %v1151 = vsel %vm1150, 0, %v1149
        %v1152 = vsub.s32 32, %v1151
        %v1153 = vshll.u32 %v1144, %v1151
        %v1154 = vshrl.u32 %v1136, %v1152
        %v1155 = vor.u32 %v1153, %v1154
        %v1156 = vsub.s32 4294967266, %v1151
        %v1157 = vadd.s32 %v1156, 127
        %v1158 = vshll.u32 %v1157, 23
        %v1159 = vor.u32 4788187, %v1158
        %v1160 = vand.u32 2147483647, %v1159
        %v1162 = vcvt.s32.f32 %v1155
        %v1163 = vmul.f32 %v1162, %v1160
        %v1164 = vxor.u32 %v1163, 2147483648
        %v1165 = vsel %vm1082, %v1164, %v1163
        %v1166 = vsub.s32 4, %v1142
        %v1167 = vsel %vm1082, %v1166, %v1142
        %v1168 = vsel %vm1081, %v446, %v1165
        %v1169 = vsel %vm1081, 0, %v1167
        %v1170 = vcosq.f32.pop %v1168
        %v1171 = vsinq.f32.pop %v1168
        %vm1172 = vweird.f32 %v446
        %v1173 = vadd.s32 %v1169, 3
        %v1174 = vand.u32 %v1173, 3
        %vm1175 = vcmp.lt.s32.totalorder %v1174, 2
        %vm1176 = vcmp.eq.s32.totalorder %v1174, 0
        %v1177 = vxor.u32 %v1171, 2147483648
        %v1178 = vsel %vm1176, %v1170, %v1177
        %vm1179 = vcmp.eq.s32.totalorder %v1174, 2
        %v1180 = vxor.u32 %v1170, 2147483648
        %v1181 = vsel %vm1179, %v1180, %v1171
        %v1182 = vsel %vm1175, %v1178, %v1181
        %v1183 = vsel %vm1172, nan, %v1182
        %v1184 = vand.u32 2147483647, %v447
        %vm1185 = vcmp.le.f32.partialorder %v1184, 0.7853982
        %vm1186 = vcmp.lt.s32.totalorder %v447, 0
        %v1187 = vand.u32 %v447, 2139095040
        %v1188 = vshrl.u32 %v1187, 23
        %v1189 = vsub.s32 %v1188, 127
        %v1190 = vand.u32 2147483647, %v447
        %v1191 = vand.u32 %v1190, 8388607
        %v1192 = vor.u32 %v1191, 8388608
        %v1193 = vsub.s32 0, %v1192
        %v1194 = vadd.s32 %v1189, 1
        %vm1195 = vcmp.gt.s32.totalorder %v1194, 0
        %v1196 = vsel %vm1195, %v1194, 0
        %v1197 = vshrl.u32 %v1196, 5
        %v1198 = vand.u32 %v1196, 31
        %v1199 = vsub.s32 32, %v1198
        %v1200 = vshrl.u32 683565275, %v1199
        %v1201 = vshll.u32 683565275, %v1198
        %v1202 = vshrl.u32 2475754826, %v1199
        %v1203 = vor.u32 %v1201, %v1202
        %v1204 = vshll.u32 2475754826, %v1198
        %v1205 = vshrl.u32 2131351028, %v1199
        %v1206 = vor.u32 %v1204, %v1205
        %v1207 = vshll.u32 2131351028, %v1198
        %v1208 = vshrl.u32 2102212464, %v1199
        %v1209 = vor.u32 %v1207, %v1208
        %v1210 = vshll.u32 2102212464, %v1198
        %v1211 = vshrl.u32 920167782, %v1199
        %v1212 = vor.u32 %v1210, %v1211
        %v1213 = vshll.u32 920167782, %v1198
        %v1214 = vshrl.u32 1326507024, %v1199
        %v1215 = vor.u32 %v1213, %v1214
        %vm1216 = vcmp.lt.s32.totalorder %v1197, 1
        %vm1217 = vcmp.lt.s32.totalorder %v1197, 2
        %vm1218 = vcmp.lt.s32.totalorder %v1197, 3
        %vm1219 = vcmp.lt.s32.totalorder %v1197, 4
        %v1220 = vsel %vm1216, %v1200, %v1203
        %v1221 = vsel %vm1219, %v1209, 2102212464
        %v1222 = vsel %vm1218, %v1206, %v1221
        %v1223 = vsel %vm1217, %v1220, %v1222
        %v1224 = vsel %vm1216, %v1203, %v1206
        %v1225 = vsel %vm1219, %v1212, 920167782
        %v1226 = vsel %vm1218, %v1209, %v1225
        %v1227 = vsel %vm1217, %v1224, %v1226
        %v1228 = vsel %vm1216, %v1206, %v1209
        %v1229 = vsel %vm1219, %v1215, 1326507024
        %v1230 = vsel %vm1218, %v1212, %v1229
        %v1231 = vsel %vm1217, %v1228, %v1230
        %v1232 = vshll.u32 %v1192, 8
        %v1233 = vmul.u32.u64.compose %v1232, %v1231
        %v1234 = vextract.low.u32 %v1233
        %v1235 = vextract.high.u32 %v1233
        %v1236 = vmul.u32.u64.compose %v1232, %v1227
        %v1237 = vextract.low.u32 %v1236
        %v1238 = vextract.high.u32 %v1236
        %v1239 = vmul.u32 %v1232, %v1223
        %v1240 = vadd.s32 %v1235, %v1237
        %vm1241 = vc.u32 %v1235, %v1237
        %v1242 = vadd.s32 %v1238, 1
        %v1243 = vsel %vm1241, %v1242, %v1238
        %v1244 = vadd.s32 %v1239, %v1243
        %v1245 = vadd.s32 %v1244, 536870912
        %v1246 = vshrl.u32 %v1245, 30
        %v1247 = vshll.u32 %v1246, 30
        %v1248 = vsub.s32 %v1244, %v1247
        %vm1249 = vcmp.lt.s32.totalorder %v1248, 0
        %v1250 = vsub.s32 0, %v1248
        %v1251 = vsel %vm1249, %v1250, %v1248
        %v1252 = vclz %v1251
        %v1253 = vsub.s32 %v1252, 2
        %vm1254 = vcmp.gt.s32.totalorder 0, %v1253
        %v1255 = vsel %vm1254, 0, %v1253
        %v1256 = vsub.s32 32, %v1255
        %v1257 = vshll.u32 %v1248, %v1255
        %v1258 = vshrl.u32 %v1240, %v1256
        %v1259 = vor.u32 %v1257, %v1258
        %v1260 = vsub.s32 4294967266, %v1255
        %v1261 = vadd.s32 %v1260, 127
        %v1262 = vshll.u32 %v1261, 23
        %v1263 = vor.u32 4788187, %v1262
        %v1264 = vand.u32 2147483647, %v1263
        %v1266 = vcvt.s32.f32 %v1259
        %v1267 = vmul.f32 %v1266, %v1264
        %v1268 = vxor.u32 %v1267, 2147483648
        %v1269 = vsel %vm1186, %v1268, %v1267
        %v1270 = vsub.s32 4, %v1246
        %v1271 = vsel %vm1186, %v1270, %v1246
        %v1272 = vsel %vm1185, %v447, %v1269
        %v1273 = vsel %vm1185, 0, %v1271
        %v1274 = vcosq.f32.pop %v1272
        %v1275 = vsinq.f32.pop %v1272
        %vm1276 = vweird.f32 %v447
        %v1277 = vadd.s32 %v1273, 3
        %v1278 = vand.u32 %v1277, 3
        %vm1279 = vcmp.lt.s32.totalorder %v1278, 2
        %vm1280 = vcmp.eq.s32.totalorder %v1278, 0
        %v1281 = vxor.u32 %v1275, 2147483648
        %v1282 = vsel %vm1280, %v1274, %v1281
        %vm1283 = vcmp.eq.s32.totalorder %v1278, 2
        %v1284 = vxor.u32 %v1274, 2147483648
        %v1285 = vsel %vm1283, %v1284, %v1275
        %v1286 = vsel %vm1279, %v1282, %v1285
        %v1287 = vsel %vm1276, nan, %v1286
        %v1288 = vand.u32 2147483647, %v448
        %vm1289 = vcmp.le.f32.partialorder %v1288, 0.7853982
        %vm1290 = vcmp.lt.s32.totalorder %v448, 0
        %v1291 = vand.u32 %v448, 2139095040
        %v1292 = vshrl.u32 %v1291, 23
        %v1293 = vsub.s32 %v1292, 127
        %v1294 = vand.u32 2147483647, %v448
        %v1295 = vand.u32 %v1294, 8388607
        %v1296 = vor.u32 %v1295, 8388608
        %v1297 = vsub.s32 0, %v1296
        %v1298 = vadd.s32 %v1293, 1
        %vm1299 = vcmp.gt.s32.totalorder %v1298, 0
        %v1300 = vsel %vm1299, %v1298, 0
        %v1301 = vshrl.u32 %v1300, 5
        %v1302 = vand.u32 %v1300, 31
        %v1303 = vsub.s32 32, %v1302
        %v1304 = vshrl.u32 683565275, %v1303
        %v1305 = vshll.u32 683565275, %v1302
        %v1306 = vshrl.u32 2475754826, %v1303
        %v1307 = vor.u32 %v1305, %v1306
        %v1308 = vshll.u32 2475754826, %v1302
        %v1309 = vshrl.u32 2131351028, %v1303
        %v1310 = vor.u32 %v1308, %v1309
        %v1311 = vshll.u32 2131351028, %v1302
        %v1312 = vshrl.u32 2102212464, %v1303
        %v1313 = vor.u32 %v1311, %v1312
        %v1314 = vshll.u32 2102212464, %v1302
        %v1315 = vshrl.u32 920167782, %v1303
        %v1316 = vor.u32 %v1314, %v1315
        %v1317 = vshll.u32 920167782, %v1302
        %v1318 = vshrl.u32 1326507024, %v1303
        %v1319 = vor.u32 %v1317, %v1318
        %vm1320 = vcmp.lt.s32.totalorder %v1301, 1
        %vm1321 = vcmp.lt.s32.totalorder %v1301, 2
        %vm1322 = vcmp.lt.s32.totalorder %v1301, 3
        %vm1323 = vcmp.lt.s32.totalorder %v1301, 4
        %v1324 = vsel %vm1320, %v1304, %v1307
        %v1325 = vsel %vm1323, %v1313, 2102212464
        %v1326 = vsel %vm1322, %v1310, %v1325
        %v1327 = vsel %vm1321, %v1324, %v1326
        %v1328 = vsel %vm1320, %v1307, %v1310
        %v1329 = vsel %vm1323, %v1316, 920167782
        %v1330 = vsel %vm1322, %v1313, %v1329
        %v1331 = vsel %vm1321, %v1328, %v1330
        %v1332 = vsel %vm1320, %v1310, %v1313
        %v1333 = vsel %vm1323, %v1319, 1326507024
        %v1334 = vsel %vm1322, %v1316, %v1333
        %v1335 = vsel %vm1321, %v1332, %v1334
        %v1336 = vshll.u32 %v1296, 8
        %v1337 = vmul.u32.u64.compose %v1336, %v1335
        %v1338 = vextract.low.u32 %v1337
        %v1339 = vextract.high.u32 %v1337
        %v1340 = vmul.u32.u64.compose %v1336, %v1331
        %v1341 = vextract.low.u32 %v1340
        %v1342 = vextract.high.u32 %v1340
        %v1343 = vmul.u32 %v1336, %v1327
        %v1344 = vadd.s32 %v1339, %v1341
        %vm1345 = vc.u32 %v1339, %v1341
        %v1346 = vadd.s32 %v1342, 1
        %v1347 = vsel %vm1345, %v1346, %v1342
        %v1348 = vadd.s32 %v1343, %v1347
        %v1349 = vadd.s32 %v1348, 536870912
        %v1350 = vshrl.u32 %v1349, 30
        %v1351 = vshll.u32 %v1350, 30
        %v1352 = vsub.s32 %v1348, %v1351
        %vm1353 = vcmp.lt.s32.totalorder %v1352, 0
        %v1354 = vsub.s32 0, %v1352
        %v1355 = vsel %vm1353, %v1354, %v1352
        %v1356 = vclz %v1355
        %v1357 = vsub.s32 %v1356, 2
        %vm1358 = vcmp.gt.s32.totalorder 0, %v1357
        %v1359 = vsel %vm1358, 0, %v1357
        %v1360 = vsub.s32 32, %v1359
        %v1361 = vshll.u32 %v1352, %v1359
        %v1362 = vshrl.u32 %v1344, %v1360
        %v1363 = vor.u32 %v1361, %v1362
        %v1364 = vsub.s32 4294967266, %v1359
        %v1365 = vadd.s32 %v1364, 127
        %v1366 = vshll.u32 %v1365, 23
        %v1367 = vor.u32 4788187, %v1366
        %v1368 = vand.u32 2147483647, %v1367
        %v1370 = vcvt.s32.f32 %v1363
        %v1371 = vmul.f32 %v1370, %v1368
        %v1372 = vxor.u32 %v1371, 2147483648
        %v1373 = vsel %vm1290, %v1372, %v1371
        %v1374 = vsub.s32 4, %v1350
        %v1375 = vsel %vm1290, %v1374, %v1350
        %v1376 = vsel %vm1289, %v448, %v1373
        %v1377 = vsel %vm1289, 0, %v1375
        %v1378 = vcosq.f32.pop %v1376
        %v1379 = vsinq.f32.pop %v1376
        %vm1380 = vweird.f32 %v448
        %v1381 = vadd.s32 %v1377, 3
        %v1382 = vand.u32 %v1381, 3
        %vm1383 = vcmp.lt.s32.totalorder %v1382, 2
        %vm1384 = vcmp.eq.s32.totalorder %v1382, 0
        %v1385 = vxor.u32 %v1379, 2147483648
        %v1386 = vsel %vm1384, %v1378, %v1385
        %vm1387 = vcmp.eq.s32.totalorder %v1382, 2
        %v1388 = vxor.u32 %v1378, 2147483648
        %v1389 = vsel %vm1387, %v1388, %v1379
        %v1390 = vsel %vm1383, %v1386, %v1389
        %v1391 = vsel %vm1380, nan, %v1390
        %v1392 = vand.u32 2147483647, %v449
        %vm1393 = vcmp.le.f32.partialorder %v1392, 0.7853982
        %vm1394 = vcmp.lt.s32.totalorder %v449, 0
        %v1395 = vand.u32 %v449, 2139095040
        %v1396 = vshrl.u32 %v1395, 23
        %v1397 = vsub.s32 %v1396, 127
        %v1398 = vand.u32 2147483647, %v449
        %v1399 = vand.u32 %v1398, 8388607
        %v1400 = vor.u32 %v1399, 8388608
        %v1401 = vsub.s32 0, %v1400
        %v1402 = vadd.s32 %v1397, 1
        %vm1403 = vcmp.gt.s32.totalorder %v1402, 0
        %v1404 = vsel %vm1403, %v1402, 0
        %v1405 = vshrl.u32 %v1404, 5
        %v1406 = vand.u32 %v1404, 31
        %v1407 = vsub.s32 32, %v1406
        %v1408 = vshrl.u32 683565275, %v1407
        %v1409 = vshll.u32 683565275, %v1406
        %v1410 = vshrl.u32 2475754826, %v1407
        %v1411 = vor.u32 %v1409, %v1410
        %v1412 = vshll.u32 2475754826, %v1406
        %v1413 = vshrl.u32 2131351028, %v1407
        %v1414 = vor.u32 %v1412, %v1413
        %v1415 = vshll.u32 2131351028, %v1406
        %v1416 = vshrl.u32 2102212464, %v1407
        %v1417 = vor.u32 %v1415, %v1416
        %v1418 = vshll.u32 2102212464, %v1406
        %v1419 = vshrl.u32 920167782, %v1407
        %v1420 = vor.u32 %v1418, %v1419
        %v1421 = vshll.u32 920167782, %v1406
        %v1422 = vshrl.u32 1326507024, %v1407
        %v1423 = vor.u32 %v1421, %v1422
        %vm1424 = vcmp.lt.s32.totalorder %v1405, 1
        %vm1425 = vcmp.lt.s32.totalorder %v1405, 2
        %vm1426 = vcmp.lt.s32.totalorder %v1405, 3
        %vm1427 = vcmp.lt.s32.totalorder %v1405, 4
        %v1428 = vsel %vm1424, %v1408, %v1411
        %v1429 = vsel %vm1427, %v1417, 2102212464
        %v1430 = vsel %vm1426, %v1414, %v1429
        %v1431 = vsel %vm1425, %v1428, %v1430
        %v1432 = vsel %vm1424, %v1411, %v1414
        %v1433 = vsel %vm1427, %v1420, 920167782
        %v1434 = vsel %vm1426, %v1417, %v1433
        %v1435 = vsel %vm1425, %v1432, %v1434
        %v1436 = vsel %vm1424, %v1414, %v1417
        %v1437 = vsel %vm1427, %v1423, 1326507024
        %v1438 = vsel %vm1426, %v1420, %v1437
        %v1439 = vsel %vm1425, %v1436, %v1438
        %v1440 = vshll.u32 %v1400, 8
        %v1441 = vmul.u32.u64.compose %v1440, %v1439
        %v1442 = vextract.low.u32 %v1441
        %v1443 = vextract.high.u32 %v1441
        %v1444 = vmul.u32.u64.compose %v1440, %v1435
        %v1445 = vextract.low.u32 %v1444
        %v1446 = vextract.high.u32 %v1444
        %v1447 = vmul.u32 %v1440, %v1431
        %v1448 = vadd.s32 %v1443, %v1445
        %vm1449 = vc.u32 %v1443, %v1445
        %v1450 = vadd.s32 %v1446, 1
        %v1451 = vsel %vm1449, %v1450, %v1446
        %v1452 = vadd.s32 %v1447, %v1451
        %v1453 = vadd.s32 %v1452, 536870912
        %v1454 = vshrl.u32 %v1453, 30
        %v1455 = vshll.u32 %v1454, 30
        %v1456 = vsub.s32 %v1452, %v1455
        %vm1457 = vcmp.lt.s32.totalorder %v1456, 0
        %v1458 = vsub.s32 0, %v1456
        %v1459 = vsel %vm1457, %v1458, %v1456
        %v1460 = vclz %v1459
        %v1461 = vsub.s32 %v1460, 2
        %vm1462 = vcmp.gt.s32.totalorder 0, %v1461
        %v1463 = vsel %vm1462, 0, %v1461
        %v1464 = vsub.s32 32, %v1463
        %v1465 = vshll.u32 %v1456, %v1463
        %v1466 = vshrl.u32 %v1448, %v1464
        %v1467 = vor.u32 %v1465, %v1466
        %v1468 = vsub.s32 4294967266, %v1463
        %v1469 = vadd.s32 %v1468, 127
        %v1470 = vshll.u32 %v1469, 23
        %v1471 = vor.u32 4788187, %v1470
        %v1472 = vand.u32 2147483647, %v1471
        %v1474 = vcvt.s32.f32 %v1467
        %v1475 = vmul.f32 %v1474, %v1472
        %v1476 = vxor.u32 %v1475, 2147483648
        %v1477 = vsel %vm1394, %v1476, %v1475
        %v1478 = vsub.s32 4, %v1454
        %v1479 = vsel %vm1394, %v1478, %v1454
        %v1480 = vsel %vm1393, %v449, %v1477
        %v1481 = vsel %vm1393, 0, %v1479
        %v1482 = vcosq.f32.pop %v1480
        %v1483 = vsinq.f32.pop %v1480
        %vm1484 = vweird.f32 %v449
        %v1485 = vadd.s32 %v1481, 3
        %v1486 = vand.u32 %v1485, 3
        %vm1487 = vcmp.lt.s32.totalorder %v1486, 2
        %vm1488 = vcmp.eq.s32.totalorder %v1486, 0
        %v1489 = vxor.u32 %v1483, 2147483648
        %v1490 = vsel %vm1488, %v1482, %v1489
        %vm1491 = vcmp.eq.s32.totalorder %v1486, 2
        %v1492 = vxor.u32 %v1482, 2147483648
        %v1493 = vsel %vm1491, %v1492, %v1483
        %v1494 = vsel %vm1487, %v1490, %v1493
        %v1495 = vsel %vm1484, nan, %v1494
        %v1496 = vand.u32 2147483647, %v450
        %vm1497 = vcmp.le.f32.partialorder %v1496, 0.7853982
        %vm1498 = vcmp.lt.s32.totalorder %v450, 0
        %v1499 = vand.u32 %v450, 2139095040
        %v1500 = vshrl.u32 %v1499, 23
        %v1501 = vsub.s32 %v1500, 127
        %v1502 = vand.u32 2147483647, %v450
        %v1503 = vand.u32 %v1502, 8388607
        %v1504 = vor.u32 %v1503, 8388608
        %v1505 = vsub.s32 0, %v1504
        %v1506 = vadd.s32 %v1501, 1
        %vm1507 = vcmp.gt.s32.totalorder %v1506, 0
        %v1508 = vsel %vm1507, %v1506, 0
        %v1509 = vshrl.u32 %v1508, 5
        %v1510 = vand.u32 %v1508, 31
        %v1511 = vsub.s32 32, %v1510
        %v1512 = vshrl.u32 683565275, %v1511
        %v1513 = vshll.u32 683565275, %v1510
        %v1514 = vshrl.u32 2475754826, %v1511
        %v1515 = vor.u32 %v1513, %v1514
        %v1516 = vshll.u32 2475754826, %v1510
        %v1517 = vshrl.u32 2131351028, %v1511
        %v1518 = vor.u32 %v1516, %v1517
        %v1519 = vshll.u32 2131351028, %v1510
        %v1520 = vshrl.u32 2102212464, %v1511
        %v1521 = vor.u32 %v1519, %v1520
        %v1522 = vshll.u32 2102212464, %v1510
        %v1523 = vshrl.u32 920167782, %v1511
        %v1524 = vor.u32 %v1522, %v1523
        %v1525 = vshll.u32 920167782, %v1510
        %v1526 = vshrl.u32 1326507024, %v1511
        %v1527 = vor.u32 %v1525, %v1526
        %vm1528 = vcmp.lt.s32.totalorder %v1509, 1
        %vm1529 = vcmp.lt.s32.totalorder %v1509, 2
        %vm1530 = vcmp.lt.s32.totalorder %v1509, 3
        %vm1531 = vcmp.lt.s32.totalorder %v1509, 4
        %v1532 = vsel %vm1528, %v1512, %v1515
        %v1533 = vsel %vm1531, %v1521, 2102212464
        %v1534 = vsel %vm1530, %v1518, %v1533
        %v1535 = vsel %vm1529, %v1532, %v1534
        %v1536 = vsel %vm1528, %v1515, %v1518
        %v1537 = vsel %vm1531, %v1524, 920167782
        %v1538 = vsel %vm1530, %v1521, %v1537
        %v1539 = vsel %vm1529, %v1536, %v1538
        %v1540 = vsel %vm1528, %v1518, %v1521
        %v1541 = vsel %vm1531, %v1527, 1326507024
        %v1542 = vsel %vm1530, %v1524, %v1541
        %v1543 = vsel %vm1529, %v1540, %v1542
        %v1544 = vshll.u32 %v1504, 8
        %v1545 = vmul.u32.u64.compose %v1544, %v1543
        %v1546 = vextract.low.u32 %v1545
        %v1547 = vextract.high.u32 %v1545
        %v1548 = vmul.u32.u64.compose %v1544, %v1539
        %v1549 = vextract.low.u32 %v1548
        %v1550 = vextract.high.u32 %v1548
        %v1551 = vmul.u32 %v1544, %v1535
        %v1552 = vadd.s32 %v1547, %v1549
        %vm1553 = vc.u32 %v1547, %v1549
        %v1554 = vadd.s32 %v1550, 1
        %v1555 = vsel %vm1553, %v1554, %v1550
        %v1556 = vadd.s32 %v1551, %v1555
        %v1557 = vadd.s32 %v1556, 536870912
        %v1558 = vshrl.u32 %v1557, 30
        %v1559 = vshll.u32 %v1558, 30
        %v1560 = vsub.s32 %v1556, %v1559
        %vm1561 = vcmp.lt.s32.totalorder %v1560, 0
        %v1562 = vsub.s32 0, %v1560
        %v1563 = vsel %vm1561, %v1562, %v1560
        %v1564 = vclz %v1563
        %v1565 = vsub.s32 %v1564, 2
        %vm1566 = vcmp.gt.s32.totalorder 0, %v1565
        %v1567 = vsel %vm1566, 0, %v1565
        %v1568 = vsub.s32 32, %v1567
        %v1569 = vshll.u32 %v1560, %v1567
        %v1570 = vshrl.u32 %v1552, %v1568
        %v1571 = vor.u32 %v1569, %v1570
        %v1572 = vsub.s32 4294967266, %v1567
        %v1573 = vadd.s32 %v1572, 127
        %v1574 = vshll.u32 %v1573, 23
        %v1575 = vor.u32 4788187, %v1574
        %v1576 = vand.u32 2147483647, %v1575
        %v1578 = vcvt.s32.f32 %v1571
        %v1579 = vmul.f32 %v1578, %v1576
        %v1580 = vxor.u32 %v1579, 2147483648
        %v1581 = vsel %vm1498, %v1580, %v1579
        %v1582 = vsub.s32 4, %v1558
        %v1583 = vsel %vm1498, %v1582, %v1558
        %v1584 = vsel %vm1497, %v450, %v1581
        %v1585 = vsel %vm1497, 0, %v1583
        %v1586 = vcosq.f32.pop %v1584
        %v1587 = vsinq.f32.pop %v1584
        %vm1588 = vweird.f32 %v450
        %v1589 = vadd.s32 %v1585, 3
        %v1590 = vand.u32 %v1589, 3
        %vm1591 = vcmp.lt.s32.totalorder %v1590, 2
        %vm1592 = vcmp.eq.s32.totalorder %v1590, 0
        %v1593 = vxor.u32 %v1587, 2147483648
        %v1594 = vsel %vm1592, %v1586, %v1593
        %vm1595 = vcmp.eq.s32.totalorder %v1590, 2
        %v1596 = vxor.u32 %v1586, 2147483648
        %v1597 = vsel %vm1595, %v1596, %v1587
        %v1598 = vsel %vm1591, %v1594, %v1597
        %v1599 = vsel %vm1588, nan, %v1598
        %v1600 = vand.u32 2147483647, %v451
        %vm1601 = vcmp.le.f32.partialorder %v1600, 0.7853982
        %vm1602 = vcmp.lt.s32.totalorder %v451, 0
        %v1603 = vand.u32 %v451, 2139095040
        %v1604 = vshrl.u32 %v1603, 23
        %v1605 = vsub.s32 %v1604, 127
        %v1606 = vand.u32 2147483647, %v451
        %v1607 = vand.u32 %v1606, 8388607
        %v1608 = vor.u32 %v1607, 8388608
        %v1609 = vsub.s32 0, %v1608
        %v1610 = vadd.s32 %v1605, 1
        %vm1611 = vcmp.gt.s32.totalorder %v1610, 0
        %v1612 = vsel %vm1611, %v1610, 0
        %v1613 = vshrl.u32 %v1612, 5
        %v1614 = vand.u32 %v1612, 31
        %v1615 = vsub.s32 32, %v1614
        %v1616 = vshrl.u32 683565275, %v1615
        %v1617 = vshll.u32 683565275, %v1614
        %v1618 = vshrl.u32 2475754826, %v1615
        %v1619 = vor.u32 %v1617, %v1618
        %v1620 = vshll.u32 2475754826, %v1614
        %v1621 = vshrl.u32 2131351028, %v1615
        %v1622 = vor.u32 %v1620, %v1621
        %v1623 = vshll.u32 2131351028, %v1614
        %v1624 = vshrl.u32 2102212464, %v1615
        %v1625 = vor.u32 %v1623, %v1624
        %v1626 = vshll.u32 2102212464, %v1614
        %v1627 = vshrl.u32 920167782, %v1615
        %v1628 = vor.u32 %v1626, %v1627
        %v1629 = vshll.u32 920167782, %v1614
        %v1630 = vshrl.u32 1326507024, %v1615
        %v1631 = vor.u32 %v1629, %v1630
        %vm1632 = vcmp.lt.s32.totalorder %v1613, 1
        %vm1633 = vcmp.lt.s32.totalorder %v1613, 2
        %vm1634 = vcmp.lt.s32.totalorder %v1613, 3
        %vm1635 = vcmp.lt.s32.totalorder %v1613, 4
        %v1636 = vsel %vm1632, %v1616, %v1619
        %v1637 = vsel %vm1635, %v1625, 2102212464
        %v1638 = vsel %vm1634, %v1622, %v1637
        %v1639 = vsel %vm1633, %v1636, %v1638
        %v1640 = vsel %vm1632, %v1619, %v1622
        %v1641 = vsel %vm1635, %v1628, 920167782
        %v1642 = vsel %vm1634, %v1625, %v1641
        %v1643 = vsel %vm1633, %v1640, %v1642
        %v1644 = vsel %vm1632, %v1622, %v1625
        %v1645 = vsel %vm1635, %v1631, 1326507024
        %v1646 = vsel %vm1634, %v1628, %v1645
        %v1647 = vsel %vm1633, %v1644, %v1646
        %v1648 = vshll.u32 %v1608, 8
        %v1649 = vmul.u32.u64.compose %v1648, %v1647
        %v1650 = vextract.low.u32 %v1649
        %v1651 = vextract.high.u32 %v1649
        %v1652 = vmul.u32.u64.compose %v1648, %v1643
        %v1653 = vextract.low.u32 %v1652
        %v1654 = vextract.high.u32 %v1652
        %v1655 = vmul.u32 %v1648, %v1639
        %v1656 = vadd.s32 %v1651, %v1653
        %vm1657 = vc.u32 %v1651, %v1653
        %v1658 = vadd.s32 %v1654, 1
        %v1659 = vsel %vm1657, %v1658, %v1654
        %v1660 = vadd.s32 %v1655, %v1659
        %v1661 = vadd.s32 %v1660, 536870912
        %v1662 = vshrl.u32 %v1661, 30
        %v1663 = vshll.u32 %v1662, 30
        %v1664 = vsub.s32 %v1660, %v1663
        %vm1665 = vcmp.lt.s32.totalorder %v1664, 0
        %v1666 = vsub.s32 0, %v1664
        %v1667 = vsel %vm1665, %v1666, %v1664
        %v1668 = vclz %v1667
        %v1669 = vsub.s32 %v1668, 2
        %vm1670 = vcmp.gt.s32.totalorder 0, %v1669
        %v1671 = vsel %vm1670, 0, %v1669
        %v1672 = vsub.s32 32, %v1671
        %v1673 = vshll.u32 %v1664, %v1671
        %v1674 = vshrl.u32 %v1656, %v1672
        %v1675 = vor.u32 %v1673, %v1674
        %v1676 = vsub.s32 4294967266, %v1671
        %v1677 = vadd.s32 %v1676, 127
        %v1678 = vshll.u32 %v1677, 23
        %v1679 = vor.u32 4788187, %v1678
        %v1680 = vand.u32 2147483647, %v1679
        %v1682 = vcvt.s32.f32 %v1675
        %v1683 = vmul.f32 %v1682, %v1680
        %v1684 = vxor.u32 %v1683, 2147483648
        %v1685 = vsel %vm1602, %v1684, %v1683
        %v1686 = vsub.s32 4, %v1662
        %v1687 = vsel %vm1602, %v1686, %v1662
        %v1688 = vsel %vm1601, %v451, %v1685
        %v1689 = vsel %vm1601, 0, %v1687
        %v1690 = vcosq.f32.pop %v1688
        %v1691 = vsinq.f32.pop %v1688
        %vm1692 = vweird.f32 %v451
        %v1693 = vadd.s32 %v1689, 3
        %v1694 = vand.u32 %v1693, 3
        %vm1695 = vcmp.lt.s32.totalorder %v1694, 2
        %vm1696 = vcmp.eq.s32.totalorder %v1694, 0
        %v1697 = vxor.u32 %v1691, 2147483648
        %v1698 = vsel %vm1696, %v1690, %v1697
        %vm1699 = vcmp.eq.s32.totalorder %v1694, 2
        %v1700 = vxor.u32 %v1690, 2147483648
        %v1701 = vsel %vm1699, %v1700, %v1691
        %v1702 = vsel %vm1695, %v1698, %v1701
        %v1703 = vsel %vm1692, nan, %v1702
        %v1704 = vand.u32 2147483647, %v452
        %vm1705 = vcmp.le.f32.partialorder %v1704, 0.7853982
        %vm1706 = vcmp.lt.s32.totalorder %v452, 0
        %v1707 = vand.u32 %v452, 2139095040
        %v1708 = vshrl.u32 %v1707, 23
        %v1709 = vsub.s32 %v1708, 127
        %v1710 = vand.u32 2147483647, %v452
        %v1711 = vand.u32 %v1710, 8388607
        %v1712 = vor.u32 %v1711, 8388608
        %v1713 = vsub.s32 0, %v1712
        %v1714 = vadd.s32 %v1709, 1
        %vm1715 = vcmp.gt.s32.totalorder %v1714, 0
        %v1716 = vsel %vm1715, %v1714, 0
        %v1717 = vshrl.u32 %v1716, 5
        %v1718 = vand.u32 %v1716, 31
        %v1719 = vsub.s32 32, %v1718
        %v1720 = vshrl.u32 683565275, %v1719
        %v1721 = vshll.u32 683565275, %v1718
        %v1722 = vshrl.u32 2475754826, %v1719
        %v1723 = vor.u32 %v1721, %v1722
        %v1724 = vshll.u32 2475754826, %v1718
        %v1725 = vshrl.u32 2131351028, %v1719
        %v1726 = vor.u32 %v1724, %v1725
        %v1727 = vshll.u32 2131351028, %v1718
        %v1728 = vshrl.u32 2102212464, %v1719
        %v1729 = vor.u32 %v1727, %v1728
        %v1730 = vshll.u32 2102212464, %v1718
        %v1731 = vshrl.u32 920167782, %v1719
        %v1732 = vor.u32 %v1730, %v1731
        %v1733 = vshll.u32 920167782, %v1718
        %v1734 = vshrl.u32 1326507024, %v1719
        %v1735 = vor.u32 %v1733, %v1734
        %vm1736 = vcmp.lt.s32.totalorder %v1717, 1
        %vm1737 = vcmp.lt.s32.totalorder %v1717, 2
        %vm1738 = vcmp.lt.s32.totalorder %v1717, 3
        %vm1739 = vcmp.lt.s32.totalorder %v1717, 4
        %v1740 = vsel %vm1736, %v1720, %v1723
        %v1741 = vsel %vm1739, %v1729, 2102212464
        %v1742 = vsel %vm1738, %v1726, %v1741
        %v1743 = vsel %vm1737, %v1740, %v1742
        %v1744 = vsel %vm1736, %v1723, %v1726
        %v1745 = vsel %vm1739, %v1732, 920167782
        %v1746 = vsel %vm1738, %v1729, %v1745
        %v1747 = vsel %vm1737, %v1744, %v1746
        %v1748 = vsel %vm1736, %v1726, %v1729
        %v1749 = vsel %vm1739, %v1735, 1326507024
        %v1750 = vsel %vm1738, %v1732, %v1749
        %v1751 = vsel %vm1737, %v1748, %v1750
        %v1752 = vshll.u32 %v1712, 8
        %v1753 = vmul.u32.u64.compose %v1752, %v1751
        %v1754 = vextract.low.u32 %v1753
        %v1755 = vextract.high.u32 %v1753
        %v1756 = vmul.u32.u64.compose %v1752, %v1747
        %v1757 = vextract.low.u32 %v1756
        %v1758 = vextract.high.u32 %v1756
        %v1759 = vmul.u32 %v1752, %v1743
        %v1760 = vadd.s32 %v1755, %v1757
        %vm1761 = vc.u32 %v1755, %v1757
        %v1762 = vadd.s32 %v1758, 1
        %v1763 = vsel %vm1761, %v1762, %v1758
        %v1764 = vadd.s32 %v1759, %v1763
        %v1765 = vadd.s32 %v1764, 536870912
        %v1766 = vshrl.u32 %v1765, 30
        %v1767 = vshll.u32 %v1766, 30
        %v1768 = vsub.s32 %v1764, %v1767
        %vm1769 = vcmp.lt.s32.totalorder %v1768, 0
        %v1770 = vsub.s32 0, %v1768
        %v1771 = vsel %vm1769, %v1770, %v1768
        %v1772 = vclz %v1771
        %v1773 = vsub.s32 %v1772, 2
        %vm1774 = vcmp.gt.s32.totalorder 0, %v1773
        %v1775 = vsel %vm1774, 0, %v1773
        %v1776 = vsub.s32 32, %v1775
        %v1777 = vshll.u32 %v1768, %v1775
        %v1778 = vshrl.u32 %v1760, %v1776
        %v1779 = vor.u32 %v1777, %v1778
        %v1780 = vsub.s32 4294967266, %v1775
        %v1781 = vadd.s32 %v1780, 127
        %v1782 = vshll.u32 %v1781, 23
        %v1783 = vor.u32 4788187, %v1782
        %v1784 = vand.u32 2147483647, %v1783
        %v1786 = vcvt.s32.f32 %v1779
        %v1787 = vmul.f32 %v1786, %v1784
        %v1788 = vxor.u32 %v1787, 2147483648
        %v1789 = vsel %vm1706, %v1788, %v1787
        %v1790 = vsub.s32 4, %v1766
        %v1791 = vsel %vm1706, %v1790, %v1766
        %v1792 = vsel %vm1705, %v452, %v1789
        %v1793 = vsel %vm1705, 0, %v1791
        %v1794 = vcosq.f32.pop %v1792
        %v1795 = vsinq.f32.pop %v1792
        %vm1796 = vweird.f32 %v452
        %v1797 = vadd.s32 %v1793, 3
        %v1798 = vand.u32 %v1797, 3
        %vm1799 = vcmp.lt.s32.totalorder %v1798, 2
        %vm1800 = vcmp.eq.s32.totalorder %v1798, 0
        %v1801 = vxor.u32 %v1795, 2147483648
        %v1802 = vsel %vm1800, %v1794, %v1801
        %vm1803 = vcmp.eq.s32.totalorder %v1798, 2
        %v1804 = vxor.u32 %v1794, 2147483648
        %v1805 = vsel %vm1803, %v1804, %v1795
        %v1806 = vsel %vm1799, %v1802, %v1805
        %v1807 = vsel %vm1796, nan, %v1806
        %v1808 = vand.u32 2147483647, %v453
        %vm1809 = vcmp.le.f32.partialorder %v1808, 0.7853982
        %vm1810 = vcmp.lt.s32.totalorder %v453, 0
        %v1811 = vand.u32 %v453, 2139095040
        %v1812 = vshrl.u32 %v1811, 23
        %v1813 = vsub.s32 %v1812, 127
        %v1814 = vand.u32 2147483647, %v453
        %v1815 = vand.u32 %v1814, 8388607
        %v1816 = vor.u32 %v1815, 8388608
        %v1817 = vsub.s32 0, %v1816
        %v1818 = vadd.s32 %v1813, 1
        %vm1819 = vcmp.gt.s32.totalorder %v1818, 0
        %v1820 = vsel %vm1819, %v1818, 0
        %v1821 = vshrl.u32 %v1820, 5
        %v1822 = vand.u32 %v1820, 31
        %v1823 = vsub.s32 32, %v1822
        %v1824 = vshrl.u32 683565275, %v1823
        %v1825 = vshll.u32 683565275, %v1822
        %v1826 = vshrl.u32 2475754826, %v1823
        %v1827 = vor.u32 %v1825, %v1826
        %v1828 = vshll.u32 2475754826, %v1822
        %v1829 = vshrl.u32 2131351028, %v1823
        %v1830 = vor.u32 %v1828, %v1829
        %v1831 = vshll.u32 2131351028, %v1822
        %v1832 = vshrl.u32 2102212464, %v1823
        %v1833 = vor.u32 %v1831, %v1832
        %v1834 = vshll.u32 2102212464, %v1822
        %v1835 = vshrl.u32 920167782, %v1823
        %v1836 = vor.u32 %v1834, %v1835
        %v1837 = vshll.u32 920167782, %v1822
        %v1838 = vshrl.u32 1326507024, %v1823
        %v1839 = vor.u32 %v1837, %v1838
        %vm1840 = vcmp.lt.s32.totalorder %v1821, 1
        %vm1841 = vcmp.lt.s32.totalorder %v1821, 2
        %vm1842 = vcmp.lt.s32.totalorder %v1821, 3
        %vm1843 = vcmp.lt.s32.totalorder %v1821, 4
        %v1844 = vsel %vm1840, %v1824, %v1827
        %v1845 = vsel %vm1843, %v1833, 2102212464
        %v1846 = vsel %vm1842, %v1830, %v1845
        %v1847 = vsel %vm1841, %v1844, %v1846
        %v1848 = vsel %vm1840, %v1827, %v1830
        %v1849 = vsel %vm1843, %v1836, 920167782
        %v1850 = vsel %vm1842, %v1833, %v1849
        %v1851 = vsel %vm1841, %v1848, %v1850
        %v1852 = vsel %vm1840, %v1830, %v1833
        %v1853 = vsel %vm1843, %v1839, 1326507024
        %v1854 = vsel %vm1842, %v1836, %v1853
        %v1855 = vsel %vm1841, %v1852, %v1854
        %v1856 = vshll.u32 %v1816, 8
        %v1857 = vmul.u32.u64.compose %v1856, %v1855
        %v1858 = vextract.low.u32 %v1857
        %v1859 = vextract.high.u32 %v1857
        %v1860 = vmul.u32.u64.compose %v1856, %v1851
        %v1861 = vextract.low.u32 %v1860
        %v1862 = vextract.high.u32 %v1860
        %v1863 = vmul.u32 %v1856, %v1847
        %v1864 = vadd.s32 %v1859, %v1861
        %vm1865 = vc.u32 %v1859, %v1861
        %v1866 = vadd.s32 %v1862, 1
        %v1867 = vsel %vm1865, %v1866, %v1862
        %v1868 = vadd.s32 %v1863, %v1867
        %v1869 = vadd.s32 %v1868, 536870912
        %v1870 = vshrl.u32 %v1869, 30
        %v1871 = vshll.u32 %v1870, 30
        %v1872 = vsub.s32 %v1868, %v1871
        %vm1873 = vcmp.lt.s32.totalorder %v1872, 0
        %v1874 = vsub.s32 0, %v1872
        %v1875 = vsel %vm1873, %v1874, %v1872
        %v1876 = vclz %v1875
        %v1877 = vsub.s32 %v1876, 2
        %vm1878 = vcmp.gt.s32.totalorder 0, %v1877
        %v1879 = vsel %vm1878, 0, %v1877
        %v1880 = vsub.s32 32, %v1879
        %v1881 = vshll.u32 %v1872, %v1879
        %v1882 = vshrl.u32 %v1864, %v1880
        %v1883 = vor.u32 %v1881, %v1882
        %v1884 = vsub.s32 4294967266, %v1879
        %v1885 = vadd.s32 %v1884, 127
        %v1886 = vshll.u32 %v1885, 23
        %v1887 = vor.u32 4788187, %v1886
        %v1888 = vand.u32 2147483647, %v1887
        %v1890 = vcvt.s32.f32 %v1883
        %v1891 = vmul.f32 %v1890, %v1888
        %v1892 = vxor.u32 %v1891, 2147483648
        %v1893 = vsel %vm1810, %v1892, %v1891
        %v1894 = vsub.s32 4, %v1870
        %v1895 = vsel %vm1810, %v1894, %v1870
        %v1896 = vsel %vm1809, %v453, %v1893
        %v1897 = vsel %vm1809, 0, %v1895
        %v1898 = vcosq.f32.pop %v1896
        %v1899 = vsinq.f32.pop %v1896
        %vm1900 = vweird.f32 %v453
        %v1901 = vadd.s32 %v1897, 3
        %v1902 = vand.u32 %v1901, 3
        %vm1903 = vcmp.lt.s32.totalorder %v1902, 2
        %vm1904 = vcmp.eq.s32.totalorder %v1902, 0
        %v1905 = vxor.u32 %v1899, 2147483648
        %v1906 = vsel %vm1904, %v1898, %v1905
        %vm1907 = vcmp.eq.s32.totalorder %v1902, 2
        %v1908 = vxor.u32 %v1898, 2147483648
        %v1909 = vsel %vm1907, %v1908, %v1899
        %v1910 = vsel %vm1903, %v1906, %v1909
        %v1911 = vsel %vm1900, nan, %v1910
        %v1912 = vand.u32 2147483647, %v454
        %vm1913 = vcmp.le.f32.partialorder %v1912, 0.7853982
        %vm1914 = vcmp.lt.s32.totalorder %v454, 0
        %v1915 = vand.u32 %v454, 2139095040
        %v1916 = vshrl.u32 %v1915, 23
        %v1917 = vsub.s32 %v1916, 127
        %v1918 = vand.u32 2147483647, %v454
        %v1919 = vand.u32 %v1918, 8388607
        %v1920 = vor.u32 %v1919, 8388608
        %v1921 = vsub.s32 0, %v1920
        %v1922 = vadd.s32 %v1917, 1
        %vm1923 = vcmp.gt.s32.totalorder %v1922, 0
        %v1924 = vsel %vm1923, %v1922, 0
        %v1925 = vshrl.u32 %v1924, 5
        %v1926 = vand.u32 %v1924, 31
        %v1927 = vsub.s32 32, %v1926
        %v1928 = vshrl.u32 683565275, %v1927
        %v1929 = vshll.u32 683565275, %v1926
        %v1930 = vshrl.u32 2475754826, %v1927
        %v1931 = vor.u32 %v1929, %v1930
        %v1932 = vshll.u32 2475754826, %v1926
        %v1933 = vshrl.u32 2131351028, %v1927
        %v1934 = vor.u32 %v1932, %v1933
        %v1935 = vshll.u32 2131351028, %v1926
        %v1936 = vshrl.u32 2102212464, %v1927
        %v1937 = vor.u32 %v1935, %v1936
        %v1938 = vshll.u32 2102212464, %v1926
        %v1939 = vshrl.u32 920167782, %v1927
        %v1940 = vor.u32 %v1938, %v1939
        %v1941 = vshll.u32 920167782, %v1926
        %v1942 = vshrl.u32 1326507024, %v1927
        %v1943 = vor.u32 %v1941, %v1942
        %vm1944 = vcmp.lt.s32.totalorder %v1925, 1
        %vm1945 = vcmp.lt.s32.totalorder %v1925, 2
        %vm1946 = vcmp.lt.s32.totalorder %v1925, 3
        %vm1947 = vcmp.lt.s32.totalorder %v1925, 4
        %v1948 = vsel %vm1944, %v1928, %v1931
        %v1949 = vsel %vm1947, %v1937, 2102212464
        %v1950 = vsel %vm1946, %v1934, %v1949
        %v1951 = vsel %vm1945, %v1948, %v1950
        %v1952 = vsel %vm1944, %v1931, %v1934
        %v1953 = vsel %vm1947, %v1940, 920167782
        %v1954 = vsel %vm1946, %v1937, %v1953
        %v1955 = vsel %vm1945, %v1952, %v1954
        %v1956 = vsel %vm1944, %v1934, %v1937
        %v1957 = vsel %vm1947, %v1943, 1326507024
        %v1958 = vsel %vm1946, %v1940, %v1957
        %v1959 = vsel %vm1945, %v1956, %v1958
        %v1960 = vshll.u32 %v1920, 8
        %v1961 = vmul.u32.u64.compose %v1960, %v1959
        %v1962 = vextract.low.u32 %v1961
        %v1963 = vextract.high.u32 %v1961
        %v1964 = vmul.u32.u64.compose %v1960, %v1955
        %v1965 = vextract.low.u32 %v1964
        %v1966 = vextract.high.u32 %v1964
        %v1967 = vmul.u32 %v1960, %v1951
        %v1968 = vadd.s32 %v1963, %v1965
        %vm1969 = vc.u32 %v1963, %v1965
        %v1970 = vadd.s32 %v1966, 1
        %v1971 = vsel %vm1969, %v1970, %v1966
        %v1972 = vadd.s32 %v1967, %v1971
        %v1973 = vadd.s32 %v1972, 536870912
        %v1974 = vshrl.u32 %v1973, 30
        %v1975 = vshll.u32 %v1974, 30
        %v1976 = vsub.s32 %v1972, %v1975
        %vm1977 = vcmp.lt.s32.totalorder %v1976, 0
        %v1978 = vsub.s32 0, %v1976
        %v1979 = vsel %vm1977, %v1978, %v1976
        %v1980 = vclz %v1979
        %v1981 = vsub.s32 %v1980, 2
        %vm1982 = vcmp.gt.s32.totalorder 0, %v1981
        %v1983 = vsel %vm1982, 0, %v1981
        %v1984 = vsub.s32 32, %v1983
        %v1985 = vshll.u32 %v1976, %v1983
        %v1986 = vshrl.u32 %v1968, %v1984
        %v1987 = vor.u32 %v1985, %v1986
        %v1988 = vsub.s32 4294967266, %v1983
        %v1989 = vadd.s32 %v1988, 127
        %v1990 = vshll.u32 %v1989, 23
        %v1991 = vor.u32 4788187, %v1990
        %v1992 = vand.u32 2147483647, %v1991
        %v1994 = vcvt.s32.f32 %v1987
        %v1995 = vmul.f32 %v1994, %v1992
        %v1996 = vxor.u32 %v1995, 2147483648
        %v1997 = vsel %vm1914, %v1996, %v1995
        %v1998 = vsub.s32 4, %v1974
        %v1999 = vsel %vm1914, %v1998, %v1974
        %v2000 = vsel %vm1913, %v454, %v1997
        %v2001 = vsel %vm1913, 0, %v1999
        %v2002 = vcosq.f32.pop %v2000
        %v2003 = vsinq.f32.pop %v2000
        %vm2004 = vweird.f32 %v454
        %v2005 = vadd.s32 %v2001, 3
        %v2006 = vand.u32 %v2005, 3
        %vm2007 = vcmp.lt.s32.totalorder %v2006, 2
        %vm2008 = vcmp.eq.s32.totalorder %v2006, 0
        %v2009 = vxor.u32 %v2003, 2147483648
        %v2010 = vsel %vm2008, %v2002, %v2009
        %vm2011 = vcmp.eq.s32.totalorder %v2006, 2
        %v2012 = vxor.u32 %v2002, 2147483648
        %v2013 = vsel %vm2011, %v2012, %v2003
        %v2014 = vsel %vm2007, %v2010, %v2013
        %v2015 = vsel %vm2004, nan, %v2014
        %v2016 = vand.u32 2147483647, %v455
        %vm2017 = vcmp.le.f32.partialorder %v2016, 0.7853982
        %vm2018 = vcmp.lt.s32.totalorder %v455, 0
        %v2019 = vand.u32 %v455, 2139095040
        %v2020 = vshrl.u32 %v2019, 23
        %v2021 = vsub.s32 %v2020, 127
        %v2022 = vand.u32 2147483647, %v455
        %v2023 = vand.u32 %v2022, 8388607
        %v2024 = vor.u32 %v2023, 8388608
        %v2025 = vsub.s32 0, %v2024
        %v2026 = vadd.s32 %v2021, 1
        %vm2027 = vcmp.gt.s32.totalorder %v2026, 0
        %v2028 = vsel %vm2027, %v2026, 0
        %v2029 = vshrl.u32 %v2028, 5
        %v2030 = vand.u32 %v2028, 31
        %v2031 = vsub.s32 32, %v2030
        %v2032 = vshrl.u32 683565275, %v2031
        %v2033 = vshll.u32 683565275, %v2030
        %v2034 = vshrl.u32 2475754826, %v2031
        %v2035 = vor.u32 %v2033, %v2034
        %v2036 = vshll.u32 2475754826, %v2030
        %v2037 = vshrl.u32 2131351028, %v2031
        %v2038 = vor.u32 %v2036, %v2037
        %v2039 = vshll.u32 2131351028, %v2030
        %v2040 = vshrl.u32 2102212464, %v2031
        %v2041 = vor.u32 %v2039, %v2040
        %v2042 = vshll.u32 2102212464, %v2030
        %v2043 = vshrl.u32 920167782, %v2031
        %v2044 = vor.u32 %v2042, %v2043
        %v2045 = vshll.u32 920167782, %v2030
        %v2046 = vshrl.u32 1326507024, %v2031
        %v2047 = vor.u32 %v2045, %v2046
        %vm2048 = vcmp.lt.s32.totalorder %v2029, 1
        %vm2049 = vcmp.lt.s32.totalorder %v2029, 2
        %vm2050 = vcmp.lt.s32.totalorder %v2029, 3
        %vm2051 = vcmp.lt.s32.totalorder %v2029, 4
        %v2052 = vsel %vm2048, %v2032, %v2035
        %v2053 = vsel %vm2051, %v2041, 2102212464
        %v2054 = vsel %vm2050, %v2038, %v2053
        %v2055 = vsel %vm2049, %v2052, %v2054
        %v2056 = vsel %vm2048, %v2035, %v2038
        %v2057 = vsel %vm2051, %v2044, 920167782
        %v2058 = vsel %vm2050, %v2041, %v2057
        %v2059 = vsel %vm2049, %v2056, %v2058
        %v2060 = vsel %vm2048, %v2038, %v2041
        %v2061 = vsel %vm2051, %v2047, 1326507024
        %v2062 = vsel %vm2050, %v2044, %v2061
        %v2063 = vsel %vm2049, %v2060, %v2062
        %v2064 = vshll.u32 %v2024, 8
        %v2065 = vmul.u32.u64.compose %v2064, %v2063
        %v2066 = vextract.low.u32 %v2065
        %v2067 = vextract.high.u32 %v2065
        %v2068 = vmul.u32.u64.compose %v2064, %v2059
        %v2069 = vextract.low.u32 %v2068
        %v2070 = vextract.high.u32 %v2068
        %v2071 = vmul.u32 %v2064, %v2055
        %v2072 = vadd.s32 %v2067, %v2069
        %vm2073 = vc.u32 %v2067, %v2069
        %v2074 = vadd.s32 %v2070, 1
        %v2075 = vsel %vm2073, %v2074, %v2070
        %v2076 = vadd.s32 %v2071, %v2075
        %v2077 = vadd.s32 %v2076, 536870912
        %v2078 = vshrl.u32 %v2077, 30
        %v2079 = vshll.u32 %v2078, 30
        %v2080 = vsub.s32 %v2076, %v2079
        %vm2081 = vcmp.lt.s32.totalorder %v2080, 0
        %v2082 = vsub.s32 0, %v2080
        %v2083 = vsel %vm2081, %v2082, %v2080
        %v2084 = vclz %v2083
        %v2085 = vsub.s32 %v2084, 2
        %vm2086 = vcmp.gt.s32.totalorder 0, %v2085
        %v2087 = vsel %vm2086, 0, %v2085
        %v2088 = vsub.s32 32, %v2087
        %v2089 = vshll.u32 %v2080, %v2087
        %v2090 = vshrl.u32 %v2072, %v2088
        %v2091 = vor.u32 %v2089, %v2090
        %v2092 = vsub.s32 4294967266, %v2087
        %v2093 = vadd.s32 %v2092, 127
        %v2094 = vshll.u32 %v2093, 23
        %v2095 = vor.u32 4788187, %v2094
        %v2096 = vand.u32 2147483647, %v2095
        %v2098 = vcvt.s32.f32 %v2091
        %v2099 = vmul.f32 %v2098, %v2096
        %v2100 = vxor.u32 %v2099, 2147483648
        %v2101 = vsel %vm2018, %v2100, %v2099
        %v2102 = vsub.s32 4, %v2078
        %v2103 = vsel %vm2018, %v2102, %v2078
        %v2104 = vsel %vm2017, %v455, %v2101
        %v2105 = vsel %vm2017, 0, %v2103
        %v2106 = vcosq.f32.pop %v2104
        %v2107 = vsinq.f32.pop %v2104
        %vm2108 = vweird.f32 %v455
        %v2109 = vadd.s32 %v2105, 3
        %v2110 = vand.u32 %v2109, 3
        %vm2111 = vcmp.lt.s32.totalorder %v2110, 2
        %vm2112 = vcmp.eq.s32.totalorder %v2110, 0
        %v2113 = vxor.u32 %v2107, 2147483648
        %v2114 = vsel %vm2112, %v2106, %v2113
        %vm2115 = vcmp.eq.s32.totalorder %v2110, 2
        %v2116 = vxor.u32 %v2106, 2147483648
        %v2117 = vsel %vm2115, %v2116, %v2107
        %v2118 = vsel %vm2111, %v2114, %v2117
        %v2119 = vsel %vm2108, nan, %v2118
        %vm2120 = vcmask 130048
        %2121 = vst.msk [vmem:[%s231] sm:$0xff] %vm2120, %v559
        %2122 = vst.msk [vmem:[%s231 + $0x8] sm:$0xff] %vm2120, %v663
        %2123 = vst.msk [vmem:[%s231 + $0x10] sm:$0xff] %vm2120, %v767
        %2124 = vst.msk [vmem:[%s231 + $0x18] sm:$0xff] %vm2120, %v871
        %2125 = vst.msk [vmem:[%s231 + $0x20] sm:$0xff] %vm2120, %v975
        %2126 = vst.msk [vmem:[%s231 + $0x28] sm:$0xff] %vm2120, %v1079
        %2127 = vst.msk [vmem:[%s231 + $0x30] sm:$0xff] %vm2120, %v1183
        %2128 = vst.msk [vmem:[%s231 + $0x38] sm:$0xff] %vm2120, %v1287
        %2129 = vst.msk [vmem:[%s231 + $0x40] sm:$0xff] %vm2120, %v1391
        %2130 = vst.msk [vmem:[%s231 + $0x48] sm:$0xff] %vm2120, %v1495
        %2131 = vst.msk [vmem:[%s231 + $0x50] sm:$0xff] %vm2120, %v1599
        %2132 = vst.msk [vmem:[%s231 + $0x58] sm:$0xff] %vm2120, %v1703
        %2133 = vst.msk [vmem:[%s231 + $0x60] sm:$0xff] %vm2120, %v1807
        %2134 = vst.msk [vmem:[%s231 + $0x68] sm:$0xff] %vm2120, %v1911
        %2135 = vst.msk [vmem:[%s231 + $0x70] sm:$0xff] %vm2120, %v2015
        %2136 = vst.msk [vmem:[%s231 + $0x78] sm:$0xff] %vm2120, %v2119
        %s2137 = sand.u32 %s68, 1
        %s2138 = sand.u32 %s68, 1
        %s2139 = smul.addr %s2138, 128
        %s2140 = scalar_lea.vmem [#allocation3], %s2139
        // Predicated region
        $region67: #{_lambda_.9} parent=61 // pred_check
          %p2141 = pneg %p78
        $region68: #{_lambda_.9} parent=61 // pred_check_branch
          %2143 = sbr.rel (%p2141) target = $region70
        $region69: #{_lambda_.9} parent=61 // pred_region
          %s2144 = smul.addr %s13, 8
          %s2145 = scalar_lea.vmem %s2, %s2144
          // Predicated region
          $region71: #{_lambda_.9} parent=69 // pred_check
            _
          $region72: #{_lambda_.9} parent=69 // pred_check_branch
            %2147 = sbr.rel (0) target = $region74
          $region73: #{_lambda_.9} parent=69 // pred_region
            // Predicated region
            $region75: #{_lambda_.9} parent=73 // pred_check
              _
            $region76: #{_lambda_.9} parent=73 // pred_check_branch
              %2149 = sbr.rel (0) target = $region78
            $region77: #{_lambda_.9} parent=73 // pred_region
              // Predicated region
              $region90: #{_lambda_.9} parent=77 // pred_check
                _
              $region91: #{_lambda_.9} parent=77 // pred_check_branch
                %2194 = sbr.rel (0) target = $region93
              $region92: #{_lambda_.9} parent=77 // pred_region
                loop: start=0, step=1, limit=1
                $region94: #{_lambda_.9} parent=92 // loop_pre_header
                  _
                $region95: #{_lambda_.9} parent=92 // loop_header
                  %s2196 = sphi 0, %s2200
                  %p2197 = scmp.ge.s32.totalorder %s2196, 1
                  %s2201 = sphi %s2140, %s2140
                  %s2202 = sphi %s2145, %s2145
                $region96: #{_lambda_.9} parent=92 // loop_header_branch
                  %2199 = sbr.rel (%p2197) target = $region100
                $region97: #{_lambda_.9} parent=92 // loop_body
                  %v2203 = vld [vmem:[%s2201] sm:$0xff]
                  %2204 = vst [vmem:[%s2202] sm:$0xff] %v2203
                  %v2205 = vld [vmem:[%s2201 + $0x8] sm:$0xff]
                  %2206 = vst [vmem:[%s2202 + $0x10] sm:$0xff] %v2205
                  %v2207 = vld [vmem:[%s2201 + $0x10] sm:$0xff]
                  %2208 = vst [vmem:[%s2202 + $0x20] sm:$0xff] %v2207
                  %v2209 = vld [vmem:[%s2201 + $0x18] sm:$0xff]
                  %2210 = vst [vmem:[%s2202 + $0x30] sm:$0xff] %v2209
                  %v2211 = vld [vmem:[%s2201 + $0x20] sm:$0xff]
                  %2212 = vst [vmem:[%s2202 + $0x40] sm:$0xff] %v2211
                  %v2213 = vld [vmem:[%s2201 + $0x28] sm:$0xff]
                  %2214 = vst [vmem:[%s2202 + $0x50] sm:$0xff] %v2213
                  %v2215 = vld [vmem:[%s2201 + $0x30] sm:$0xff]
                  %2216 = vst [vmem:[%s2202 + $0x60] sm:$0xff] %v2215
                  %v2217 = vld [vmem:[%s2201 + $0x38] sm:$0xff]
                  %2218 = vst [vmem:[%s2202 + $0x70] sm:$0xff] %v2217
                  %v2219 = vld [vmem:[%s2201 + $0x40] sm:$0xff]
                  %2220 = vst [vmem:[%s2202 + $0x80] sm:$0xff] %v2219
                  %v2221 = vld [vmem:[%s2201 + $0x48] sm:$0xff]
                  %2222 = vst [vmem:[%s2202 + $0x90] sm:$0xff] %v2221
                  %v2223 = vld [vmem:[%s2201 + $0x50] sm:$0xff]
                  %2224 = vst [vmem:[%s2202 + $0xa0] sm:$0xff] %v2223
                  %v2225 = vld [vmem:[%s2201 + $0x58] sm:$0xff]
                  %2226 = vst [vmem:[%s2202 + $0xb0] sm:$0xff] %v2225
                  %v2227 = vld [vmem:[%s2201 + $0x60] sm:$0xff]
                  %2228 = vst [vmem:[%s2202 + $0xc0] sm:$0xff] %v2227
                  %v2229 = vld [vmem:[%s2201 + $0x68] sm:$0xff]
                  %2230 = vst [vmem:[%s2202 + $0xd0] sm:$0xff] %v2229
                  %v2231 = vld [vmem:[%s2201 + $0x70] sm:$0xff]
                  %2232 = vst [vmem:[%s2202 + $0xe0] sm:$0xff] %v2231
                  %v2233 = vld [vmem:[%s2201 + $0x78] sm:$0xff]
                  %2234 = vst [vmem:[%s2202 + $0xf0] sm:$0xff] %v2233
                $region98: #{_lambda_.9} parent=92 // loop_footer
                  %s2200 = sadd.s32 1, %s2196
                $region99: #{_lambda_.9} parent=92 // loop_footer_branch
                  %2195 = sbr.rel target = $region95
                $region100: #{_lambda_.9} parent=92 // loop_exit
                  _
              $region93: #{_lambda_.9} parent=77 // pred_fallthru
                _
              // Predicated region
              $region101: #{_lambda_.9} parent=77 // pred_check
                _
              $region102: #{_lambda_.9} parent=77 // pred_check_branch
                %2236 = sbr.rel target = $region104
              $region103: #{_lambda_.9} parent=77 // pred_region
                _
              $region104: #{_lambda_.9} parent=77 // pred_fallthru
                _
            $region78: #{_lambda_.9} parent=73 // pred_fallthru
              _
            // Predicated region
            $region79: #{_lambda_.9} parent=73 // pred_check
              _
            $region80: #{_lambda_.9} parent=73 // pred_check_branch
              %2151 = sbr.rel target = $region82
            $region81: #{_lambda_.9} parent=73 // pred_region
              loop: start=0, step=1, limit=1
              $region83: #{_lambda_.9} parent=81 // loop_pre_header
                _
              $region84: #{_lambda_.9} parent=81 // loop_header
                %s2154 = sphi 0, %s2158
                %p2155 = scmp.ge.s32.totalorder %s2154, 1
                %s2159 = sphi %s2140, %s2140
                %s2160 = sphi %s2145, %s2145
              $region85: #{_lambda_.9} parent=81 // loop_header_branch
                %2157 = sbr.rel (%p2155) target = $region89
              $region86: #{_lambda_.9} parent=81 // loop_body
                %v2161 = vld [vmem:[%s2159] sm:$0xff]
                %2162 = vst [vmem:[%s2160] sm:$0xff] %v2161
                %v2163 = vld [vmem:[%s2159 + $0x8] sm:$0xff]
                %2164 = vst [vmem:[%s2160 + $0x10] sm:$0xff] %v2163
                %v2165 = vld [vmem:[%s2159 + $0x10] sm:$0xff]
                %2166 = vst [vmem:[%s2160 + $0x20] sm:$0xff] %v2165
                %v2167 = vld [vmem:[%s2159 + $0x18] sm:$0xff]
                %2168 = vst [vmem:[%s2160 + $0x30] sm:$0xff] %v2167
                %v2169 = vld [vmem:[%s2159 + $0x20] sm:$0xff]
                %2170 = vst [vmem:[%s2160 + $0x40] sm:$0xff] %v2169
                %v2171 = vld [vmem:[%s2159 + $0x28] sm:$0xff]
                %2172 = vst [vmem:[%s2160 + $0x50] sm:$0xff] %v2171
                %v2173 = vld [vmem:[%s2159 + $0x30] sm:$0xff]
                %2174 = vst [vmem:[%s2160 + $0x60] sm:$0xff] %v2173
                %v2175 = vld [vmem:[%s2159 + $0x38] sm:$0xff]
                %2176 = vst [vmem:[%s2160 + $0x70] sm:$0xff] %v2175
                %v2177 = vld [vmem:[%s2159 + $0x40] sm:$0xff]
                %2178 = vst [vmem:[%s2160 + $0x80] sm:$0xff] %v2177
                %v2179 = vld [vmem:[%s2159 + $0x48] sm:$0xff]
                %2180 = vst [vmem:[%s2160 + $0x90] sm:$0xff] %v2179
                %v2181 = vld [vmem:[%s2159 + $0x50] sm:$0xff]
                %2182 = vst [vmem:[%s2160 + $0xa0] sm:$0xff] %v2181
                %v2183 = vld [vmem:[%s2159 + $0x58] sm:$0xff]
                %2184 = vst [vmem:[%s2160 + $0xb0] sm:$0xff] %v2183
                %v2185 = vld [vmem:[%s2159 + $0x60] sm:$0xff]
                %2186 = vst [vmem:[%s2160 + $0xc0] sm:$0xff] %v2185
                %v2187 = vld [vmem:[%s2159 + $0x68] sm:$0xff]
                %2188 = vst [vmem:[%s2160 + $0xd0] sm:$0xff] %v2187
                %v2189 = vld [vmem:[%s2159 + $0x70] sm:$0xff]
                %2190 = vst [vmem:[%s2160 + $0xe0] sm:$0xff] %v2189
                %v2191 = vld [vmem:[%s2159 + $0x78] sm:$0xff]
                %2192 = vst [vmem:[%s2160 + $0xf0] sm:$0xff] %v2191
              $region87: #{_lambda_.9} parent=81 // loop_footer
                %s2158 = sadd.s32 1, %s2154
              $region88: #{_lambda_.9} parent=81 // loop_footer_branch
                %2153 = sbr.rel target = $region84
              $region89: #{_lambda_.9} parent=81 // loop_exit
                _
            $region82: #{_lambda_.9} parent=73 // pred_fallthru
              _
          $region74: #{_lambda_.9} parent=69 // pred_fallthru
            _
          %2237 = vnop
        $region70: #{_lambda_.9} parent=61 // pred_fallthru
          _
      $region62: #{_lambda_.9} parent=5 // pred_fallthru
        _
      %p2238 = scmp.le.s32.totalorder 2, %s8
      // Predicated region
      $region105: #{_lambda_.9} parent=5 // pred_check
        %p2239 = pneg %p2238
      $region106: #{_lambda_.9} parent=5 // pred_check_branch
        %2241 = sbr.rel (%p2239) target = $region108
      $region107: #{_lambda_.9} parent=5 // pred_region
        %s2242 = ssub.s32 %s8, 2
        // Predicated region
        $region109: #{_lambda_.9} parent=107 // pred_check
          %p2243 = pneg %p84
        $region110: #{_lambda_.9} parent=107 // pred_check_branch
          %2245 = sbr.rel (%p2243) target = $region112
        $region111: #{_lambda_.9} parent=107 // pred_region
          %s2246 = sand.u32 %s69, 1
          %s2247 = sand.u32 %s69, 1
          %s2248 = smul.addr %s2247, 128
          %s2249 = scalar_lea.vmem [#allocation3], %s2248
        $region112: #{_lambda_.9} parent=107 // pred_fallthru
          _
      $region108: #{_lambda_.9} parent=5 // pred_fallthru
        _
    $region6: #{_lambda_.9} parent=1 // loop_footer
      %s12 = sadd.s32 1, %s8
    $region7: #{_lambda_.9} parent=1 // loop_footer_branch
      %7 = sbr.rel target = $region3
    $region8: #{_lambda_.9} parent=1 // loop_exit
      _

</llo_original>
